<compile_context>
chip_gen: v7x
topology: tpu7x:2x2x1
jax: 0.10.0
libtpu: 0.0.40
codegen_flags: <defaults>
</compile_context>

<pallas_src>
import functools

import numpy as np
import jax
import jax.numpy as jnp
from jax.experimental import pallas as pl
from jax.experimental.pallas import tpu as pltpu


def _mfcc_kernel(xp_ref, w1_ref, p_ref, w2t_ref, s_ref, o_ref, *,
                 n_batch, seq_len, valid_len, k1, k2, win_out):
    eps = 1e-5
    nl = n_batch * seq_len          # batched (concatenated) length
    q = n_batch * win_out           # batched output length of the framing conv

    xp = xp_ref[...]                # (1, nl + k1 - 1), zero-padded concatenated signal
    w1 = w1_ref[...]                # (F, k1)
    p = p_ref[...]                  # (F, 5): [conv bias, bn1 gamma, bn1 beta, bn2 gamma, bn2 beta]
    b1, g1, be1 = p[:, 0:1], p[:, 1:2], p[:, 2:3]
    g2, be2 = p[:, 3:4], p[:, 4:5]

    # ---- Stage 1: Conv1d(1 -> F, k1), batched over N, one MXU matmul -------------
    rows = [xp[:, k:k + nl] for k in range(k1)]          # k1 shifted row views
    cols = jnp.concatenate(rows, axis=0)                 # (k1, nl) im2col
    y1 = jnp.dot(w1, cols, preferred_element_type=jnp.float32) + b1   # (F, nl)

    # ---- Stage 2: BatchNorm1d (training: biased batch stats over valid columns) --
    col = jax.lax.broadcasted_iota(jnp.int32, (1, nl), 1)
    valid = (col >= 0) & (col < valid_len)
    for n in range(1, n_batch):
        valid = valid | ((col >= n * seq_len) & (col < n * seq_len + valid_len))
    cnt1 = float(n_batch * valid_len)
    mean1 = jnp.sum(jnp.where(valid, y1, 0.0), axis=1, keepdims=True) / cnt1
    diff1 = jnp.where(valid, y1 - mean1, 0.0)
    var1 = jnp.sum(diff1 * diff1, axis=1, keepdims=True) / cnt1
    inv1 = g1 * jax.lax.rsqrt(var1 + eps)
    z = (y1 - mean1) * inv1 + be1
    z = z * z                                            # |x|^2

    # ---- Stage 3: gather all framing-conv windows with ONE matmul ----------------
    # S is a constant 0/1 selection matrix; rows of S for columns of z that lie
    # outside the valid conv range are all-zero, so invalid columns never leak.
    zg = jnp.dot(z, s_ref[...], preferred_element_type=jnp.float32)   # (F, k2*q)

    # ---- Stage 4: apply the (general) second-conv weight tap-by-tap on the MXU ---
    acc = jnp.dot(w2t_ref[0], zg[:, 0:q], preferred_element_type=jnp.float32)
    for k in range(1, k2):
        acc = acc + jnp.dot(w2t_ref[k], zg[:, k * q:(k + 1) * q],
                            preferred_element_type=jnp.float32)
    y3 = jnp.log(acc + 1e-16)                            # (F, q)

    # ---- Stage 5: second BatchNorm1d (training-mode) ------------------------------
    cnt2 = float(q)
    mean2 = jnp.sum(y3, axis=1, keepdims=True) / cnt2
    d2 = y3 - mean2
    var2 = jnp.sum(d2 * d2, axis=1, keepdims=True) / cnt2
    inv2 = g2 * jax.lax.rsqrt(var2 + eps)
    o_ref[...] = (d2 * inv2 + be2).astype(o_ref.dtype)


def mfcc_gen_coeff(x, w1, b1, g1, be1, w2, g2, be2, *, stride=10):
    """x: (N, 1, L) f32.  Returns (N, F, L2) f32 (same math as the PyTorch forward)."""
    N, _, L = x.shape
    F_, K1 = w1.shape
    K2 = w2.shape[2]
    L1 = L - K1 + 1
    L2 = (L1 - K2) // stride + 1
    NL = N * L
    Q = N * L2

    # --- wrapper-side layout plumbing (free XLA ops, no compute hoisted) ----------
    x_pad = jnp.pad(x.reshape(1, NL), ((0, 0), (0, K1 - 1)))          # (1, NL+K1-1)
    params = jnp.concatenate([b1, g1, be1, g2, be2], axis=1)          # (F, 5)
    w2t = jnp.transpose(w2, (2, 0, 1))                                # (K2, F, C)

    # Constant 0/1 frame-selection matrix:
    #   S[n*L + t*stride + k, k*Q + (n*L2 + t)] = 1
    S = np.zeros((NL, K2 * Q), np.float32)
    for n in range(N):
        for t in range(L2):
            for k in range(K2):
                S[n * L + t * stride + k, k * Q + n * L2 + t] = 1.0
    S = jnp.asarray(S)

    def full(shape):
        return pl.BlockSpec(shape, lambda i, _n=len(shape): (0,) * _n)

    kern = functools.partial(_mfcc_kernel, n_batch=N, seq_len=L, valid_len=L1,
                             k1=K1, k2=K2, win_out=L2)
    out = pl.pallas_call(
        kern,
        out_shape=jax.ShapeDtypeStruct((F_, Q), jnp.float32),
        grid=(1,),
        in_specs=[full(x_pad.shape), full(w1.shape), full(params.shape),
                  full(w2t.shape), full(S.shape)],
        out_specs=full((F_, Q)),
        compiler_params=pltpu.CompilerParams(dimension_semantics=("arbitrary",)),
    )(x_pad, w1, params, w2t, S)

    # lane-dense kernel output (F, N*L2) -> module layout (N, F, L2)
    return jnp.transpose(out.reshape(F_, N, L2), (1, 0, 2))


def _reference(x, w1, b1, g1, be1, w2, g2, be2, *, stride=10, eps=1e-5):
    """Pure-JAX reference (same math as the PyTorch forward in training mode)."""
    dn = ('NCH', 'OIH', 'NCH')
    y1 = jax.lax.conv_general_dilated(x, w1[:, None, :], (1,), 'VALID',
                                      dimension_numbers=dn) + b1[None, :, :]
    m1 = y1.mean(axis=(0, 2), keepdims=True)
    v1 = ((y1 - m1) ** 2).mean(axis=(0, 2), keepdims=True)
    y1 = (y1 - m1) / jnp.sqrt(v1 + eps) * g1[None, :, :] + be1[None, :, :]
    y2 = y1 * y1
    y3 = jax.lax.conv_general_dilated(y2, w2, (stride,), 'VALID', dimension_numbers=dn)
    y3 = jnp.log(y3 + 1e-16)
    m2 = y3.mean(axis=(0, 2), keepdims=True)
    v2 = ((y3 - m2) ** 2).mean(axis=(0, 2), keepdims=True)
    return (y3 - m2) / jnp.sqrt(v2 + eps) * g2[None, :, :] + be2[None, :, :]


if __name__ == "__main__":
    # Module hyper-params (defaults of MFCC_Gen_coeff)
    F_ = 26                 # filters
    K1 = 81                 # gamma conv kernel
    K2 = 25                 # int(winlen * fs) = 0.025 * 1000
    STRIDE = 10             # int(winstep * fs) = 0.01 * 1000

    # Small example input consistent with the module: (batch=2, channels=1, seq=200)
    N, L = 2, 200

    key = jax.random.PRNGKey(0)
    kx, kw, kb = jax.random.split(key, 3)

    x = jax.random.normal(kx, (N, 1, L), jnp.float32)

    # Deterministic parameter init (PyTorch-style bounds; BN affine at defaults 1/0).
    bound = 1.0 / (K1 ** 0.5)
    w1 = jax.random.uniform(kw, (F_, K1), jnp.float32, -bound, bound)   # gamma conv weight
    b1 = jax.random.uniform(kb, (F_, 1), jnp.float32, -bound, bound)    # gamma conv bias
    g1 = jnp.ones((F_, 1), jnp.float32)                                 # gammanorm weight
    be1 = jnp.zeros((F_, 1), jnp.float32)                               # gammanorm bias
    # mfcc conv weight = stacked identity along the kernel axis (as in __init__)
    w2 = jnp.tile(jnp.eye(F_, dtype=jnp.float32)[:, :, None], (1, 1, K2))  # (F, F, K2)
    g2 = jnp.ones((F_, 1), jnp.float32)                                 # normmfcc weight
    be2 = jnp.zeros((F_, 1), jnp.float32)                               # normmfcc bias

    out = mfcc_gen_coeff(x, w1, b1, g1, be1, w2, g2, be2, stride=STRIDE)
    out = jax.block_until_ready(out)

    ref = jax.block_until_ready(
        _reference(x, w1, b1, g1, be1, w2, g2, be2, stride=STRIDE))

    assert out.shape == ref.shape, (out.shape, ref.shape)
    assert jnp.all(jnp.isfinite(out)), "non-finite values in kernel output"
    # Loose tolerance: MXU matmuls may use reduced-precision passes.
    assert jnp.allclose(out, ref, atol=5e-2, rtol=5e-2), \
        float(jnp.max(jnp.abs(out - ref)))

    print("KERNEL_OK")
</pallas_src>

<mosaic_0001>
module attributes {stable_mosaic.version = 11 : i64} {
  func.func @_mfcc_kernel(%arg0: i32, %arg1: memref<1x480xf32, #tpu.memory_space<vmem>>, %arg2: memref<26x81xf32, #tpu.memory_space<vmem>>, %arg3: memref<26x5xf32, #tpu.memory_space<vmem>>, %arg4: memref<25x26x26xf32, #tpu.memory_space<vmem>>, %arg5: memref<400x500xf32, #tpu.memory_space<vmem>>, %arg6: memref<26x20xf32, #tpu.memory_space<vmem>>) attributes {dimension_semantics = [#tpu.dimension_semantics<arbitrary>], iteration_bounds = array<i64: 1>, scalar_prefetch = 0 : i64, scratch_operands = 0 : i64, tpu.core_type = #tpu.core_type<tc>, window_params = [{pipeline_mode = #tpu.pipeline_mode<synchronous>, transform_indices = @transform_0, window_bounds = array<i64: 1, 480>}, {pipeline_mode = #tpu.pipeline_mode<synchronous>, transform_indices = @transform_1, window_bounds = array<i64: 26, 81>}, {pipeline_mode = #tpu.pipeline_mode<synchronous>, transform_indices = @transform_2, window_bounds = array<i64: 26, 5>}, {pipeline_mode = #tpu.pipeline_mode<synchronous>, transform_indices = @transform_3, window_bounds = array<i64: 25, 26, 26>}, {pipeline_mode = #tpu.pipeline_mode<synchronous>, transform_indices = @transform_4, window_bounds = array<i64: 400, 500>}, {pipeline_mode = #tpu.pipeline_mode<synchronous>, transform_indices = @transform_5, window_bounds = array<i64: 26, 20>}]} {
    %c0 = arith.constant 0 : index
    %c0_0 = arith.constant 0 : index
    %0 = vector.load %arg1[%c0, %c0_0] : memref<1x480xf32, #tpu.memory_space<vmem>>, vector<1x480xf32>
    %c0_1 = arith.constant 0 : index
    %c0_2 = arith.constant 0 : index
    %1 = vector.load %arg2[%c0_1, %c0_2] : memref<26x81xf32, #tpu.memory_space<vmem>>, vector<26x81xf32>
    %c0_3 = arith.constant 0 : index
    %c0_4 = arith.constant 0 : index
    %2 = vector.load %arg3[%c0_3, %c0_4] : memref<26x5xf32, #tpu.memory_space<vmem>>, vector<26x5xf32>
    %3 = vector.extract_strided_slice %2 {offsets = [0, 0], sizes = [26, 1], strides = [1, 1]} : vector<26x5xf32> to vector<26x1xf32>
    %4 = vector.extract_strided_slice %2 {offsets = [0, 1], sizes = [26, 1], strides = [1, 1]} : vector<26x5xf32> to vector<26x1xf32>
    %5 = vector.extract_strided_slice %2 {offsets = [0, 2], sizes = [26, 1], strides = [1, 1]} : vector<26x5xf32> to vector<26x1xf32>
    %6 = vector.extract_strided_slice %2 {offsets = [0, 3], sizes = [26, 1], strides = [1, 1]} : vector<26x5xf32> to vector<26x1xf32>
    %7 = vector.extract_strided_slice %2 {offsets = [0, 4], sizes = [26, 1], strides = [1, 1]} : vector<26x5xf32> to vector<26x1xf32>
    %8 = vector.extract_strided_slice %0 {offsets = [0, 0], sizes = [1, 400], strides = [1, 1]} : vector<1x480xf32> to vector<1x400xf32>
    %9 = vector.extract_strided_slice %0 {offsets = [0, 1], sizes = [1, 400], strides = [1, 1]} : vector<1x480xf32> to vector<1x400xf32>
    %10 = vector.extract_strided_slice %0 {offsets = [0, 2], sizes = [1, 400], strides = [1, 1]} : vector<1x480xf32> to vector<1x400xf32>
    %11 = vector.extract_strided_slice %0 {offsets = [0, 3], sizes = [1, 400], strides = [1, 1]} : vector<1x480xf32> to vector<1x400xf32>
    %12 = vector.extract_strided_slice %0 {offsets = [0, 4], sizes = [1, 400], strides = [1, 1]} : vector<1x480xf32> to vector<1x400xf32>
    %13 = vector.extract_strided_slice %0 {offsets = [0, 5], sizes = [1, 400], strides = [1, 1]} : vector<1x480xf32> to vector<1x400xf32>
    %14 = vector.extract_strided_slice %0 {offsets = [0, 6], sizes = [1, 400], strides = [1, 1]} : vector<1x480xf32> to vector<1x400xf32>
    %15 = vector.extract_strided_slice %0 {offsets = [0, 7], sizes = [1, 400], strides = [1, 1]} : vector<1x480xf32> to vector<1x400xf32>
    %16 = vector.extract_strided_slice %0 {offsets = [0, 8], sizes = [1, 400], strides = [1, 1]} : vector<1x480xf32> to vector<1x400xf32>
    %17 = vector.extract_strided_slice %0 {offsets = [0, 9], sizes = [1, 400], strides = [1, 1]} : vector<1x480xf32> to vector<1x400xf32>
    %18 = vector.extract_strided_slice %0 {offsets = [0, 10], sizes = [1, 400], strides = [1, 1]} : vector<1x480xf32> to vector<1x400xf32>
    %19 = vector.extract_strided_slice %0 {offsets = [0, 11], sizes = [1, 400], strides = [1, 1]} : vector<1x480xf32> to vector<1x400xf32>
    %20 = vector.extract_strided_slice %0 {offsets = [0, 12], sizes = [1, 400], strides = [1, 1]} : vector<1x480xf32> to vector<1x400xf32>
    %21 = vector.extract_strided_slice %0 {offsets = [0, 13], sizes = [1, 400], strides = [1, 1]} : vector<1x480xf32> to vector<1x400xf32>
    %22 = vector.extract_strided_slice %0 {offsets = [0, 14], sizes = [1, 400], strides = [1, 1]} : vector<1x480xf32> to vector<1x400xf32>
    %23 = vector.extract_strided_slice %0 {offsets = [0, 15], sizes = [1, 400], strides = [1, 1]} : vector<1x480xf32> to vector<1x400xf32>
    %24 = vector.extract_strided_slice %0 {offsets = [0, 16], sizes = [1, 400], strides = [1, 1]} : vector<1x480xf32> to vector<1x400xf32>
    %25 = vector.extract_strided_slice %0 {offsets = [0, 17], sizes = [1, 400], strides = [1, 1]} : vector<1x480xf32> to vector<1x400xf32>
    %26 = vector.extract_strided_slice %0 {offsets = [0, 18], sizes = [1, 400], strides = [1, 1]} : vector<1x480xf32> to vector<1x400xf32>
    %27 = vector.extract_strided_slice %0 {offsets = [0, 19], sizes = [1, 400], strides = [1, 1]} : vector<1x480xf32> to vector<1x400xf32>
    %28 = vector.extract_strided_slice %0 {offsets = [0, 20], sizes = [1, 400], strides = [1, 1]} : vector<1x480xf32> to vector<1x400xf32>
    %29 = vector.extract_strided_slice %0 {offsets = [0, 21], sizes = [1, 400], strides = [1, 1]} : vector<1x480xf32> to vector<1x400xf32>
    %30 = vector.extract_strided_slice %0 {offsets = [0, 22], sizes = [1, 400], strides = [1, 1]} : vector<1x480xf32> to vector<1x400xf32>
    %31 = vector.extract_strided_slice %0 {offsets = [0, 23], sizes = [1, 400], strides = [1, 1]} : vector<1x480xf32> to vector<1x400xf32>
    %32 = vector.extract_strided_slice %0 {offsets = [0, 24], sizes = [1, 400], strides = [1, 1]} : vector<1x480xf32> to vector<1x400xf32>
    %33 = vector.extract_strided_slice %0 {offsets = [0, 25], sizes = [1, 400], strides = [1, 1]} : vector<1x480xf32> to vector<1x400xf32>
    %34 = vector.extract_strided_slice %0 {offsets = [0, 26], sizes = [1, 400], strides = [1, 1]} : vector<1x480xf32> to vector<1x400xf32>
    %35 = vector.extract_strided_slice %0 {offsets = [0, 27], sizes = [1, 400], strides = [1, 1]} : vector<1x480xf32> to vector<1x400xf32>
    %36 = vector.extract_strided_slice %0 {offsets = [0, 28], sizes = [1, 400], strides = [1, 1]} : vector<1x480xf32> to vector<1x400xf32>
    %37 = vector.extract_strided_slice %0 {offsets = [0, 29], sizes = [1, 400], strides = [1, 1]} : vector<1x480xf32> to vector<1x400xf32>
    %38 = vector.extract_strided_slice %0 {offsets = [0, 30], sizes = [1, 400], strides = [1, 1]} : vector<1x480xf32> to vector<1x400xf32>
    %39 = vector.extract_strided_slice %0 {offsets = [0, 31], sizes = [1, 400], strides = [1, 1]} : vector<1x480xf32> to vector<1x400xf32>
    %40 = vector.extract_strided_slice %0 {offsets = [0, 32], sizes = [1, 400], strides = [1, 1]} : vector<1x480xf32> to vector<1x400xf32>
    %41 = vector.extract_strided_slice %0 {offsets = [0, 33], sizes = [1, 400], strides = [1, 1]} : vector<1x480xf32> to vector<1x400xf32>
    %42 = vector.extract_strided_slice %0 {offsets = [0, 34], sizes = [1, 400], strides = [1, 1]} : vector<1x480xf32> to vector<1x400xf32>
    %43 = vector.extract_strided_slice %0 {offsets = [0, 35], sizes = [1, 400], strides = [1, 1]} : vector<1x480xf32> to vector<1x400xf32>
    %44 = vector.extract_strided_slice %0 {offsets = [0, 36], sizes = [1, 400], strides = [1, 1]} : vector<1x480xf32> to vector<1x400xf32>
    %45 = vector.extract_strided_slice %0 {offsets = [0, 37], sizes = [1, 400], strides = [1, 1]} : vector<1x480xf32> to vector<1x400xf32>
    %46 = vector.extract_strided_slice %0 {offsets = [0, 38], sizes = [1, 400], strides = [1, 1]} : vector<1x480xf32> to vector<1x400xf32>
    %47 = vector.extract_strided_slice %0 {offsets = [0, 39], sizes = [1, 400], strides = [1, 1]} : vector<1x480xf32> to vector<1x400xf32>
    %48 = vector.extract_strided_slice %0 {offsets = [0, 40], sizes = [1, 400], strides = [1, 1]} : vector<1x480xf32> to vector<1x400xf32>
    %49 = vector.extract_strided_slice %0 {offsets = [0, 41], sizes = [1, 400], strides = [1, 1]} : vector<1x480xf32> to vector<1x400xf32>
    %50 = vector.extract_strided_slice %0 {offsets = [0, 42], sizes = [1, 400], strides = [1, 1]} : vector<1x480xf32> to vector<1x400xf32>
    %51 = vector.extract_strided_slice %0 {offsets = [0, 43], sizes = [1, 400], strides = [1, 1]} : vector<1x480xf32> to vector<1x400xf32>
    %52 = vector.extract_strided_slice %0 {offsets = [0, 44], sizes = [1, 400], strides = [1, 1]} : vector<1x480xf32> to vector<1x400xf32>
    %53 = vector.extract_strided_slice %0 {offsets = [0, 45], sizes = [1, 400], strides = [1, 1]} : vector<1x480xf32> to vector<1x400xf32>
    %54 = vector.extract_strided_slice %0 {offsets = [0, 46], sizes = [1, 400], strides = [1, 1]} : vector<1x480xf32> to vector<1x400xf32>
    %55 = vector.extract_strided_slice %0 {offsets = [0, 47], sizes = [1, 400], strides = [1, 1]} : vector<1x480xf32> to vector<1x400xf32>
    %56 = vector.extract_strided_slice %0 {offsets = [0, 48], sizes = [1, 400], strides = [1, 1]} : vector<1x480xf32> to vector<1x400xf32>
    %57 = vector.extract_strided_slice %0 {offsets = [0, 49], sizes = [1, 400], strides = [1, 1]} : vector<1x480xf32> to vector<1x400xf32>
    %58 = vector.extract_strided_slice %0 {offsets = [0, 50], sizes = [1, 400], strides = [1, 1]} : vector<1x480xf32> to vector<1x400xf32>
    %59 = vector.extract_strided_slice %0 {offsets = [0, 51], sizes = [1, 400], strides = [1, 1]} : vector<1x480xf32> to vector<1x400xf32>
    %60 = vector.extract_strided_slice %0 {offsets = [0, 52], sizes = [1, 400], strides = [1, 1]} : vector<1x480xf32> to vector<1x400xf32>
    %61 = vector.extract_strided_slice %0 {offsets = [0, 53], sizes = [1, 400], strides = [1, 1]} : vector<1x480xf32> to vector<1x400xf32>
    %62 = vector.extract_strided_slice %0 {offsets = [0, 54], sizes = [1, 400], strides = [1, 1]} : vector<1x480xf32> to vector<1x400xf32>
    %63 = vector.extract_strided_slice %0 {offsets = [0, 55], sizes = [1, 400], strides = [1, 1]} : vector<1x480xf32> to vector<1x400xf32>
    %64 = vector.extract_strided_slice %0 {offsets = [0, 56], sizes = [1, 400], strides = [1, 1]} : vector<1x480xf32> to vector<1x400xf32>
    %65 = vector.extract_strided_slice %0 {offsets = [0, 57], sizes = [1, 400], strides = [1, 1]} : vector<1x480xf32> to vector<1x400xf32>
    %66 = vector.extract_strided_slice %0 {offsets = [0, 58], sizes = [1, 400], strides = [1, 1]} : vector<1x480xf32> to vector<1x400xf32>
    %67 = vector.extract_strided_slice %0 {offsets = [0, 59], sizes = [1, 400], strides = [1, 1]} : vector<1x480xf32> to vector<1x400xf32>
    %68 = vector.extract_strided_slice %0 {offsets = [0, 60], sizes = [1, 400], strides = [1, 1]} : vector<1x480xf32> to vector<1x400xf32>
    %69 = vector.extract_strided_slice %0 {offsets = [0, 61], sizes = [1, 400], strides = [1, 1]} : vector<1x480xf32> to vector<1x400xf32>
    %70 = vector.extract_strided_slice %0 {offsets = [0, 62], sizes = [1, 400], strides = [1, 1]} : vector<1x480xf32> to vector<1x400xf32>
    %71 = vector.extract_strided_slice %0 {offsets = [0, 63], sizes = [1, 400], strides = [1, 1]} : vector<1x480xf32> to vector<1x400xf32>
    %72 = vector.extract_strided_slice %0 {offsets = [0, 64], sizes = [1, 400], strides = [1, 1]} : vector<1x480xf32> to vector<1x400xf32>
    %73 = vector.extract_strided_slice %0 {offsets = [0, 65], sizes = [1, 400], strides = [1, 1]} : vector<1x480xf32> to vector<1x400xf32>
    %74 = vector.extract_strided_slice %0 {offsets = [0, 66], sizes = [1, 400], strides = [1, 1]} : vector<1x480xf32> to vector<1x400xf32>
    %75 = vector.extract_strided_slice %0 {offsets = [0, 67], sizes = [1, 400], strides = [1, 1]} : vector<1x480xf32> to vector<1x400xf32>
    %76 = vector.extract_strided_slice %0 {offsets = [0, 68], sizes = [1, 400], strides = [1, 1]} : vector<1x480xf32> to vector<1x400xf32>
    %77 = vector.extract_strided_slice %0 {offsets = [0, 69], sizes = [1, 400], strides = [1, 1]} : vector<1x480xf32> to vector<1x400xf32>
    %78 = vector.extract_strided_slice %0 {offsets = [0, 70], sizes = [1, 400], strides = [1, 1]} : vector<1x480xf32> to vector<1x400xf32>
    %79 = vector.extract_strided_slice %0 {offsets = [0, 71], sizes = [1, 400], strides = [1, 1]} : vector<1x480xf32> to vector<1x400xf32>
    %80 = vector.extract_strided_slice %0 {offsets = [0, 72], sizes = [1, 400], strides = [1, 1]} : vector<1x480xf32> to vector<1x400xf32>
    %81 = vector.extract_strided_slice %0 {offsets = [0, 73], sizes = [1, 400], strides = [1, 1]} : vector<1x480xf32> to vector<1x400xf32>
    %82 = vector.extract_strided_slice %0 {offsets = [0, 74], sizes = [1, 400], strides = [1, 1]} : vector<1x480xf32> to vector<1x400xf32>
    %83 = vector.extract_strided_slice %0 {offsets = [0, 75], sizes = [1, 400], strides = [1, 1]} : vector<1x480xf32> to vector<1x400xf32>
    %84 = vector.extract_strided_slice %0 {offsets = [0, 76], sizes = [1, 400], strides = [1, 1]} : vector<1x480xf32> to vector<1x400xf32>
    %85 = vector.extract_strided_slice %0 {offsets = [0, 77], sizes = [1, 400], strides = [1, 1]} : vector<1x480xf32> to vector<1x400xf32>
    %86 = vector.extract_strided_slice %0 {offsets = [0, 78], sizes = [1, 400], strides = [1, 1]} : vector<1x480xf32> to vector<1x400xf32>
    %87 = vector.extract_strided_slice %0 {offsets = [0, 79], sizes = [1, 400], strides = [1, 1]} : vector<1x480xf32> to vector<1x400xf32>
    %88 = vector.extract_strided_slice %0 {offsets = [0, 80], sizes = [1, 400], strides = [1, 1]} : vector<1x480xf32> to vector<1x400xf32>
    %89 = tpu.concatenate %8, %9, %10, %11, %12, %13, %14, %15, %16, %17, %18, %19, %20, %21, %22, %23 in 0 : vector<1x400xf32>, vector<1x400xf32>, vector<1x400xf32>, vector<1x400xf32>, vector<1x400xf32>, vector<1x400xf32>, vector<1x400xf32>, vector<1x400xf32>, vector<1x400xf32>, vector<1x400xf32>, vector<1x400xf32>, vector<1x400xf32>, vector<1x400xf32>, vector<1x400xf32>, vector<1x400xf32>, vector<1x400xf32> -> vector<16x400xf32>
    %90 = tpu.concatenate %24, %25, %26, %27, %28, %29, %30, %31, %32, %33, %34, %35, %36, %37, %38, %39 in 0 : vector<1x400xf32>, vector<1x400xf32>, vector<1x400xf32>, vector<1x400xf32>, vector<1x400xf32>, vector<1x400xf32>, vector<1x400xf32>, vector<1x400xf32>, vector<1x400xf32>, vector<1x400xf32>, vector<1x400xf32>, vector<1x400xf32>, vector<1x400xf32>, vector<1x400xf32>, vector<1x400xf32>, vector<1x400xf32> -> vector<16x400xf32>
    %91 = tpu.concatenate %40, %41, %42, %43, %44, %45, %46, %47, %48, %49, %50, %51, %52, %53, %54, %55 in 0 : vector<1x400xf32>, vector<1x400xf32>, vector<1x400xf32>, vector<1x400xf32>, vector<1x400xf32>, vector<1x400xf32>, vector<1x400xf32>, vector<1x400xf32>, vector<1x400xf32>, vector<1x400xf32>, vector<1x400xf32>, vector<1x400xf32>, vector<1x400xf32>, vector<1x400xf32>, vector<1x400xf32>, vector<1x400xf32> -> vector<16x400xf32>
    %92 = tpu.concatenate %56, %57, %58, %59, %60, %61, %62, %63, %64, %65, %66, %67, %68, %69, %70, %71 in 0 : vector<1x400xf32>, vector<1x400xf32>, vector<1x400xf32>, vector<1x400xf32>, vector<1x400xf32>, vector<1x400xf32>, vector<1x400xf32>, vector<1x400xf32>, vector<1x400xf32>, vector<1x400xf32>, vector<1x400xf32>, vector<1x400xf32>, vector<1x400xf32>, vector<1x400xf32>, vector<1x400xf32>, vector<1x400xf32> -> vector<16x400xf32>
    %93 = tpu.concatenate %72, %73, %74, %75, %76, %77, %78, %79, %80, %81, %82, %83, %84, %85, %86, %87 in 0 : vector<1x400xf32>, vector<1x400xf32>, vector<1x400xf32>, vector<1x400xf32>, vector<1x400xf32>, vector<1x400xf32>, vector<1x400xf32>, vector<1x400xf32>, vector<1x400xf32>, vector<1x400xf32>, vector<1x400xf32>, vector<1x400xf32>, vector<1x400xf32>, vector<1x400xf32>, vector<1x400xf32>, vector<1x400xf32> -> vector<16x400xf32>
    %94 = tpu.concatenate %89, %90, %91, %92, %93, %88 in 0 : vector<16x400xf32>, vector<16x400xf32>, vector<16x400xf32>, vector<16x400xf32>, vector<16x400xf32>, vector<1x400xf32> -> vector<81x400xf32>
    %cst = arith.constant dense<0.000000e+00> : vector<26x400xf32>
    %95 = tpu.matmul %1, %94, %cst {dimension_numbers = #tpu.dot_dimension_numbers<[1], [0], [0], [1], [0, 0, 1, 1], [], []>} : vector<26x81xf32>, vector<81x400xf32>, vector<26x400xf32> -> vector<26x400xf32>
    %96 = vector.broadcast %3 : vector<26x1xf32> to vector<26x400xf32>
    %97 = arith.addf %95, %96 : vector<26x400xf32>
    %98 = tpu.iota {dimensions = array<i32: 1>} : vector<1x400xi32>
    %c0_i32 = arith.constant 0 : i32
    %99 = vector.broadcast %c0_i32 : i32 to vector<1x400xi32>
    %100 = arith.cmpi sge, %98, %99 : vector<1x400xi32>
    %c120_i32 = arith.constant 120 : i32
    %101 = vector.broadcast %c120_i32 : i32 to vector<1x400xi32>
    %102 = arith.cmpi slt, %98, %101 : vector<1x400xi32>
    %103 = arith.andi %100, %102 : vector<1x400xi1>
    %c200_i32 = arith.constant 200 : i32
    %104 = vector.broadcast %c200_i32 : i32 to vector<1x400xi32>
    %105 = arith.cmpi sge, %98, %104 : vector<1x400xi32>
    %c320_i32 = arith.constant 320 : i32
    %106 = vector.broadcast %c320_i32 : i32 to vector<1x400xi32>
    %107 = arith.cmpi slt, %98, %106 : vector<1x400xi32>
    %108 = arith.andi %105, %107 : vector<1x400xi1>
    %109 = arith.ori %103, %108 : vector<1x400xi1>
    %cst_5 = arith.constant 0.000000e+00 : f32
    %110 = vector.shape_cast %109 : vector<1x400xi1> to vector<1x400xi1>
    %111 = vector.broadcast %110 : vector<1x400xi1> to vector<26x400xi1>
    %112 = vector.broadcast %cst_5 : f32 to vector<26x400xf32>
    %113 = arith.select %111, %97, %112 : vector<26x400xi1>, vector<26x400xf32>
    %cst_6 = arith.constant dense<0.000000e+00> : vector<26xf32>
    %114 = vector.multi_reduction <add>, %113, %cst_6 [1] : vector<26x400xf32> to vector<26xf32>
    %115 = vector.shape_cast %114 : vector<26xf32> to vector<26x1xf32>
    %cst_7 = arith.constant 2.400000e+02 : f32
    %116 = vector.broadcast %cst_7 : f32 to vector<26x1xf32>
    %117 = arith.divf %115, %116 : vector<26x1xf32>
    %118 = vector.broadcast %117 : vector<26x1xf32> to vector<26x400xf32>
    %119 = arith.subf %97, %118 : vector<26x400xf32>
    %cst_8 = arith.constant 0.000000e+00 : f32
    %120 = vector.shape_cast %109 : vector<1x400xi1> to vector<1x400xi1>
    %121 = vector.broadcast %120 : vector<1x400xi1> to vector<26x400xi1>
    %122 = vector.broadcast %cst_8 : f32 to vector<26x400xf32>
    %123 = arith.select %121, %119, %122 : vector<26x400xi1>, vector<26x400xf32>
    %124 = arith.mulf %123, %123 : vector<26x400xf32>
    %cst_9 = arith.constant dense<0.000000e+00> : vector<26xf32>
    %125 = vector.multi_reduction <add>, %124, %cst_9 [1] : vector<26x400xf32> to vector<26xf32>
    %126 = vector.shape_cast %125 : vector<26xf32> to vector<26x1xf32>
    %cst_10 = arith.constant 2.400000e+02 : f32
    %127 = vector.broadcast %cst_10 : f32 to vector<26x1xf32>
    %128 = arith.divf %126, %127 : vector<26x1xf32>
    %cst_11 = arith.constant 9.99999974E-6 : f32
    %129 = vector.broadcast %cst_11 : f32 to vector<26x1xf32>
    %130 = arith.addf %128, %129 : vector<26x1xf32>
    %131 = math.rsqrt %130 : vector<26x1xf32>
    %132 = arith.mulf %4, %131 : vector<26x1xf32>
    %133 = vector.broadcast %117 : vector<26x1xf32> to vector<26x400xf32>
    %134 = arith.subf %97, %133 : vector<26x400xf32>
    %135 = vector.broadcast %132 : vector<26x1xf32> to vector<26x400xf32>
    %136 = arith.mulf %134, %135 : vector<26x400xf32>
    %137 = vector.broadcast %5 : vector<26x1xf32> to vector<26x400xf32>
    %138 = arith.addf %136, %137 : vector<26x400xf32>
    %139 = arith.mulf %138, %138 : vector<26x400xf32>
    %c0_12 = arith.constant 0 : index
    %c0_13 = arith.constant 0 : index
    %140 = vector.load %arg5[%c0_12, %c0_13] : memref<400x500xf32, #tpu.memory_space<vmem>>, vector<400x500xf32>
    %cst_14 = arith.constant dense<0.000000e+00> : vector<26x500xf32>
    %141 = tpu.matmul %139, %140, %cst_14 {dimension_numbers = #tpu.dot_dimension_numbers<[1], [0], [0], [1], [0, 0, 1, 1], [], []>} : vector<26x400xf32>, vector<400x500xf32>, vector<26x500xf32> -> vector<26x500xf32>
    %c0_15 = arith.constant 0 : index
    %c0_16 = arith.constant 0 : index
    %c0_17 = arith.constant 0 : index
    %142 = vector.load %arg4[%c0_15, %c0_16, %c0_17] : memref<25x26x26xf32, #tpu.memory_space<vmem>>, vector<1x26x26xf32>
    %143 = vector.shape_cast %142 : vector<1x26x26xf32> to vector<26x26xf32>
    %144 = vector.extract_strided_slice %141 {offsets = [0, 0], sizes = [26, 20], strides = [1, 1]} : vector<26x500xf32> to vector<26x20xf32>
    %cst_18 = arith.constant dense<0.000000e+00> : vector<26x20xf32>
    %145 = tpu.matmul %143, %144, %cst_18 {dimension_numbers = #tpu.dot_dimension_numbers<[1], [0], [0], [1], [0, 0, 1, 1], [], []>} : vector<26x26xf32>, vector<26x20xf32>, vector<26x20xf32> -> vector<26x20xf32>
    %c1 = arith.constant 1 : index
    %c0_19 = arith.constant 0 : index
    %c0_20 = arith.constant 0 : index
    %146 = vector.load %arg4[%c1, %c0_19, %c0_20] : memref<25x26x26xf32, #tpu.memory_space<vmem>>, vector<1x26x26xf32>
    %147 = vector.shape_cast %146 : vector<1x26x26xf32> to vector<26x26xf32>
    %148 = vector.extract_strided_slice %141 {offsets = [0, 20], sizes = [26, 20], strides = [1, 1]} : vector<26x500xf32> to vector<26x20xf32>
    %cst_21 = arith.constant dense<0.000000e+00> : vector<26x20xf32>
    %149 = tpu.matmul %147, %148, %cst_21 {dimension_numbers = #tpu.dot_dimension_numbers<[1], [0], [0], [1], [0, 0, 1, 1], [], []>} : vector<26x26xf32>, vector<26x20xf32>, vector<26x20xf32> -> vector<26x20xf32>
    %150 = arith.addf %145, %149 : vector<26x20xf32>
    %c2 = arith.constant 2 : index
    %c0_22 = arith.constant 0 : index
    %c0_23 = arith.constant 0 : index
    %151 = vector.load %arg4[%c2, %c0_22, %c0_23] : memref<25x26x26xf32, #tpu.memory_space<vmem>>, vector<1x26x26xf32>
    %152 = vector.shape_cast %151 : vector<1x26x26xf32> to vector<26x26xf32>
    %153 = vector.extract_strided_slice %141 {offsets = [0, 40], sizes = [26, 20], strides = [1, 1]} : vector<26x500xf32> to vector<26x20xf32>
    %cst_24 = arith.constant dense<0.000000e+00> : vector<26x20xf32>
    %154 = tpu.matmul %152, %153, %cst_24 {dimension_numbers = #tpu.dot_dimension_numbers<[1], [0], [0], [1], [0, 0, 1, 1], [], []>} : vector<26x26xf32>, vector<26x20xf32>, vector<26x20xf32> -> vector<26x20xf32>
    %155 = arith.addf %150, %154 : vector<26x20xf32>
    %c3 = arith.constant 3 : index
    %c0_25 = arith.constant 0 : index
    %c0_26 = arith.constant 0 : index
    %156 = vector.load %arg4[%c3, %c0_25, %c0_26] : memref<25x26x26xf32, #tpu.memory_space<vmem>>, vector<1x26x26xf32>
    %157 = vector.shape_cast %156 : vector<1x26x26xf32> to vector<26x26xf32>
    %158 = vector.extract_strided_slice %141 {offsets = [0, 60], sizes = [26, 20], strides = [1, 1]} : vector<26x500xf32> to vector<26x20xf32>
    %cst_27 = arith.constant dense<0.000000e+00> : vector<26x20xf32>
    %159 = tpu.matmul %157, %158, %cst_27 {dimension_numbers = #tpu.dot_dimension_numbers<[1], [0], [0], [1], [0, 0, 1, 1], [], []>} : vector<26x26xf32>, vector<26x20xf32>, vector<26x20xf32> -> vector<26x20xf32>
    %160 = arith.addf %155, %159 : vector<26x20xf32>
    %c4 = arith.constant 4 : index
    %c0_28 = arith.constant 0 : index
    %c0_29 = arith.constant 0 : index
    %161 = vector.load %arg4[%c4, %c0_28, %c0_29] : memref<25x26x26xf32, #tpu.memory_space<vmem>>, vector<1x26x26xf32>
    %162 = vector.shape_cast %161 : vector<1x26x26xf32> to vector<26x26xf32>
    %163 = vector.extract_strided_slice %141 {offsets = [0, 80], sizes = [26, 20], strides = [1, 1]} : vector<26x500xf32> to vector<26x20xf32>
    %cst_30 = arith.constant dense<0.000000e+00> : vector<26x20xf32>
    %164 = tpu.matmul %162, %163, %cst_30 {dimension_numbers = #tpu.dot_dimension_numbers<[1], [0], [0], [1], [0, 0, 1, 1], [], []>} : vector<26x26xf32>, vector<26x20xf32>, vector<26x20xf32> -> vector<26x20xf32>
    %165 = arith.addf %160, %164 : vector<26x20xf32>
    %c5 = arith.constant 5 : index
    %c0_31 = arith.constant 0 : index
    %c0_32 = arith.constant 0 : index
    %166 = vector.load %arg4[%c5, %c0_31, %c0_32] : memref<25x26x26xf32, #tpu.memory_space<vmem>>, vector<1x26x26xf32>
    %167 = vector.shape_cast %166 : vector<1x26x26xf32> to vector<26x26xf32>
    %168 = vector.extract_strided_slice %141 {offsets = [0, 100], sizes = [26, 20], strides = [1, 1]} : vector<26x500xf32> to vector<26x20xf32>
    %cst_33 = arith.constant dense<0.000000e+00> : vector<26x20xf32>
    %169 = tpu.matmul %167, %168, %cst_33 {dimension_numbers = #tpu.dot_dimension_numbers<[1], [0], [0], [1], [0, 0, 1, 1], [], []>} : vector<26x26xf32>, vector<26x20xf32>, vector<26x20xf32> -> vector<26x20xf32>
    %170 = arith.addf %165, %169 : vector<26x20xf32>
    %c6 = arith.constant 6 : index
    %c0_34 = arith.constant 0 : index
    %c0_35 = arith.constant 0 : index
    %171 = vector.load %arg4[%c6, %c0_34, %c0_35] : memref<25x26x26xf32, #tpu.memory_space<vmem>>, vector<1x26x26xf32>
    %172 = vector.shape_cast %171 : vector<1x26x26xf32> to vector<26x26xf32>
    %173 = vector.extract_strided_slice %141 {offsets = [0, 120], sizes = [26, 20], strides = [1, 1]} : vector<26x500xf32> to vector<26x20xf32>
    %cst_36 = arith.constant dense<0.000000e+00> : vector<26x20xf32>
    %174 = tpu.matmul %172, %173, %cst_36 {dimension_numbers = #tpu.dot_dimension_numbers<[1], [0], [0], [1], [0, 0, 1, 1], [], []>} : vector<26x26xf32>, vector<26x20xf32>, vector<26x20xf32> -> vector<26x20xf32>
    %175 = arith.addf %170, %174 : vector<26x20xf32>
    %c7 = arith.constant 7 : index
    %c0_37 = arith.constant 0 : index
    %c0_38 = arith.constant 0 : index
    %176 = vector.load %arg4[%c7, %c0_37, %c0_38] : memref<25x26x26xf32, #tpu.memory_space<vmem>>, vector<1x26x26xf32>
    %177 = vector.shape_cast %176 : vector<1x26x26xf32> to vector<26x26xf32>
    %178 = vector.extract_strided_slice %141 {offsets = [0, 140], sizes = [26, 20], strides = [1, 1]} : vector<26x500xf32> to vector<26x20xf32>
    %cst_39 = arith.constant dense<0.000000e+00> : vector<26x20xf32>
    %179 = tpu.matmul %177, %178, %cst_39 {dimension_numbers = #tpu.dot_dimension_numbers<[1], [0], [0], [1], [0, 0, 1, 1], [], []>} : vector<26x26xf32>, vector<26x20xf32>, vector<26x20xf32> -> vector<26x20xf32>
    %180 = arith.addf %175, %179 : vector<26x20xf32>
    %c8 = arith.constant 8 : index
    %c0_40 = arith.constant 0 : index
    %c0_41 = arith.constant 0 : index
    %181 = vector.load %arg4[%c8, %c0_40, %c0_41] : memref<25x26x26xf32, #tpu.memory_space<vmem>>, vector<1x26x26xf32>
    %182 = vector.shape_cast %181 : vector<1x26x26xf32> to vector<26x26xf32>
    %183 = vector.extract_strided_slice %141 {offsets = [0, 160], sizes = [26, 20], strides = [1, 1]} : vector<26x500xf32> to vector<26x20xf32>
    %cst_42 = arith.constant dense<0.000000e+00> : vector<26x20xf32>
    %184 = tpu.matmul %182, %183, %cst_42 {dimension_numbers = #tpu.dot_dimension_numbers<[1], [0], [0], [1], [0, 0, 1, 1], [], []>} : vector<26x26xf32>, vector<26x20xf32>, vector<26x20xf32> -> vector<26x20xf32>
    %185 = arith.addf %180, %184 : vector<26x20xf32>
    %c9 = arith.constant 9 : index
    %c0_43 = arith.constant 0 : index
    %c0_44 = arith.constant 0 : index
    %186 = vector.load %arg4[%c9, %c0_43, %c0_44] : memref<25x26x26xf32, #tpu.memory_space<vmem>>, vector<1x26x26xf32>
    %187 = vector.shape_cast %186 : vector<1x26x26xf32> to vector<26x26xf32>
    %188 = vector.extract_strided_slice %141 {offsets = [0, 180], sizes = [26, 20], strides = [1, 1]} : vector<26x500xf32> to vector<26x20xf32>
    %cst_45 = arith.constant dense<0.000000e+00> : vector<26x20xf32>
    %189 = tpu.matmul %187, %188, %cst_45 {dimension_numbers = #tpu.dot_dimension_numbers<[1], [0], [0], [1], [0, 0, 1, 1], [], []>} : vector<26x26xf32>, vector<26x20xf32>, vector<26x20xf32> -> vector<26x20xf32>
    %190 = arith.addf %185, %189 : vector<26x20xf32>
    %c10 = arith.constant 10 : index
    %c0_46 = arith.constant 0 : index
    %c0_47 = arith.constant 0 : index
    %191 = vector.load %arg4[%c10, %c0_46, %c0_47] : memref<25x26x26xf32, #tpu.memory_space<vmem>>, vector<1x26x26xf32>
    %192 = vector.shape_cast %191 : vector<1x26x26xf32> to vector<26x26xf32>
    %193 = vector.extract_strided_slice %141 {offsets = [0, 200], sizes = [26, 20], strides = [1, 1]} : vector<26x500xf32> to vector<26x20xf32>
    %cst_48 = arith.constant dense<0.000000e+00> : vector<26x20xf32>
    %194 = tpu.matmul %192, %193, %cst_48 {dimension_numbers = #tpu.dot_dimension_numbers<[1], [0], [0], [1], [0, 0, 1, 1], [], []>} : vector<26x26xf32>, vector<26x20xf32>, vector<26x20xf32> -> vector<26x20xf32>
    %195 = arith.addf %190, %194 : vector<26x20xf32>
    %c11 = arith.constant 11 : index
    %c0_49 = arith.constant 0 : index
    %c0_50 = arith.constant 0 : index
    %196 = vector.load %arg4[%c11, %c0_49, %c0_50] : memref<25x26x26xf32, #tpu.memory_space<vmem>>, vector<1x26x26xf32>
    %197 = vector.shape_cast %196 : vector<1x26x26xf32> to vector<26x26xf32>
    %198 = vector.extract_strided_slice %141 {offsets = [0, 220], sizes = [26, 20], strides = [1, 1]} : vector<26x500xf32> to vector<26x20xf32>
    %cst_51 = arith.constant dense<0.000000e+00> : vector<26x20xf32>
    %199 = tpu.matmul %197, %198, %cst_51 {dimension_numbers = #tpu.dot_dimension_numbers<[1], [0], [0], [1], [0, 0, 1, 1], [], []>} : vector<26x26xf32>, vector<26x20xf32>, vector<26x20xf32> -> vector<26x20xf32>
    %200 = arith.addf %195, %199 : vector<26x20xf32>
    %c12 = arith.constant 12 : index
    %c0_52 = arith.constant 0 : index
    %c0_53 = arith.constant 0 : index
    %201 = vector.load %arg4[%c12, %c0_52, %c0_53] : memref<25x26x26xf32, #tpu.memory_space<vmem>>, vector<1x26x26xf32>
    %202 = vector.shape_cast %201 : vector<1x26x26xf32> to vector<26x26xf32>
    %203 = vector.extract_strided_slice %141 {offsets = [0, 240], sizes = [26, 20], strides = [1, 1]} : vector<26x500xf32> to vector<26x20xf32>
    %cst_54 = arith.constant dense<0.000000e+00> : vector<26x20xf32>
    %204 = tpu.matmul %202, %203, %cst_54 {dimension_numbers = #tpu.dot_dimension_numbers<[1], [0], [0], [1], [0, 0, 1, 1], [], []>} : vector<26x26xf32>, vector<26x20xf32>, vector<26x20xf32> -> vector<26x20xf32>
    %205 = arith.addf %200, %204 : vector<26x20xf32>
    %c13 = arith.constant 13 : index
    %c0_55 = arith.constant 0 : index
    %c0_56 = arith.constant 0 : index
    %206 = vector.load %arg4[%c13, %c0_55, %c0_56] : memref<25x26x26xf32, #tpu.memory_space<vmem>>, vector<1x26x26xf32>
    %207 = vector.shape_cast %206 : vector<1x26x26xf32> to vector<26x26xf32>
    %208 = vector.extract_strided_slice %141 {offsets = [0, 260], sizes = [26, 20], strides = [1, 1]} : vector<26x500xf32> to vector<26x20xf32>
    %cst_57 = arith.constant dense<0.000000e+00> : vector<26x20xf32>
    %209 = tpu.matmul %207, %208, %cst_57 {dimension_numbers = #tpu.dot_dimension_numbers<[1], [0], [0], [1], [0, 0, 1, 1], [], []>} : vector<26x26xf32>, vector<26x20xf32>, vector<26x20xf32> -> vector<26x20xf32>
    %210 = arith.addf %205, %209 : vector<26x20xf32>
    %c14 = arith.constant 14 : index
    %c0_58 = arith.constant 0 : index
    %c0_59 = arith.constant 0 : index
    %211 = vector.load %arg4[%c14, %c0_58, %c0_59] : memref<25x26x26xf32, #tpu.memory_space<vmem>>, vector<1x26x26xf32>
    %212 = vector.shape_cast %211 : vector<1x26x26xf32> to vector<26x26xf32>
    %213 = vector.extract_strided_slice %141 {offsets = [0, 280], sizes = [26, 20], strides = [1, 1]} : vector<26x500xf32> to vector<26x20xf32>
    %cst_60 = arith.constant dense<0.000000e+00> : vector<26x20xf32>
    %214 = tpu.matmul %212, %213, %cst_60 {dimension_numbers = #tpu.dot_dimension_numbers<[1], [0], [0], [1], [0, 0, 1, 1], [], []>} : vector<26x26xf32>, vector<26x20xf32>, vector<26x20xf32> -> vector<26x20xf32>
    %215 = arith.addf %210, %214 : vector<26x20xf32>
    %c15 = arith.constant 15 : index
    %c0_61 = arith.constant 0 : index
    %c0_62 = arith.constant 0 : index
    %216 = vector.load %arg4[%c15, %c0_61, %c0_62] : memref<25x26x26xf32, #tpu.memory_space<vmem>>, vector<1x26x26xf32>
    %217 = vector.shape_cast %216 : vector<1x26x26xf32> to vector<26x26xf32>
    %218 = vector.extract_strided_slice %141 {offsets = [0, 300], sizes = [26, 20], strides = [1, 1]} : vector<26x500xf32> to vector<26x20xf32>
    %cst_63 = arith.constant dense<0.000000e+00> : vector<26x20xf32>
    %219 = tpu.matmul %217, %218, %cst_63 {dimension_numbers = #tpu.dot_dimension_numbers<[1], [0], [0], [1], [0, 0, 1, 1], [], []>} : vector<26x26xf32>, vector<26x20xf32>, vector<26x20xf32> -> vector<26x20xf32>
    %220 = arith.addf %215, %219 : vector<26x20xf32>
    %c16 = arith.constant 16 : index
    %c0_64 = arith.constant 0 : index
    %c0_65 = arith.constant 0 : index
    %221 = vector.load %arg4[%c16, %c0_64, %c0_65] : memref<25x26x26xf32, #tpu.memory_space<vmem>>, vector<1x26x26xf32>
    %222 = vector.shape_cast %221 : vector<1x26x26xf32> to vector<26x26xf32>
    %223 = vector.extract_strided_slice %141 {offsets = [0, 320], sizes = [26, 20], strides = [1, 1]} : vector<26x500xf32> to vector<26x20xf32>
    %cst_66 = arith.constant dense<0.000000e+00> : vector<26x20xf32>
    %224 = tpu.matmul %222, %223, %cst_66 {dimension_numbers = #tpu.dot_dimension_numbers<[1], [0], [0], [1], [0, 0, 1, 1], [], []>} : vector<26x26xf32>, vector<26x20xf32>, vector<26x20xf32> -> vector<26x20xf32>
    %225 = arith.addf %220, %224 : vector<26x20xf32>
    %c17 = arith.constant 17 : index
    %c0_67 = arith.constant 0 : index
    %c0_68 = arith.constant 0 : index
    %226 = vector.load %arg4[%c17, %c0_67, %c0_68] : memref<25x26x26xf32, #tpu.memory_space<vmem>>, vector<1x26x26xf32>
    %227 = vector.shape_cast %226 : vector<1x26x26xf32> to vector<26x26xf32>
    %228 = vector.extract_strided_slice %141 {offsets = [0, 340], sizes = [26, 20], strides = [1, 1]} : vector<26x500xf32> to vector<26x20xf32>
    %cst_69 = arith.constant dense<0.000000e+00> : vector<26x20xf32>
    %229 = tpu.matmul %227, %228, %cst_69 {dimension_numbers = #tpu.dot_dimension_numbers<[1], [0], [0], [1], [0, 0, 1, 1], [], []>} : vector<26x26xf32>, vector<26x20xf32>, vector<26x20xf32> -> vector<26x20xf32>
    %230 = arith.addf %225, %229 : vector<26x20xf32>
    %c18 = arith.constant 18 : index
    %c0_70 = arith.constant 0 : index
    %c0_71 = arith.constant 0 : index
    %231 = vector.load %arg4[%c18, %c0_70, %c0_71] : memref<25x26x26xf32, #tpu.memory_space<vmem>>, vector<1x26x26xf32>
    %232 = vector.shape_cast %231 : vector<1x26x26xf32> to vector<26x26xf32>
    %233 = vector.extract_strided_slice %141 {offsets = [0, 360], sizes = [26, 20], strides = [1, 1]} : vector<26x500xf32> to vector<26x20xf32>
    %cst_72 = arith.constant dense<0.000000e+00> : vector<26x20xf32>
    %234 = tpu.matmul %232, %233, %cst_72 {dimension_numbers = #tpu.dot_dimension_numbers<[1], [0], [0], [1], [0, 0, 1, 1], [], []>} : vector<26x26xf32>, vector<26x20xf32>, vector<26x20xf32> -> vector<26x20xf32>
    %235 = arith.addf %230, %234 : vector<26x20xf32>
    %c19 = arith.constant 19 : index
    %c0_73 = arith.constant 0 : index
    %c0_74 = arith.constant 0 : index
    %236 = vector.load %arg4[%c19, %c0_73, %c0_74] : memref<25x26x26xf32, #tpu.memory_space<vmem>>, vector<1x26x26xf32>
    %237 = vector.shape_cast %236 : vector<1x26x26xf32> to vector<26x26xf32>
    %238 = vector.extract_strided_slice %141 {offsets = [0, 380], sizes = [26, 20], strides = [1, 1]} : vector<26x500xf32> to vector<26x20xf32>
    %cst_75 = arith.constant dense<0.000000e+00> : vector<26x20xf32>
    %239 = tpu.matmul %237, %238, %cst_75 {dimension_numbers = #tpu.dot_dimension_numbers<[1], [0], [0], [1], [0, 0, 1, 1], [], []>} : vector<26x26xf32>, vector<26x20xf32>, vector<26x20xf32> -> vector<26x20xf32>
    %240 = arith.addf %235, %239 : vector<26x20xf32>
    %c20 = arith.constant 20 : index
    %c0_76 = arith.constant 0 : index
    %c0_77 = arith.constant 0 : index
    %241 = vector.load %arg4[%c20, %c0_76, %c0_77] : memref<25x26x26xf32, #tpu.memory_space<vmem>>, vector<1x26x26xf32>
    %242 = vector.shape_cast %241 : vector<1x26x26xf32> to vector<26x26xf32>
    %243 = vector.extract_strided_slice %141 {offsets = [0, 400], sizes = [26, 20], strides = [1, 1]} : vector<26x500xf32> to vector<26x20xf32>
    %cst_78 = arith.constant dense<0.000000e+00> : vector<26x20xf32>
    %244 = tpu.matmul %242, %243, %cst_78 {dimension_numbers = #tpu.dot_dimension_numbers<[1], [0], [0], [1], [0, 0, 1, 1], [], []>} : vector<26x26xf32>, vector<26x20xf32>, vector<26x20xf32> -> vector<26x20xf32>
    %245 = arith.addf %240, %244 : vector<26x20xf32>
    %c21 = arith.constant 21 : index
    %c0_79 = arith.constant 0 : index
    %c0_80 = arith.constant 0 : index
    %246 = vector.load %arg4[%c21, %c0_79, %c0_80] : memref<25x26x26xf32, #tpu.memory_space<vmem>>, vector<1x26x26xf32>
    %247 = vector.shape_cast %246 : vector<1x26x26xf32> to vector<26x26xf32>
    %248 = vector.extract_strided_slice %141 {offsets = [0, 420], sizes = [26, 20], strides = [1, 1]} : vector<26x500xf32> to vector<26x20xf32>
    %cst_81 = arith.constant dense<0.000000e+00> : vector<26x20xf32>
    %249 = tpu.matmul %247, %248, %cst_81 {dimension_numbers = #tpu.dot_dimension_numbers<[1], [0], [0], [1], [0, 0, 1, 1], [], []>} : vector<26x26xf32>, vector<26x20xf32>, vector<26x20xf32> -> vector<26x20xf32>
    %250 = arith.addf %245, %249 : vector<26x20xf32>
    %c22 = arith.constant 22 : index
    %c0_82 = arith.constant 0 : index
    %c0_83 = arith.constant 0 : index
    %251 = vector.load %arg4[%c22, %c0_82, %c0_83] : memref<25x26x26xf32, #tpu.memory_space<vmem>>, vector<1x26x26xf32>
    %252 = vector.shape_cast %251 : vector<1x26x26xf32> to vector<26x26xf32>
    %253 = vector.extract_strided_slice %141 {offsets = [0, 440], sizes = [26, 20], strides = [1, 1]} : vector<26x500xf32> to vector<26x20xf32>
    %cst_84 = arith.constant dense<0.000000e+00> : vector<26x20xf32>
    %254 = tpu.matmul %252, %253, %cst_84 {dimension_numbers = #tpu.dot_dimension_numbers<[1], [0], [0], [1], [0, 0, 1, 1], [], []>} : vector<26x26xf32>, vector<26x20xf32>, vector<26x20xf32> -> vector<26x20xf32>
    %255 = arith.addf %250, %254 : vector<26x20xf32>
    %c23 = arith.constant 23 : index
    %c0_85 = arith.constant 0 : index
    %c0_86 = arith.constant 0 : index
    %256 = vector.load %arg4[%c23, %c0_85, %c0_86] : memref<25x26x26xf32, #tpu.memory_space<vmem>>, vector<1x26x26xf32>
    %257 = vector.shape_cast %256 : vector<1x26x26xf32> to vector<26x26xf32>
    %258 = vector.extract_strided_slice %141 {offsets = [0, 460], sizes = [26, 20], strides = [1, 1]} : vector<26x500xf32> to vector<26x20xf32>
    %cst_87 = arith.constant dense<0.000000e+00> : vector<26x20xf32>
    %259 = tpu.matmul %257, %258, %cst_87 {dimension_numbers = #tpu.dot_dimension_numbers<[1], [0], [0], [1], [0, 0, 1, 1], [], []>} : vector<26x26xf32>, vector<26x20xf32>, vector<26x20xf32> -> vector<26x20xf32>
    %260 = arith.addf %255, %259 : vector<26x20xf32>
    %c24 = arith.constant 24 : index
    %c0_88 = arith.constant 0 : index
    %c0_89 = arith.constant 0 : index
    %261 = vector.load %arg4[%c24, %c0_88, %c0_89] : memref<25x26x26xf32, #tpu.memory_space<vmem>>, vector<1x26x26xf32>
    %262 = vector.shape_cast %261 : vector<1x26x26xf32> to vector<26x26xf32>
    %263 = vector.extract_strided_slice %141 {offsets = [0, 480], sizes = [26, 20], strides = [1, 1]} : vector<26x500xf32> to vector<26x20xf32>
    %cst_90 = arith.constant dense<0.000000e+00> : vector<26x20xf32>
    %264 = tpu.matmul %262, %263, %cst_90 {dimension_numbers = #tpu.dot_dimension_numbers<[1], [0], [0], [1], [0, 0, 1, 1], [], []>} : vector<26x26xf32>, vector<26x20xf32>, vector<26x20xf32> -> vector<26x20xf32>
    %265 = arith.addf %260, %264 : vector<26x20xf32>
    %cst_91 = arith.constant 1.000000e-16 : f32
    %266 = vector.broadcast %cst_91 : f32 to vector<26x20xf32>
    %267 = arith.addf %265, %266 : vector<26x20xf32>
    %268 = math.log %267 : vector<26x20xf32>
    %cst_92 = arith.constant dense<0.000000e+00> : vector<26xf32>
    %269 = vector.multi_reduction <add>, %268, %cst_92 [1] : vector<26x20xf32> to vector<26xf32>
    %270 = vector.shape_cast %269 : vector<26xf32> to vector<26x1xf32>
    %cst_93 = arith.constant 2.000000e+01 : f32
    %271 = vector.broadcast %cst_93 : f32 to vector<26x1xf32>
    %272 = arith.divf %270, %271 : vector<26x1xf32>
    %273 = vector.broadcast %272 : vector<26x1xf32> to vector<26x20xf32>
    %274 = arith.subf %268, %273 : vector<26x20xf32>
    %275 = arith.mulf %274, %274 : vector<26x20xf32>
    %cst_94 = arith.constant dense<0.000000e+00> : vector<26xf32>
    %276 = vector.multi_reduction <add>, %275, %cst_94 [1] : vector<26x20xf32> to vector<26xf32>
    %277 = vector.shape_cast %276 : vector<26xf32> to vector<26x1xf32>
    %cst_95 = arith.constant 2.000000e+01 : f32
    %278 = vector.broadcast %cst_95 : f32 to vector<26x1xf32>
    %279 = arith.divf %277, %278 : vector<26x1xf32>
    %cst_96 = arith.constant 9.99999974E-6 : f32
    %280 = vector.broadcast %cst_96 : f32 to vector<26x1xf32>
    %281 = arith.addf %279, %280 : vector<26x1xf32>
    %282 = math.rsqrt %281 : vector<26x1xf32>
    %283 = arith.mulf %6, %282 : vector<26x1xf32>
    %284 = vector.broadcast %283 : vector<26x1xf32> to vector<26x20xf32>
    %285 = arith.mulf %274, %284 : vector<26x20xf32>
    %286 = vector.broadcast %7 : vector<26x1xf32> to vector<26x20xf32>
    %287 = arith.addf %285, %286 : vector<26x20xf32>
    %c0_97 = arith.constant 0 : index
    %c0_98 = arith.constant 0 : index
    %288 = vector.load %arg6[%c0_97, %c0_98] : memref<26x20xf32, #tpu.memory_space<vmem>>, vector<26x20xf32>
    tpu.vector_store %arg6[%c0_97, %c0_98], %287 {strides = array<i32>} : memref<26x20xf32, #tpu.memory_space<vmem>>, vector<26x20xf32>,
    return
  }
  func.func @transform_0(%arg0: i32) -> (i32, i32) {
    %c0_i32 = arith.constant 0 : i32
    %c0_i32_0 = arith.constant 0 : i32
    %c0_i32_1 = arith.constant 0 : i32
    return %c0_i32, %c0_i32_0 : i32, i32
  }
  func.func @transform_1(%arg0: i32) -> (i32, i32) {
    %c0_i32 = arith.constant 0 : i32
    %c0_i32_0 = arith.constant 0 : i32
    %c0_i32_1 = arith.constant 0 : i32
    return %c0_i32, %c0_i32_0 : i32, i32
  }
  func.func @transform_2(%arg0: i32) -> (i32, i32) {
    %c0_i32 = arith.constant 0 : i32
    %c0_i32_0 = arith.constant 0 : i32
    %c0_i32_1 = arith.constant 0 : i32
    return %c0_i32, %c0_i32_0 : i32, i32
  }
  func.func @transform_3(%arg0: i32) -> (i32, i32, i32) {
    %c0_i32 = arith.constant 0 : i32
    %c0_i32_0 = arith.constant 0 : i32
    %c0_i32_1 = arith.constant 0 : i32
    %c0_i32_2 = arith.constant 0 : i32
    return %c0_i32, %c0_i32_0, %c0_i32_1 : i32, i32, i32
  }
  func.func @transform_4(%arg0: i32) -> (i32, i32) {
    %c0_i32 = arith.constant 0 : i32
    %c0_i32_0 = arith.constant 0 : i32
    %c0_i32_1 = arith.constant 0 : i32
    return %c0_i32, %c0_i32_0 : i32, i32
  }
  func.func @transform_5(%arg0: i32) -> (i32, i32) {
    %c0_i32 = arith.constant 0 : i32
    %c0_i32_0 = arith.constant 0 : i32
    %c0_i32_1 = arith.constant 0 : i32
    return %c0_i32, %c0_i32_0 : i32, i32
  }
}

</mosaic_0001>

<llo_original>
// kernel: tpu_custom_call.1
$region0: #{tpu_custom_call.1}
  #allocation0 [shape = 'u32[]', space=smem, size = 0x4, offset = 0x4, fixed_abs, tag = 'smem constant byte address 0x4 - core index']
  #allocation1 [shape = 'u32[144,128]{1,0:T(1,128)}', space=vmem, size = 0x12000, scoped, tag = 'internal scratch']
  %s0 = inlined_call_operand.vmem [shape: f32[1,480], index: 0, kind: input, shape index: {}]
  %s1 = inlined_call_operand.vmem [shape: f32[26,81], index: 1, kind: input, shape index: {}]
  %s2 = inlined_call_operand.vmem [shape: f32[26,5], index: 2, kind: input, shape index: {}]
  %s3 = inlined_call_operand.hbm [shape: f32[25,26,26], index: 3, kind: input, shape index: {}]
  %s4 = inlined_call_operand.hbm [shape: f32[400,500], index: 4, kind: input, shape index: {}]
  %s5 = inlined_call_operand.vmem [shape: f32[26,20], index: 5, kind: output, shape index: {}]
  %s6 = sld [smem:[#allocation0]]
  $region38: #{tpu_custom_call.1} parent=0
    _
  %s8 = ssub.s32 1, %s6
  %s9 = scalar_select 0, %s8, %s6
  $region1: #{tpu_custom_call.1} parent=0
    #allocation2 [shape = 'u8[409600]{0}', space=vmem, size = 0x64000, scoped, tag = 'input window, operand 3, single buffered']
    #allocation3 [shape = 's32[1]{0}', space=sflag, size = 0x4, scoped, tag = 'scoped memory for tpu_custom_call.1']
    #allocation4 [shape = 'u8[819200]{0}', space=vmem, size = 0xc8000, scoped, tag = 'input window, operand 4, single buffered']
    #allocation5 [shape = 's32[1]{0}', space=sflag, size = 0x4, scoped, tag = 'scoped memory for tpu_custom_call.1']
    %10 = vsyncpa [#allocation3], 0
    %11 = vsyncpa [#allocation5], 0
    // Predicated region
    $region2: #{tpu_custom_call.1} parent=1 // pred_check
      _
    $region3: #{tpu_custom_call.1} parent=1 // pred_check_branch
      %13 = sbr.rel (0) target = $region5
    $region4: #{tpu_custom_call.1} parent=1 // pred_region
      _
    $region5: #{tpu_custom_call.1} parent=1 // pred_fallthru
      _
    // Predicated region
    $region6: #{tpu_custom_call.1} parent=1 // pred_check
      _
    $region7: #{tpu_custom_call.1} parent=1 // pred_check_branch
      %15 = sbr.rel (0) target = $region9
    $region8: #{tpu_custom_call.1} parent=1 // pred_region
      _
    $region9: #{tpu_custom_call.1} parent=1 // pred_fallthru
      _
    // Predicated region
    $region10: #{tpu_custom_call.1} parent=1 // pred_check
      _
    $region11: #{tpu_custom_call.1} parent=1 // pred_check_branch
      %17 = sbr.rel (0) target = $region13
    $region12: #{tpu_custom_call.1} parent=1 // pred_region
      _
    $region13: #{tpu_custom_call.1} parent=1 // pred_fallthru
      _
    // Predicated region
    $region14: #{tpu_custom_call.1} parent=1 // pred_check
      _
    $region15: #{tpu_custom_call.1} parent=1 // pred_check_branch
      %19 = sbr.rel (0) target = $region17
    $region16: #{tpu_custom_call.1} parent=1 // pred_region
      %s21 = ssub.s32 12800, 12800
      %22 = vsyncadd [#allocation3], %s21
      %s23 = sshll.u32 [#allocation2], 4
      %s24 = int_to_ptr.vmem [resolvable:$true] %s23
      %29 = dma.hbm_to_vmem [thread:$0]  %s3, 12800, %s24, [#allocation3], 128, 128, 8
    $region17: #{tpu_custom_call.1} parent=1 // pred_fallthru
      _
    // Predicated region
    $region18: #{tpu_custom_call.1} parent=1 // pred_check
      _
    $region19: #{tpu_custom_call.1} parent=1 // pred_check_branch
      %31 = sbr.rel (0) target = $region21
    $region20: #{tpu_custom_call.1} parent=1 // pred_region
      %s33 = ssub.s32 25600, 25600
      %34 = vsyncadd [#allocation5], %s33
      %s35 = sshll.u32 [#allocation4], 4
      %s36 = int_to_ptr.vmem [resolvable:$true] %s35
      %41 = dma.hbm_to_vmem [thread:$0]  %s4, 25600, %s36, [#allocation5], 512, 512, 32
    $region21: #{tpu_custom_call.1} parent=1 // pred_fallthru
      _
    // Predicated region
    $region22: #{tpu_custom_call.1} parent=1 // pred_check
      _
    $region23: #{tpu_custom_call.1} parent=1 // pred_check_branch
      %43 = sbr.rel (0) target = $region25
    $region24: #{tpu_custom_call.1} parent=1 // pred_region
      %44 = dma.done [#allocation3], 12800
    $region25: #{tpu_custom_call.1} parent=1 // pred_fallthru
      _
    // Predicated region
    $region26: #{tpu_custom_call.1} parent=1 // pred_check
      _
    $region27: #{tpu_custom_call.1} parent=1 // pred_check_branch
      %46 = sbr.rel (0) target = $region29
    $region28: #{tpu_custom_call.1} parent=1 // pred_region
      %47 = dma.done [#allocation5], 25600
    $region29: #{tpu_custom_call.1} parent=1 // pred_fallthru
      _
    %v48 = vld [vmem:[%s0] sm:$0xf]
    %v49 = vld [vmem:[%s1] sm:$0xff]
    %v50 = vld [vmem:[%s1 + $0x8] sm:$0xff]
    %v51 = vld [vmem:[%s1 + $0x10] sm:$0xff]
    %v52 = vld [vmem:[%s1 + $0x18] sm:$0x3]
    %v53 = vld [vmem:[%s2] sm:$0xff]
    %v54 = vld [vmem:[%s2 + $0x8] sm:$0xff]
    %v55 = vld [vmem:[%s2 + $0x10] sm:$0xff]
    %v56 = vld [vmem:[%s2 + $0x18] sm:$0x3]
    %v58 = vlaneseq
    %v59 = vshrl.u32 %v58, 7
    %v60 = vsub.s32 0, %v59
    %v61 = vrot.slane %v48, %v60
    %v62 = vlaneseq
    %v63 = vshrl.u32 %v62, 7
    %v64 = vsub.s32 1, %v63
    %v65 = vrot.slane %v48, %v64
    %v66 = vlaneseq
    %v67 = vshrl.u32 %v66, 7
    %v68 = vsub.s32 2, %v67
    %v69 = vrot.slane %v48, %v68
    %v70 = vlaneseq
    %v71 = vshrl.u32 %v70, 7
    %v72 = vsub.s32 3, %v71
    %v73 = vrot.slane %v48, %v72
    %78 = vrot.lane.b32.xlu0 %v61, 127
    %v79 = vpop.permute.xlu0 %78
    %80 = vrot.lane.b32.xlu0 %v65, 127
    %v81 = vpop.permute.xlu0 %80
    %82 = vrot.lane.b32.xlu0 %v69, 127
    %v83 = vpop.permute.xlu0 %82
    %84 = vrot.lane.b32.xlu0 %v73, 127
    %v85 = vpop.permute.xlu0 %84
    %vm86 = vcmask 1039360
    %v87 = vsel %vm86, %v79, %v81
    %v88 = vsel %vm86, %v81, %v83
    %v89 = vsel %vm86, %v83, %v85
    %94 = vrot.lane.b32.xlu0 %v61, 126
    %v95 = vpop.permute.xlu0 %94
    %96 = vrot.lane.b32.xlu0 %v65, 126
    %v97 = vpop.permute.xlu0 %96
    %98 = vrot.lane.b32.xlu0 %v69, 126
    %v99 = vpop.permute.xlu0 %98
    %100 = vrot.lane.b32.xlu0 %v73, 126
    %v101 = vpop.permute.xlu0 %100
    %vm102 = vcmask 1031168
    %v103 = vsel %vm102, %v95, %v97
    %v104 = vsel %vm102, %v97, %v99
    %v105 = vsel %vm102, %v99, %v101
    %110 = vrot.lane.b32.xlu0 %v61, 125
    %v111 = vpop.permute.xlu0 %110
    %112 = vrot.lane.b32.xlu0 %v65, 125
    %v113 = vpop.permute.xlu0 %112
    %114 = vrot.lane.b32.xlu0 %v69, 125
    %v115 = vpop.permute.xlu0 %114
    %116 = vrot.lane.b32.xlu0 %v73, 125
    %v117 = vpop.permute.xlu0 %116
    %vm118 = vcmask 1022976
    %v119 = vsel %vm118, %v111, %v113
    %v120 = vsel %vm118, %v113, %v115
    %v121 = vsel %vm118, %v115, %v117
    %126 = vrot.lane.b32.xlu0 %v61, 124
    %v127 = vpop.permute.xlu0 %126
    %128 = vrot.lane.b32.xlu0 %v65, 124
    %v129 = vpop.permute.xlu0 %128
    %130 = vrot.lane.b32.xlu0 %v69, 124
    %v131 = vpop.permute.xlu0 %130
    %132 = vrot.lane.b32.xlu0 %v73, 124
    %v133 = vpop.permute.xlu0 %132
    %vm134 = vcmask 1014784
    %v135 = vsel %vm134, %v127, %v129
    %v136 = vsel %vm134, %v129, %v131
    %v137 = vsel %vm134, %v131, %v133
    %142 = vrot.lane.b32.xlu0 %v61, 123
    %v143 = vpop.permute.xlu0 %142
    %144 = vrot.lane.b32.xlu0 %v65, 123
    %v145 = vpop.permute.xlu0 %144
    %146 = vrot.lane.b32.xlu0 %v69, 123
    %v147 = vpop.permute.xlu0 %146
    %148 = vrot.lane.b32.xlu0 %v73, 123
    %v149 = vpop.permute.xlu0 %148
    %vm150 = vcmask 1006592
    %v151 = vsel %vm150, %v143, %v145
    %v152 = vsel %vm150, %v145, %v147
    %v153 = vsel %vm150, %v147, %v149
    %158 = vrot.lane.b32.xlu0 %v61, 122
    %v159 = vpop.permute.xlu0 %158
    %160 = vrot.lane.b32.xlu0 %v65, 122
    %v161 = vpop.permute.xlu0 %160
    %162 = vrot.lane.b32.xlu0 %v69, 122
    %v163 = vpop.permute.xlu0 %162
    %164 = vrot.lane.b32.xlu0 %v73, 122
    %v165 = vpop.permute.xlu0 %164
    %vm166 = vcmask 998400
    %v167 = vsel %vm166, %v159, %v161
    %v168 = vsel %vm166, %v161, %v163
    %v169 = vsel %vm166, %v163, %v165
    %174 = vrot.lane.b32.xlu0 %v61, 121
    %v175 = vpop.permute.xlu0 %174
    %176 = vrot.lane.b32.xlu0 %v65, 121
    %v177 = vpop.permute.xlu0 %176
    %178 = vrot.lane.b32.xlu0 %v69, 121
    %v179 = vpop.permute.xlu0 %178
    %180 = vrot.lane.b32.xlu0 %v73, 121
    %v181 = vpop.permute.xlu0 %180
    %vm182 = vcmask 990208
    %v183 = vsel %vm182, %v175, %v177
    %v184 = vsel %vm182, %v177, %v179
    %v185 = vsel %vm182, %v179, %v181
    %190 = vrot.lane.b32.xlu0 %v61, 120
    %v191 = vpop.permute.xlu0 %190
    %192 = vrot.lane.b32.xlu0 %v65, 120
    %v193 = vpop.permute.xlu0 %192
    %194 = vrot.lane.b32.xlu0 %v69, 120
    %v195 = vpop.permute.xlu0 %194
    %196 = vrot.lane.b32.xlu0 %v73, 120
    %v197 = vpop.permute.xlu0 %196
    %vm198 = vcmask 982016
    %v199 = vsel %vm198, %v191, %v193
    %v200 = vsel %vm198, %v193, %v195
    %v201 = vsel %vm198, %v195, %v197
    %206 = vrot.lane.b32.xlu0 %v61, 119
    %v207 = vpop.permute.xlu0 %206
    %208 = vrot.lane.b32.xlu0 %v65, 119
    %v209 = vpop.permute.xlu0 %208
    %210 = vrot.lane.b32.xlu0 %v69, 119
    %v211 = vpop.permute.xlu0 %210
    %212 = vrot.lane.b32.xlu0 %v73, 119
    %v213 = vpop.permute.xlu0 %212
    %vm214 = vcmask 973824
    %v215 = vsel %vm214, %v207, %v209
    %v216 = vsel %vm214, %v209, %v211
    %v217 = vsel %vm214, %v211, %v213
    %222 = vrot.lane.b32.xlu0 %v61, 118
    %v223 = vpop.permute.xlu0 %222
    %224 = vrot.lane.b32.xlu0 %v65, 118
    %v225 = vpop.permute.xlu0 %224
    %226 = vrot.lane.b32.xlu0 %v69, 118
    %v227 = vpop.permute.xlu0 %226
    %228 = vrot.lane.b32.xlu0 %v73, 118
    %v229 = vpop.permute.xlu0 %228
    %vm230 = vcmask 965632
    %v231 = vsel %vm230, %v223, %v225
    %v232 = vsel %vm230, %v225, %v227
    %v233 = vsel %vm230, %v227, %v229
    %238 = vrot.lane.b32.xlu0 %v61, 117
    %v239 = vpop.permute.xlu0 %238
    %240 = vrot.lane.b32.xlu0 %v65, 117
    %v241 = vpop.permute.xlu0 %240
    %242 = vrot.lane.b32.xlu0 %v69, 117
    %v243 = vpop.permute.xlu0 %242
    %244 = vrot.lane.b32.xlu0 %v73, 117
    %v245 = vpop.permute.xlu0 %244
    %vm246 = vcmask 957440
    %v247 = vsel %vm246, %v239, %v241
    %v248 = vsel %vm246, %v241, %v243
    %v249 = vsel %vm246, %v243, %v245
    %254 = vrot.lane.b32.xlu0 %v61, 116
    %v255 = vpop.permute.xlu0 %254
    %256 = vrot.lane.b32.xlu0 %v65, 116
    %v257 = vpop.permute.xlu0 %256
    %258 = vrot.lane.b32.xlu0 %v69, 116
    %v259 = vpop.permute.xlu0 %258
    %260 = vrot.lane.b32.xlu0 %v73, 116
    %v261 = vpop.permute.xlu0 %260
    %vm262 = vcmask 949248
    %v263 = vsel %vm262, %v255, %v257
    %v264 = vsel %vm262, %v257, %v259
    %v265 = vsel %vm262, %v259, %v261
    %270 = vrot.lane.b32.xlu0 %v61, 115
    %v271 = vpop.permute.xlu0 %270
    %272 = vrot.lane.b32.xlu0 %v65, 115
    %v273 = vpop.permute.xlu0 %272
    %274 = vrot.lane.b32.xlu0 %v69, 115
    %v275 = vpop.permute.xlu0 %274
    %276 = vrot.lane.b32.xlu0 %v73, 115
    %v277 = vpop.permute.xlu0 %276
    %vm278 = vcmask 941056
    %v279 = vsel %vm278, %v271, %v273
    %v280 = vsel %vm278, %v273, %v275
    %v281 = vsel %vm278, %v275, %v277
    %286 = vrot.lane.b32.xlu0 %v61, 114
    %v287 = vpop.permute.xlu0 %286
    %288 = vrot.lane.b32.xlu0 %v65, 114
    %v289 = vpop.permute.xlu0 %288
    %290 = vrot.lane.b32.xlu0 %v69, 114
    %v291 = vpop.permute.xlu0 %290
    %292 = vrot.lane.b32.xlu0 %v73, 114
    %v293 = vpop.permute.xlu0 %292
    %vm294 = vcmask 932864
    %v295 = vsel %vm294, %v287, %v289
    %v296 = vsel %vm294, %v289, %v291
    %v297 = vsel %vm294, %v291, %v293
    %302 = vrot.lane.b32.xlu0 %v61, 113
    %v303 = vpop.permute.xlu0 %302
    %304 = vrot.lane.b32.xlu0 %v65, 113
    %v305 = vpop.permute.xlu0 %304
    %306 = vrot.lane.b32.xlu0 %v69, 113
    %v307 = vpop.permute.xlu0 %306
    %308 = vrot.lane.b32.xlu0 %v73, 113
    %v309 = vpop.permute.xlu0 %308
    %vm310 = vcmask 924672
    %v311 = vsel %vm310, %v303, %v305
    %v312 = vsel %vm310, %v305, %v307
    %v313 = vsel %vm310, %v307, %v309
    %vm318 = vcmask 1040384
    %v319 = vsel %vm318, %v61, %v87
    %v320 = vsel %vm318, %v65, %v88
    %v321 = vsel %vm318, %v69, %v89
    %v322 = vsel %vm318, %v73, %v85
    %vm323 = vcmask 1041408
    %v324 = vsel %vm323, %v319, %v103
    %v325 = vsel %vm323, %v320, %v104
    %v326 = vsel %vm323, %v321, %v105
    %v327 = vsel %vm323, %v322, %v101
    %vm328 = vcmask 1042432
    %v329 = vsel %vm328, %v324, %v119
    %v330 = vsel %vm328, %v325, %v120
    %v331 = vsel %vm328, %v326, %v121
    %v332 = vsel %vm328, %v327, %v117
    %vm333 = vcmask 1043456
    %v334 = vsel %vm333, %v329, %v135
    %v335 = vsel %vm333, %v330, %v136
    %v336 = vsel %vm333, %v331, %v137
    %v337 = vsel %vm333, %v332, %v133
    %vm338 = vcmask 1044480
    %v339 = vsel %vm338, %v334, %v151
    %v340 = vsel %vm338, %v335, %v152
    %v341 = vsel %vm338, %v336, %v153
    %v342 = vsel %vm338, %v337, %v149
    %vm343 = vcmask 1045504
    %v344 = vsel %vm343, %v339, %v167
    %v345 = vsel %vm343, %v340, %v168
    %v346 = vsel %vm343, %v341, %v169
    %v347 = vsel %vm343, %v342, %v165
    %vm348 = vcmask 1046528
    %v349 = vsel %vm348, %v344, %v183
    %v350 = vsel %vm348, %v345, %v184
    %v351 = vsel %vm348, %v346, %v185
    %v352 = vsel %vm348, %v347, %v181
    %v353 = vsel %vm318, %v199, %v215
    %v354 = vsel %vm318, %v200, %v216
    %v355 = vsel %vm318, %v201, %v217
    %v356 = vsel %vm318, %v197, %v213
    %v357 = vsel %vm323, %v353, %v231
    %v358 = vsel %vm323, %v354, %v232
    %v359 = vsel %vm323, %v355, %v233
    %v360 = vsel %vm323, %v356, %v229
    %v361 = vsel %vm328, %v357, %v247
    %v362 = vsel %vm328, %v358, %v248
    %v363 = vsel %vm328, %v359, %v249
    %v364 = vsel %vm328, %v360, %v245
    %v365 = vsel %vm333, %v361, %v263
    %v366 = vsel %vm333, %v362, %v264
    %v367 = vsel %vm333, %v363, %v265
    %v368 = vsel %vm333, %v364, %v261
    %v369 = vsel %vm338, %v365, %v279
    %v370 = vsel %vm338, %v366, %v280
    %v371 = vsel %vm338, %v367, %v281
    %v372 = vsel %vm338, %v368, %v277
    %v373 = vsel %vm343, %v369, %v295
    %v374 = vsel %vm343, %v370, %v296
    %v375 = vsel %vm343, %v371, %v297
    %v376 = vsel %vm343, %v372, %v293
    %v377 = vsel %vm348, %v373, %v311
    %v378 = vsel %vm348, %v374, %v312
    %v379 = vsel %vm348, %v375, %v313
    %v380 = vsel %vm348, %v376, %v309
    %389 = vrot.lane.b32.xlu0 %v349, 112
    %v390 = vpop.permute.xlu0 %389
    %391 = vrot.lane.b32.xlu0 %v350, 112
    %v392 = vpop.permute.xlu0 %391
    %393 = vrot.lane.b32.xlu0 %v351, 112
    %v394 = vpop.permute.xlu0 %393
    %395 = vrot.lane.b32.xlu0 %v352, 112
    %v396 = vpop.permute.xlu0 %395
    %397 = vrot.lane.b32.xlu0 %v377, 112
    %v398 = vpop.permute.xlu0 %397
    %399 = vrot.lane.b32.xlu0 %v378, 112
    %v400 = vpop.permute.xlu0 %399
    %401 = vrot.lane.b32.xlu0 %v379, 112
    %v402 = vpop.permute.xlu0 %401
    %403 = vrot.lane.b32.xlu0 %v380, 112
    %v404 = vpop.permute.xlu0 %403
    %vm405 = vcmask 916480
    %v406 = vsel %vm405, %v390, %v392
    %v407 = vsel %vm405, %v392, %v394
    %v408 = vsel %vm405, %v394, %v396
    %v409 = vsel %vm405, %v398, %v400
    %v410 = vsel %vm405, %v400, %v402
    %v411 = vsel %vm405, %v402, %v404
    %420 = vrot.lane.b32.xlu0 %v349, 96
    %v421 = vpop.permute.xlu0 %420
    %422 = vrot.lane.b32.xlu0 %v350, 96
    %v423 = vpop.permute.xlu0 %422
    %424 = vrot.lane.b32.xlu0 %v351, 96
    %v425 = vpop.permute.xlu0 %424
    %426 = vrot.lane.b32.xlu0 %v352, 96
    %v427 = vpop.permute.xlu0 %426
    %428 = vrot.lane.b32.xlu0 %v377, 96
    %v429 = vpop.permute.xlu0 %428
    %430 = vrot.lane.b32.xlu0 %v378, 96
    %v431 = vpop.permute.xlu0 %430
    %432 = vrot.lane.b32.xlu0 %v379, 96
    %v433 = vpop.permute.xlu0 %432
    %434 = vrot.lane.b32.xlu0 %v380, 96
    %v435 = vpop.permute.xlu0 %434
    %vm436 = vcmask 785408
    %v437 = vsel %vm436, %v421, %v423
    %v438 = vsel %vm436, %v423, %v425
    %v439 = vsel %vm436, %v425, %v427
    %v440 = vsel %vm436, %v429, %v431
    %v441 = vsel %vm436, %v431, %v433
    %v442 = vsel %vm436, %v433, %v435
    %451 = vrot.lane.b32.xlu0 %v349, 80
    %v452 = vpop.permute.xlu0 %451
    %453 = vrot.lane.b32.xlu0 %v350, 80
    %v454 = vpop.permute.xlu0 %453
    %455 = vrot.lane.b32.xlu0 %v351, 80
    %v456 = vpop.permute.xlu0 %455
    %457 = vrot.lane.b32.xlu0 %v352, 80
    %v458 = vpop.permute.xlu0 %457
    %459 = vrot.lane.b32.xlu0 %v377, 80
    %v460 = vpop.permute.xlu0 %459
    %461 = vrot.lane.b32.xlu0 %v378, 80
    %v462 = vpop.permute.xlu0 %461
    %463 = vrot.lane.b32.xlu0 %v379, 80
    %v464 = vpop.permute.xlu0 %463
    %465 = vrot.lane.b32.xlu0 %v380, 80
    %v466 = vpop.permute.xlu0 %465
    %vm467 = vcmask 654336
    %v468 = vsel %vm467, %v452, %v454
    %v469 = vsel %vm467, %v454, %v456
    %v470 = vsel %vm467, %v456, %v458
    %v471 = vsel %vm467, %v460, %v462
    %v472 = vsel %vm467, %v462, %v464
    %v473 = vsel %vm467, %v464, %v466
    %482 = vrot.lane.b32.xlu0 %v349, 64
    %v483 = vpop.permute.xlu0 %482
    %484 = vrot.lane.b32.xlu0 %v350, 64
    %v485 = vpop.permute.xlu0 %484
    %486 = vrot.lane.b32.xlu0 %v351, 64
    %v487 = vpop.permute.xlu0 %486
    %488 = vrot.lane.b32.xlu0 %v352, 64
    %v489 = vpop.permute.xlu0 %488
    %490 = vrot.lane.b32.xlu0 %v377, 64
    %v491 = vpop.permute.xlu0 %490
    %492 = vrot.lane.b32.xlu0 %v378, 64
    %v493 = vpop.permute.xlu0 %492
    %494 = vrot.lane.b32.xlu0 %v379, 64
    %v495 = vpop.permute.xlu0 %494
    %496 = vrot.lane.b32.xlu0 %v380, 64
    %v497 = vpop.permute.xlu0 %496
    %vm498 = vcmask 523264
    %v499 = vsel %vm498, %v483, %v485
    %v500 = vsel %vm498, %v485, %v487
    %v501 = vsel %vm498, %v487, %v489
    %v502 = vsel %vm498, %v491, %v493
    %v503 = vsel %vm498, %v493, %v495
    %v504 = vsel %vm498, %v495, %v497
    %513 = vrot.lane.b32.xlu0 %v61, 48
    %v514 = vpop.permute.xlu0 %513
    %515 = vrot.lane.b32.xlu0 %v65, 48
    %v516 = vpop.permute.xlu0 %515
    %517 = vrot.lane.b32.xlu0 %v69, 48
    %v518 = vpop.permute.xlu0 %517
    %519 = vrot.lane.b32.xlu0 %v73, 48
    %v520 = vpop.permute.xlu0 %519
    %vm521 = vcmask 392192
    %v522 = vsel %vm521, %v514, %v516
    %v523 = vsel %vm521, %v516, %v518
    %v524 = vsel %vm521, %v518, %v520
    %526 = vset.pattern.permute.xlu0 0
    %527 = vperm.xlu0 %526, %v53
    %v528 = vpop.permute.xlu0 %527
    %531 = vset.pattern.permute.xlu0 0
    %532 = vperm.xlu0 %531, %v54
    %v533 = vpop.permute.xlu0 %532
    %536 = vset.pattern.permute.xlu0 0
    %537 = vperm.xlu0 %536, %v55
    %v538 = vpop.permute.xlu0 %537
    %541 = vset.pattern.permute.xlu0 0
    %542 = vperm.xlu0 %541, %v56
    %v543 = vpop.permute.xlu0 %542
    %vm545 = vcmask 662528
    %v547 = vsel %vm545, %v49, 0
    %v550 = vsel %vm545, %v50, 0
    %v553 = vsel %vm545, %v51, 0
    %v556 = vsel %vm545, %v52, 0
    %v558 = vsel %vm318, %v522, 0
    %v560 = vsel %vm318, %v523, 0
    %v562 = vsel %vm318, %v524, 0
    %v564 = vsel %vm318, %v520, 0
    %566 = vmatprep.subr.mxu0 %v350
    %567 = vmatpush1.msra.mxu0 %v349
    %568 = vmatprep.subr.mxu0 %v378
    %569 = vmatpush1.msra.mxu0 %v377
    %570 = vmatprep.subr.mxu0 %v407
    %571 = vmatpush1.msra.mxu0 %v406
    %572 = vmatprep.subr.mxu0 %v410
    %573 = vmatpush1.msra.mxu0 %v409
    %574 = vmatprep.subr.mxu0 %v438
    %575 = vmatpush1.msra.mxu0 %v437
    %576 = vmatprep.subr.mxu0 %v441
    %577 = vmatpush1.msra.mxu0 %v440
    %578 = vmatprep.subr.mxu0 %v469
    %579 = vmatpush1.msra.mxu0 %v468
    %580 = vmatprep.subr.mxu0 %v472
    %581 = vmatpush1.msra.mxu0 %v471
    %582 = vmatprep.subr.mxu0 %v500
    %583 = vmatpush1.msra.mxu0 %v499
    %584 = vmatprep.subr.mxu0 %v503
    %585 = vmatpush1.msra.mxu0 %v502
    %586 = vmatprep.subr.mxu0 %v560
    %587 = vmatpush1.msra.mxu0 %v558
    %588 = vmatprep.subr.mxu0 0.0
    %589 = vmatpush1.msra.mxu0 0.0
    %590 = vmatprep.subr.mxu0 0.0
    %591 = vmatpush1.msra.mxu0 0.0
    %592 = vmatprep.subr.mxu0 0.0
    %593 = vmatpush1.msra.mxu0 0.0
    %594 = vmatprep.subr.mxu0 0.0
    %595 = vmatpush1.msra.mxu0 0.0
    %596 = vmatprep.subr.mxu0 0.0
    %597 = vmatpush1.msra.mxu0 0.0
    %598 = vmatprep.subr.mxu0 0.0
    %599 = vmatpush1.msra.mxu0 0.0
    %600 = vmatprep.subr.mxu0 0.0
    %601 = vmatpush1.msra.mxu0 0.0
    %602 = vmatprep.subr.mxu0 0.0
    %603 = vmatpush1.msra.mxu0 0.0
    %604 = vmatprep.subr.mxu0 0.0
    %605 = vmatpush1.msra.mxu0 0.0
    %606 = vmatprep.subr.mxu0 0.0
    %607 = vmatpush1.msra.mxu0 0.0
    %608 = vmatprep.subr.mxu0 0.0
    %609 = vmatpush1.msra.mxu0 0.0
    %610 = vmatprep.subr.mxu0 0.0
    %611 = vmatpush1.msra.mxu0 0.0
    %612 = vmatprep.subr.mxu0 0.0
    %613 = vmatpush1.msra.mxu0 0.0
    %614 = vmatprep.subr.mxu0 0.0
    %615 = vmatpush1.msra.mxu0 0.0
    %616 = vmatprep.subr.mxu0 0.0
    %617 = vmatpush1.msra.mxu0 0.0
    %618 = vmatprep.subr.mxu0 0.0
    %619 = vmatpush1.msra.mxu0 0.0
    %620 = vmatprep.subr.mxu0 0.0
    %621 = vmatpush1.msra.mxu0 0.0
    %622 = vmatprep.subr.mxu0 0.0
    %623 = vmatpush1.msra.mxu0 0.0
    %624 = vmatprep.subr.mxu0 0.0
    %625 = vmatpush1.msra.mxu0 0.0
    %626 = vmatprep.subr.mxu0 0.0
    %627 = vmatpush1.msra.mxu0 0.0
    %628 = vmatprep.subr.mxu0 0.0
    %629 = vmatpush1.msra.mxu0 0.0
    %630 = vmatprep.mubr.f32.mxu0 0.0
    %631 = vmatmul.mubr.f32.gmra.mrb[0].mxu0 %v547
    %v632 = vpop.f32.mrb[0].mxu0
    %v633 = vadd.f32 %v528, %v632
    %v634 = vpop.f32.mrb[0].mxu0
    %v635 = vadd.f32 %v528, %v634
    %636 = vmatprep.mubr.f32.mxu0 0.0
    %637 = vmatmul.mubr.f32.gmra.mrb[0].mxu0 %v550
    %v638 = vpop.f32.mrb[0].mxu0
    %v639 = vadd.f32 %v533, %v638
    %v640 = vpop.f32.mrb[0].mxu0
    %v641 = vadd.f32 %v533, %v640
    %642 = vmatprep.mubr.f32.mxu0 0.0
    %643 = vmatmul.mubr.f32.gmra.mrb[0].mxu0 %v553
    %v644 = vpop.f32.mrb[0].mxu0
    %v645 = vadd.f32 %v538, %v644
    %v646 = vpop.f32.mrb[0].mxu0
    %v647 = vadd.f32 %v538, %v646
    %648 = vmatprep.mubr.f32.mxu0 0.0
    %649 = vmatmul.mubr.f32.gmra.mrb[0].mxu0 %v556
    %v650 = vpop.f32.mrb[0].mxu0
    %v651 = vadd.f32 %v543, %v650
    %v652 = vpop.f32.mrb[0].mxu0
    %v653 = vadd.f32 %v543, %v652
    %654 = vdwg.mxu0
    %655 = vmatprep.subr.mxu0 %v352
    %656 = vmatpush1.msra.mxu0 %v351
    %657 = vmatprep.subr.mxu0 %v380
    %658 = vmatpush1.msra.mxu0 %v379
    %659 = vmatprep.subr.mxu0 %v396
    %660 = vmatpush1.msra.mxu0 %v408
    %661 = vmatprep.subr.mxu0 %v404
    %662 = vmatpush1.msra.mxu0 %v411
    %663 = vmatprep.subr.mxu0 %v427
    %664 = vmatpush1.msra.mxu0 %v439
    %665 = vmatprep.subr.mxu0 %v435
    %666 = vmatpush1.msra.mxu0 %v442
    %667 = vmatprep.subr.mxu0 %v458
    %668 = vmatpush1.msra.mxu0 %v470
    %669 = vmatprep.subr.mxu0 %v466
    %670 = vmatpush1.msra.mxu0 %v473
    %671 = vmatprep.subr.mxu0 %v489
    %672 = vmatpush1.msra.mxu0 %v501
    %673 = vmatprep.subr.mxu0 %v497
    %674 = vmatpush1.msra.mxu0 %v504
    %675 = vmatprep.subr.mxu0 %v564
    %676 = vmatpush1.msra.mxu0 %v562
    %677 = vmatprep.subr.mxu0 0.0
    %678 = vmatpush1.msra.mxu0 0.0
    %679 = vmatprep.subr.mxu0 0.0
    %680 = vmatpush1.msra.mxu0 0.0
    %681 = vmatprep.subr.mxu0 0.0
    %682 = vmatpush1.msra.mxu0 0.0
    %683 = vmatprep.subr.mxu0 0.0
    %684 = vmatpush1.msra.mxu0 0.0
    %685 = vmatprep.subr.mxu0 0.0
    %686 = vmatpush1.msra.mxu0 0.0
    %687 = vmatprep.subr.mxu0 0.0
    %688 = vmatpush1.msra.mxu0 0.0
    %689 = vmatprep.subr.mxu0 0.0
    %690 = vmatpush1.msra.mxu0 0.0
    %691 = vmatprep.subr.mxu0 0.0
    %692 = vmatpush1.msra.mxu0 0.0
    %693 = vmatprep.subr.mxu0 0.0
    %694 = vmatpush1.msra.mxu0 0.0
    %695 = vmatprep.subr.mxu0 0.0
    %696 = vmatpush1.msra.mxu0 0.0
    %697 = vmatprep.subr.mxu0 0.0
    %698 = vmatpush1.msra.mxu0 0.0
    %699 = vmatprep.subr.mxu0 0.0
    %700 = vmatpush1.msra.mxu0 0.0
    %701 = vmatprep.subr.mxu0 0.0
    %702 = vmatpush1.msra.mxu0 0.0
    %703 = vmatprep.subr.mxu0 0.0
    %704 = vmatpush1.msra.mxu0 0.0
    %705 = vmatprep.subr.mxu0 0.0
    %706 = vmatpush1.msra.mxu0 0.0
    %707 = vmatprep.subr.mxu0 0.0
    %708 = vmatpush1.msra.mxu0 0.0
    %709 = vmatprep.subr.mxu0 0.0
    %710 = vmatpush1.msra.mxu0 0.0
    %711 = vmatprep.subr.mxu0 0.0
    %712 = vmatpush1.msra.mxu0 0.0
    %713 = vmatprep.subr.mxu0 0.0
    %714 = vmatpush1.msra.mxu0 0.0
    %715 = vmatprep.subr.mxu0 0.0
    %716 = vmatpush1.msra.mxu0 0.0
    %717 = vmatprep.subr.mxu0 0.0
    %718 = vmatpush1.msra.mxu0 0.0
    %719 = vmatprep.mubr.f32.mxu0 0.0
    %720 = vmatmul.mubr.f32.gmra.mrb[0].mxu0 %v547
    %v721 = vpop.f32.mrb[0].mxu0
    %v722 = vadd.f32 %v528, %v721
    %v723 = vpop.f32.mrb[0].mxu0
    %v724 = vadd.f32 %v528, %v723
    %725 = vmatprep.mubr.f32.mxu0 0.0
    %726 = vmatmul.mubr.f32.gmra.mrb[0].mxu0 %v550
    %v727 = vpop.f32.mrb[0].mxu0
    %v728 = vadd.f32 %v533, %v727
    %v729 = vpop.f32.mrb[0].mxu0
    %v730 = vadd.f32 %v533, %v729
    %731 = vmatprep.mubr.f32.mxu0 0.0
    %732 = vmatmul.mubr.f32.gmra.mrb[0].mxu0 %v553
    %v733 = vpop.f32.mrb[0].mxu0
    %v734 = vadd.f32 %v538, %v733
    %v735 = vpop.f32.mrb[0].mxu0
    %v736 = vadd.f32 %v538, %v735
    %737 = vmatprep.mubr.f32.mxu0 0.0
    %738 = vmatmul.mubr.f32.gmra.mrb[0].mxu0 %v556
    %v739 = vpop.f32.mrb[0].mxu0
    %v740 = vadd.f32 %v543, %v739
    %v741 = vpop.f32.mrb[0].mxu0
    %v742 = vadd.f32 %v543, %v741
    %743 = vdwg.mxu0
    %v744 = vlaneseq
    %v745 = vand.u32 %v744, 127
    %v746 = vadd.s32 %v745, 128
    %v747 = vadd.s32 %v745, 256
    %v748 = vadd.s32 %v745, 384
    %vm749 = vcmp.ge.s32.totalorder %v745, 0
    %vm750 = vcmp.ge.s32.totalorder %v746, 0
    %vm751 = vcmp.ge.s32.totalorder %v747, 0
    %vm752 = vcmp.ge.s32.totalorder %v748, 0
    %vm753 = vcmp.lt.s32.totalorder %v745, 120
    %vm754 = vcmp.lt.s32.totalorder %v746, 120
    %vm755 = vcmp.lt.s32.totalorder %v747, 120
    %vm756 = vcmp.lt.s32.totalorder %v748, 120
    %vm757 = vmand %vm749, %vm753
    %vm758 = vmand %vm750, %vm754
    %vm759 = vmand %vm751, %vm755
    %vm760 = vmand %vm752, %vm756
    %vm761 = vcmp.ge.s32.totalorder %v745, 200
    %vm762 = vcmp.ge.s32.totalorder %v746, 200
    %vm763 = vcmp.ge.s32.totalorder %v747, 200
    %vm764 = vcmp.ge.s32.totalorder %v748, 200
    %vm765 = vcmp.lt.s32.totalorder %v745, 320
    %vm766 = vcmp.lt.s32.totalorder %v746, 320
    %vm767 = vcmp.lt.s32.totalorder %v747, 320
    %vm768 = vcmp.lt.s32.totalorder %v748, 320
    %vm769 = vmand %vm761, %vm765
    %vm770 = vmand %vm762, %vm766
    %vm771 = vmand %vm763, %vm767
    %vm772 = vmand %vm764, %vm768
    %vm773 = vmor %vm757, %vm769
    %vm774 = vmor %vm758, %vm770
    %vm775 = vmor %vm759, %vm771
    %vm776 = vmor %vm760, %vm772
    %v777 = vsel %vm773, 1, 0
    %v778 = vsel %vm774, 1, 0
    %v779 = vsel %vm775, 1, 0
    %v780 = vsel %vm776, 1, 0
    %vm781 = vcmp.eq.s32.totalorder %v777, 1
    %vm782 = vcmp.eq.s32.totalorder %v778, 1
    %vm783 = vcmp.eq.s32.totalorder %v779, 1
    %vm784 = vcmp.eq.s32.totalorder %v780, 1
    %v785 = vsel %vm781, %v633, 0.0
    %v786 = vsel %vm782, %v635, 0.0
    %v787 = vsel %vm783, %v722, 0.0
    %v788 = vsel %vm784, %v724, 0.0
    %v789 = vsel %vm781, %v639, 0.0
    %v790 = vsel %vm782, %v641, 0.0
    %v791 = vsel %vm783, %v728, 0.0
    %v792 = vsel %vm784, %v730, 0.0
    %v793 = vsel %vm781, %v645, 0.0
    %v794 = vsel %vm782, %v647, 0.0
    %v795 = vsel %vm783, %v734, 0.0
    %v796 = vsel %vm784, %v736, 0.0
    %v797 = vsel %vm781, %v651, 0.0
    %v798 = vsel %vm782, %v653, 0.0
    %v799 = vsel %vm783, %v740, 0.0
    %v800 = vsel %vm784, %v742, 0.0
    %v801 = vadd.f32 %v785, %v786
    %v802 = vadd.f32 %v801, %v787
    %vm803 = vcmask 130048
    %v804 = vsel %vm803, %v788, 0.0
    %v805 = vadd.f32 %v802, %v804
    %806 = vadd.xlane.f32.xlu0 %v805
    %v807 = vpop.xlane.xlu0 %806
    %v808 = vadd.f32 %v789, %v790
    %v809 = vadd.f32 %v808, %v791
    %v810 = vsel %vm803, %v792, 0.0
    %v811 = vadd.f32 %v809, %v810
    %812 = vadd.xlane.f32.xlu0 %v811
    %v813 = vpop.xlane.xlu0 %812
    %v814 = vadd.f32 %v793, %v794
    %v815 = vadd.f32 %v814, %v795
    %v816 = vsel %vm803, %v796, 0.0
    %v817 = vadd.f32 %v815, %v816
    %818 = vadd.xlane.f32.xlu0 %v817
    %v819 = vpop.xlane.xlu0 %818
    %v820 = vsel %vm323, %v797, 0.0
    %v821 = vsel %vm323, %v798, 0.0
    %v822 = vadd.f32 %v820, %v821
    %v823 = vsel %vm323, %v799, 0.0
    %v824 = vadd.f32 %v822, %v823
    %vm825 = vcmask 123904
    %v826 = vsel %vm825, %v800, 0.0
    %v827 = vadd.f32 %v824, %v826
    %828 = vadd.xlane.f32.xlu0 %v827
    %v829 = vpop.xlane.xlu0 %828
    %v830 = vrcp.pop 240.0
    %v831 = vmul.f32 %v807, %v830
    %v832 = vmul.f32 %v813, %v830
    %v833 = vmul.f32 %v819, %v830
    %v834 = vmul.f32 %v829, %v830
    %v835 = vsub.f32 %v633, %v831
    %v836 = vsub.f32 %v635, %v831
    %v837 = vsub.f32 %v722, %v831
    %v838 = vsub.f32 %v724, %v831
    %v839 = vsub.f32 %v639, %v832
    %v840 = vsub.f32 %v641, %v832
    %v841 = vsub.f32 %v728, %v832
    %v842 = vsub.f32 %v730, %v832
    %v843 = vsub.f32 %v645, %v833
    %v844 = vsub.f32 %v647, %v833
    %v845 = vsub.f32 %v734, %v833
    %v846 = vsub.f32 %v736, %v833
    %v847 = vsub.f32 %v651, %v834
    %v848 = vsub.f32 %v653, %v834
    %v849 = vsub.f32 %v740, %v834
    %v850 = vsub.f32 %v742, %v834
    %v851 = vsel %vm781, %v835, 0.0
    %v852 = vsel %vm782, %v836, 0.0
    %v853 = vsel %vm783, %v837, 0.0
    %v854 = vsel %vm784, %v838, 0.0
    %v855 = vsel %vm781, %v839, 0.0
    %v856 = vsel %vm782, %v840, 0.0
    %v857 = vsel %vm783, %v841, 0.0
    %v858 = vsel %vm784, %v842, 0.0
    %v859 = vsel %vm781, %v843, 0.0
    %v860 = vsel %vm782, %v844, 0.0
    %v861 = vsel %vm783, %v845, 0.0
    %v862 = vsel %vm784, %v846, 0.0
    %v863 = vsel %vm781, %v847, 0.0
    %v864 = vsel %vm782, %v848, 0.0
    %v865 = vsel %vm783, %v849, 0.0
    %v866 = vsel %vm784, %v850, 0.0
    %v867 = vmul.f32 %v851, %v851
    %v868 = vmul.f32 %v852, %v852
    %v869 = vmul.f32 %v853, %v853
    %v870 = vmul.f32 %v854, %v854
    %v871 = vmul.f32 %v855, %v855
    %v872 = vmul.f32 %v856, %v856
    %v873 = vmul.f32 %v857, %v857
    %v874 = vmul.f32 %v858, %v858
    %v875 = vmul.f32 %v859, %v859
    %v876 = vmul.f32 %v860, %v860
    %v877 = vmul.f32 %v861, %v861
    %v878 = vmul.f32 %v862, %v862
    %v879 = vmul.f32 %v863, %v863
    %v880 = vmul.f32 %v864, %v864
    %v881 = vmul.f32 %v865, %v865
    %v882 = vmul.f32 %v866, %v866
    %v883 = vadd.f32 %v867, %v868
    %v884 = vadd.f32 %v883, %v869
    %v885 = vsel %vm803, %v870, 0.0
    %v886 = vadd.f32 %v884, %v885
    %887 = vadd.xlane.f32.xlu0 %v886
    %v888 = vpop.xlane.xlu0 %887
    %v889 = vadd.f32 %v871, %v872
    %v890 = vadd.f32 %v889, %v873
    %v891 = vsel %vm803, %v874, 0.0
    %v892 = vadd.f32 %v890, %v891
    %893 = vadd.xlane.f32.xlu0 %v892
    %v894 = vpop.xlane.xlu0 %893
    %v895 = vadd.f32 %v875, %v876
    %v896 = vadd.f32 %v895, %v877
    %v897 = vsel %vm803, %v878, 0.0
    %v898 = vadd.f32 %v896, %v897
    %899 = vadd.xlane.f32.xlu0 %v898
    %v900 = vpop.xlane.xlu0 %899
    %v901 = vsel %vm323, %v879, 0.0
    %v902 = vsel %vm323, %v880, 0.0
    %v903 = vadd.f32 %v901, %v902
    %v904 = vsel %vm323, %v881, 0.0
    %v905 = vadd.f32 %v903, %v904
    %v906 = vsel %vm825, %v882, 0.0
    %v907 = vadd.f32 %v905, %v906
    %908 = vadd.xlane.f32.xlu0 %v907
    %v909 = vpop.xlane.xlu0 %908
    %v910 = vmul.f32 %v888, %v830
    %v911 = vmul.f32 %v894, %v830
    %v912 = vmul.f32 %v900, %v830
    %v913 = vmul.f32 %v909, %v830
    %v914 = vadd.f32 %v910, 1e-05
    %v915 = vadd.f32 %v911, 1e-05
    %v916 = vadd.f32 %v912, 1e-05
    %v917 = vadd.f32 %v913, 1e-05
    %v918 = vrsqrt.pop %v914
    %v919 = vrsqrt.pop %v915
    %v920 = vrsqrt.pop %v916
    %v921 = vrsqrt.pop %v917
    %v922 = vmul.f32 %v53, %v918
    %v923 = vmul.f32 %v54, %v919
    %v924 = vmul.f32 %v55, %v920
    %v925 = vmul.f32 %v56, %v921
    %927 = vset.pattern.permute.xlu0 1
    %928 = vperm.xlu0 %927, %v922
    %v929 = vpop.permute.xlu0 %928
    %932 = vset.pattern.permute.xlu0 1
    %933 = vperm.xlu0 %932, %v923
    %v934 = vpop.permute.xlu0 %933
    %937 = vset.pattern.permute.xlu0 1
    %938 = vperm.xlu0 %937, %v924
    %v939 = vpop.permute.xlu0 %938
    %942 = vset.pattern.permute.xlu0 1
    %943 = vperm.xlu0 %942, %v925
    %v944 = vpop.permute.xlu0 %943
    %v946 = vmul.f32 %v835, %v929
    %v947 = vmul.f32 %v836, %v929
    %v948 = vmul.f32 %v837, %v929
    %v949 = vmul.f32 %v838, %v929
    %v950 = vmul.f32 %v839, %v934
    %v951 = vmul.f32 %v840, %v934
    %v952 = vmul.f32 %v841, %v934
    %v953 = vmul.f32 %v842, %v934
    %v954 = vmul.f32 %v843, %v939
    %v955 = vmul.f32 %v844, %v939
    %v956 = vmul.f32 %v845, %v939
    %v957 = vmul.f32 %v846, %v939
    %v958 = vmul.f32 %v847, %v944
    %v959 = vmul.f32 %v848, %v944
    %v960 = vmul.f32 %v849, %v944
    %v961 = vmul.f32 %v850, %v944
    %962 = vset.pattern.permute.xlu0 2
    %963 = vperm.xlu0 %962, %v53
    %v964 = vpop.permute.xlu0 %963
    %966 = vset.pattern.permute.xlu0 2
    %967 = vperm.xlu0 %966, %v54
    %v968 = vpop.permute.xlu0 %967
    %970 = vset.pattern.permute.xlu0 2
    %971 = vperm.xlu0 %970, %v55
    %v972 = vpop.permute.xlu0 %971
    %974 = vset.pattern.permute.xlu0 2
    %975 = vperm.xlu0 %974, %v56
    %v976 = vpop.permute.xlu0 %975
    %v978 = vadd.f32 %v946, %v964
    %v979 = vadd.f32 %v947, %v964
    %v980 = vadd.f32 %v948, %v964
    %v981 = vadd.f32 %v949, %v964
    %v982 = vadd.f32 %v950, %v968
    %v983 = vadd.f32 %v951, %v968
    %v984 = vadd.f32 %v952, %v968
    %v985 = vadd.f32 %v953, %v968
    %v986 = vadd.f32 %v954, %v972
    %v987 = vadd.f32 %v955, %v972
    %v988 = vadd.f32 %v956, %v972
    %v989 = vadd.f32 %v957, %v972
    %v990 = vadd.f32 %v958, %v976
    %v991 = vadd.f32 %v959, %v976
    %v992 = vadd.f32 %v960, %v976
    %v993 = vadd.f32 %v961, %v976
    %v994 = vmul.f32 %v978, %v978
    %v995 = vmul.f32 %v979, %v979
    %v996 = vmul.f32 %v980, %v980
    %v997 = vmul.f32 %v981, %v981
    %v998 = vmul.f32 %v982, %v982
    %v999 = vmul.f32 %v983, %v983
    %v1000 = vmul.f32 %v984, %v984
    %v1001 = vmul.f32 %v985, %v985
    %v1002 = vmul.f32 %v986, %v986
    %v1003 = vmul.f32 %v987, %v987
    %v1004 = vmul.f32 %v988, %v988
    %v1005 = vmul.f32 %v989, %v989
    %v1006 = vmul.f32 %v990, %v990
    %v1007 = vmul.f32 %v991, %v991
    %v1008 = vmul.f32 %v992, %v992
    %v1009 = vmul.f32 %v993, %v993
    %v1010 = vld [vmem:[#allocation4] sm:$0xff]
    %v1011 = vld [vmem:[#allocation4 + $0x8] sm:$0xff]
    %v1012 = vld [vmem:[#allocation4 + $0x10] sm:$0xff]
    %v1013 = vld [vmem:[#allocation4 + $0x18] sm:$0xff]
    %v1014 = vld [vmem:[#allocation4 + $0x20] sm:$0xff]
    %v1015 = vld [vmem:[#allocation4 + $0x28] sm:$0xff]
    %v1016 = vld [vmem:[#allocation4 + $0x30] sm:$0xff]
    %v1017 = vld [vmem:[#allocation4 + $0x38] sm:$0xff]
    %v1018 = vld [vmem:[#allocation4 + $0x40] sm:$0xff]
    %v1019 = vld [vmem:[#allocation4 + $0x48] sm:$0xff]
    %v1020 = vld [vmem:[#allocation4 + $0x50] sm:$0xff]
    %v1021 = vld [vmem:[#allocation4 + $0x58] sm:$0xff]
    %v1022 = vld [vmem:[#allocation4 + $0x60] sm:$0xff]
    %v1023 = vld [vmem:[#allocation4 + $0x68] sm:$0xff]
    %v1024 = vld [vmem:[#allocation4 + $0x70] sm:$0xff]
    %v1025 = vld [vmem:[#allocation4 + $0x78] sm:$0xff]
    %v1026 = vld [vmem:[#allocation4 + $0x80] sm:$0xff]
    %v1027 = vld [vmem:[#allocation4 + $0x88] sm:$0xff]
    %v1028 = vld [vmem:[#allocation4 + $0x90] sm:$0xff]
    %v1029 = vld [vmem:[#allocation4 + $0x98] sm:$0xff]
    %v1030 = vld [vmem:[#allocation4 + $0xa0] sm:$0xff]
    %v1031 = vld [vmem:[#allocation4 + $0xa8] sm:$0xff]
    %v1032 = vld [vmem:[#allocation4 + $0xb0] sm:$0xff]
    %v1033 = vld [vmem:[#allocation4 + $0xb8] sm:$0xff]
    %v1034 = vld [vmem:[#allocation4 + $0xc0] sm:$0xff]
    %v1035 = vld [vmem:[#allocation4 + $0xc8] sm:$0xff]
    %v1036 = vld [vmem:[#allocation4 + $0xd0] sm:$0xff]
    %v1037 = vld [vmem:[#allocation4 + $0xd8] sm:$0xff]
    %v1038 = vld [vmem:[#allocation4 + $0xe0] sm:$0xff]
    %v1039 = vld [vmem:[#allocation4 + $0xe8] sm:$0xff]
    %v1040 = vld [vmem:[#allocation4 + $0xf0] sm:$0xff]
    %v1041 = vld [vmem:[#allocation4 + $0xf8] sm:$0xff]
    %v1042 = vld [vmem:[#allocation4 + $0x100] sm:$0xff]
    %v1043 = vld [vmem:[#allocation4 + $0x108] sm:$0xff]
    %v1044 = vld [vmem:[#allocation4 + $0x110] sm:$0xff]
    %v1045 = vld [vmem:[#allocation4 + $0x118] sm:$0xff]
    %v1046 = vld [vmem:[#allocation4 + $0x120] sm:$0xff]
    %v1047 = vld [vmem:[#allocation4 + $0x128] sm:$0xff]
    %v1048 = vld [vmem:[#allocation4 + $0x130] sm:$0xff]
    %v1049 = vld [vmem:[#allocation4 + $0x138] sm:$0xff]
    %v1050 = vld [vmem:[#allocation4 + $0x140] sm:$0xff]
    %v1051 = vld [vmem:[#allocation4 + $0x148] sm:$0xff]
    %v1052 = vld [vmem:[#allocation4 + $0x150] sm:$0xff]
    %v1053 = vld [vmem:[#allocation4 + $0x158] sm:$0xff]
    %v1054 = vld [vmem:[#allocation4 + $0x160] sm:$0xff]
    %v1055 = vld [vmem:[#allocation4 + $0x168] sm:$0xff]
    %v1056 = vld [vmem:[#allocation4 + $0x170] sm:$0xff]
    %v1057 = vld [vmem:[#allocation4 + $0x178] sm:$0xff]
    %v1058 = vld [vmem:[#allocation4 + $0x180] sm:$0xff]
    %v1059 = vld [vmem:[#allocation4 + $0x188] sm:$0xff]
    %v1060 = vld [vmem:[#allocation4 + $0x190] sm:$0xff]
    %v1061 = vld [vmem:[#allocation4 + $0x198] sm:$0xff]
    %v1062 = vld [vmem:[#allocation4 + $0x1a0] sm:$0xff]
    %v1063 = vld [vmem:[#allocation4 + $0x1a8] sm:$0xff]
    %v1064 = vld [vmem:[#allocation4 + $0x1b0] sm:$0xff]
    %v1065 = vld [vmem:[#allocation4 + $0x1b8] sm:$0xff]
    %v1066 = vld [vmem:[#allocation4 + $0x1c0] sm:$0xff]
    %v1067 = vld [vmem:[#allocation4 + $0x1c8] sm:$0xff]
    %v1068 = vld [vmem:[#allocation4 + $0x1d0] sm:$0xff]
    %v1069 = vld [vmem:[#allocation4 + $0x1d8] sm:$0xff]
    %v1070 = vld [vmem:[#allocation4 + $0x1e0] sm:$0xff]
    %v1071 = vld [vmem:[#allocation4 + $0x1e8] sm:$0xff]
    %v1072 = vld [vmem:[#allocation4 + $0x1f0] sm:$0xff]
    %v1073 = vld [vmem:[#allocation4 + $0x1f8] sm:$0xff]
    %v1074 = vld [vmem:[#allocation4 + $0x200] sm:$0xff]
    %v1075 = vld [vmem:[#allocation4 + $0x208] sm:$0xff]
    %v1076 = vld [vmem:[#allocation4 + $0x210] sm:$0xff]
    %v1077 = vld [vmem:[#allocation4 + $0x218] sm:$0xff]
    %v1078 = vld [vmem:[#allocation4 + $0x220] sm:$0xff]
    %v1079 = vld [vmem:[#allocation4 + $0x228] sm:$0xff]
    %v1080 = vld [vmem:[#allocation4 + $0x230] sm:$0xff]
    %v1081 = vld [vmem:[#allocation4 + $0x238] sm:$0xff]
    %v1082 = vld [vmem:[#allocation4 + $0x240] sm:$0xff]
    %v1083 = vld [vmem:[#allocation4 + $0x248] sm:$0xff]
    %v1084 = vld [vmem:[#allocation4 + $0x250] sm:$0xff]
    %v1085 = vld [vmem:[#allocation4 + $0x258] sm:$0xff]
    %v1086 = vld [vmem:[#allocation4 + $0x260] sm:$0xff]
    %v1087 = vld [vmem:[#allocation4 + $0x268] sm:$0xff]
    %v1088 = vld [vmem:[#allocation4 + $0x270] sm:$0xff]
    %v1089 = vld [vmem:[#allocation4 + $0x278] sm:$0xff]
    %v1090 = vld [vmem:[#allocation4 + $0x280] sm:$0xff]
    %v1091 = vld [vmem:[#allocation4 + $0x288] sm:$0xff]
    %v1092 = vld [vmem:[#allocation4 + $0x290] sm:$0xff]
    %v1093 = vld [vmem:[#allocation4 + $0x298] sm:$0xff]
    %v1094 = vld [vmem:[#allocation4 + $0x2a0] sm:$0xff]
    %v1095 = vld [vmem:[#allocation4 + $0x2a8] sm:$0xff]
    %v1096 = vld [vmem:[#allocation4 + $0x2b0] sm:$0xff]
    %v1097 = vld [vmem:[#allocation4 + $0x2b8] sm:$0xff]
    %v1098 = vld [vmem:[#allocation4 + $0x2c0] sm:$0xff]
    %v1099 = vld [vmem:[#allocation4 + $0x2c8] sm:$0xff]
    %v1100 = vld [vmem:[#allocation4 + $0x2d0] sm:$0xff]
    %v1101 = vld [vmem:[#allocation4 + $0x2d8] sm:$0xff]
    %v1102 = vld [vmem:[#allocation4 + $0x2e0] sm:$0xff]
    %v1103 = vld [vmem:[#allocation4 + $0x2e8] sm:$0xff]
    %v1104 = vld [vmem:[#allocation4 + $0x2f0] sm:$0xff]
    %v1105 = vld [vmem:[#allocation4 + $0x2f8] sm:$0xff]
    %v1106 = vld [vmem:[#allocation4 + $0x300] sm:$0xff]
    %v1107 = vld [vmem:[#allocation4 + $0x308] sm:$0xff]
    %v1108 = vld [vmem:[#allocation4 + $0x310] sm:$0xff]
    %v1109 = vld [vmem:[#allocation4 + $0x318] sm:$0xff]
    %v1110 = vld [vmem:[#allocation4 + $0x320] sm:$0xff]
    %v1111 = vld [vmem:[#allocation4 + $0x328] sm:$0xff]
    %v1112 = vld [vmem:[#allocation4 + $0x330] sm:$0xff]
    %v1113 = vld [vmem:[#allocation4 + $0x338] sm:$0xff]
    %v1114 = vld [vmem:[#allocation4 + $0x340] sm:$0xff]
    %v1115 = vld [vmem:[#allocation4 + $0x348] sm:$0xff]
    %v1116 = vld [vmem:[#allocation4 + $0x350] sm:$0xff]
    %v1117 = vld [vmem:[#allocation4 + $0x358] sm:$0xff]
    %v1118 = vld [vmem:[#allocation4 + $0x360] sm:$0xff]
    %v1119 = vld [vmem:[#allocation4 + $0x368] sm:$0xff]
    %v1120 = vld [vmem:[#allocation4 + $0x370] sm:$0xff]
    %v1121 = vld [vmem:[#allocation4 + $0x378] sm:$0xff]
    %v1122 = vld [vmem:[#allocation4 + $0x380] sm:$0xff]
    %v1123 = vld [vmem:[#allocation4 + $0x388] sm:$0xff]
    %v1124 = vld [vmem:[#allocation4 + $0x390] sm:$0xff]
    %v1125 = vld [vmem:[#allocation4 + $0x398] sm:$0xff]
    %v1126 = vld [vmem:[#allocation4 + $0x3a0] sm:$0xff]
    %v1127 = vld [vmem:[#allocation4 + $0x3a8] sm:$0xff]
    %v1128 = vld [vmem:[#allocation4 + $0x3b0] sm:$0xff]
    %v1129 = vld [vmem:[#allocation4 + $0x3b8] sm:$0xff]
    %v1130 = vld [vmem:[#allocation4 + $0x3c0] sm:$0xff]
    %v1131 = vld [vmem:[#allocation4 + $0x3c8] sm:$0xff]
    %v1132 = vld [vmem:[#allocation4 + $0x3d0] sm:$0xff]
    %v1133 = vld [vmem:[#allocation4 + $0x3d8] sm:$0xff]
    %v1134 = vld [vmem:[#allocation4 + $0x3e0] sm:$0xff]
    %v1135 = vld [vmem:[#allocation4 + $0x3e8] sm:$0xff]
    %v1136 = vld [vmem:[#allocation4 + $0x3f0] sm:$0xff]
    %v1137 = vld [vmem:[#allocation4 + $0x3f8] sm:$0xff]
    %v1138 = vld [vmem:[#allocation4 + $0x400] sm:$0xff]
    %v1139 = vld [vmem:[#allocation4 + $0x408] sm:$0xff]
    %v1140 = vld [vmem:[#allocation4 + $0x410] sm:$0xff]
    %v1141 = vld [vmem:[#allocation4 + $0x418] sm:$0xff]
    %v1142 = vld [vmem:[#allocation4 + $0x420] sm:$0xff]
    %v1143 = vld [vmem:[#allocation4 + $0x428] sm:$0xff]
    %v1144 = vld [vmem:[#allocation4 + $0x430] sm:$0xff]
    %v1145 = vld [vmem:[#allocation4 + $0x438] sm:$0xff]
    %v1146 = vld [vmem:[#allocation4 + $0x440] sm:$0xff]
    %v1147 = vld [vmem:[#allocation4 + $0x448] sm:$0xff]
    %v1148 = vld [vmem:[#allocation4 + $0x450] sm:$0xff]
    %v1149 = vld [vmem:[#allocation4 + $0x458] sm:$0xff]
    %v1150 = vld [vmem:[#allocation4 + $0x460] sm:$0xff]
    %v1151 = vld [vmem:[#allocation4 + $0x468] sm:$0xff]
    %v1152 = vld [vmem:[#allocation4 + $0x470] sm:$0xff]
    %v1153 = vld [vmem:[#allocation4 + $0x478] sm:$0xff]
    %v1154 = vld [vmem:[#allocation4 + $0x480] sm:$0xff]
    %v1155 = vld [vmem:[#allocation4 + $0x488] sm:$0xff]
    %v1156 = vld [vmem:[#allocation4 + $0x490] sm:$0xff]
    %v1157 = vld [vmem:[#allocation4 + $0x498] sm:$0xff]
    %v1158 = vld [vmem:[#allocation4 + $0x4a0] sm:$0xff]
    %v1159 = vld [vmem:[#allocation4 + $0x4a8] sm:$0xff]
    %v1160 = vld [vmem:[#allocation4 + $0x4b0] sm:$0xff]
    %v1161 = vld [vmem:[#allocation4 + $0x4b8] sm:$0xff]
    %v1162 = vld [vmem:[#allocation4 + $0x4c0] sm:$0xff]
    %v1163 = vld [vmem:[#allocation4 + $0x4c8] sm:$0xff]
    %v1164 = vld [vmem:[#allocation4 + $0x4d0] sm:$0xff]
    %v1165 = vld [vmem:[#allocation4 + $0x4d8] sm:$0xff]
    %v1166 = vld [vmem:[#allocation4 + $0x4e0] sm:$0xff]
    %v1167 = vld [vmem:[#allocation4 + $0x4e8] sm:$0xff]
    %v1168 = vld [vmem:[#allocation4 + $0x4f0] sm:$0xff]
    %v1169 = vld [vmem:[#allocation4 + $0x4f8] sm:$0xff]
    %v1170 = vld [vmem:[#allocation4 + $0x500] sm:$0xff]
    %v1171 = vld [vmem:[#allocation4 + $0x508] sm:$0xff]
    %v1172 = vld [vmem:[#allocation4 + $0x510] sm:$0xff]
    %v1173 = vld [vmem:[#allocation4 + $0x518] sm:$0xff]
    %v1174 = vld [vmem:[#allocation4 + $0x520] sm:$0xff]
    %v1175 = vld [vmem:[#allocation4 + $0x528] sm:$0xff]
    %v1176 = vld [vmem:[#allocation4 + $0x530] sm:$0xff]
    %v1177 = vld [vmem:[#allocation4 + $0x538] sm:$0xff]
    %v1178 = vld [vmem:[#allocation4 + $0x540] sm:$0xff]
    %v1179 = vld [vmem:[#allocation4 + $0x548] sm:$0xff]
    %v1180 = vld [vmem:[#allocation4 + $0x550] sm:$0xff]
    %v1181 = vld [vmem:[#allocation4 + $0x558] sm:$0xff]
    %v1182 = vld [vmem:[#allocation4 + $0x560] sm:$0xff]
    %v1183 = vld [vmem:[#allocation4 + $0x568] sm:$0xff]
    %v1184 = vld [vmem:[#allocation4 + $0x570] sm:$0xff]
    %v1185 = vld [vmem:[#allocation4 + $0x578] sm:$0xff]
    %v1186 = vld [vmem:[#allocation4 + $0x580] sm:$0xff]
    %v1187 = vld [vmem:[#allocation4 + $0x588] sm:$0xff]
    %v1188 = vld [vmem:[#allocation4 + $0x590] sm:$0xff]
    %v1189 = vld [vmem:[#allocation4 + $0x598] sm:$0xff]
    %v1190 = vld [vmem:[#allocation4 + $0x5a0] sm:$0xff]
    %v1191 = vld [vmem:[#allocation4 + $0x5a8] sm:$0xff]
    %v1192 = vld [vmem:[#allocation4 + $0x5b0] sm:$0xff]
    %v1193 = vld [vmem:[#allocation4 + $0x5b8] sm:$0xff]
    %v1194 = vld [vmem:[#allocation4 + $0x5c0] sm:$0xff]
    %v1195 = vld [vmem:[#allocation4 + $0x5c8] sm:$0xff]
    %v1196 = vld [vmem:[#allocation4 + $0x5d0] sm:$0xff]
    %v1197 = vld [vmem:[#allocation4 + $0x5d8] sm:$0xff]
    %v1198 = vld [vmem:[#allocation4 + $0x5e0] sm:$0xff]
    %v1199 = vld [vmem:[#allocation4 + $0x5e8] sm:$0xff]
    %v1200 = vld [vmem:[#allocation4 + $0x5f0] sm:$0xff]
    %v1201 = vld [vmem:[#allocation4 + $0x5f8] sm:$0xff]
    %v1202 = vld [vmem:[#allocation4 + $0x600] sm:$0xff]
    %v1203 = vld [vmem:[#allocation4 + $0x608] sm:$0xff]
    %v1204 = vld [vmem:[#allocation4 + $0x610] sm:$0xff]
    %v1205 = vld [vmem:[#allocation4 + $0x618] sm:$0xff]
    %v1206 = vld [vmem:[#allocation4 + $0x620] sm:$0xff]
    %v1207 = vld [vmem:[#allocation4 + $0x628] sm:$0xff]
    %v1208 = vld [vmem:[#allocation4 + $0x630] sm:$0xff]
    %v1209 = vld [vmem:[#allocation4 + $0x638] sm:$0xff]
    %v1211 = vsel %vm803, %v997, 0
    %v1214 = vsel %vm803, %v1001, 0
    %v1217 = vsel %vm803, %v1005, 0
    %v1220 = vsel %vm803, %v1009, 0
    %1222 = vmatprep.subr.mxu0 %v1011
    %1223 = vmatpush1.msra.mxu0 %v1010
    %1224 = vmatprep.subr.mxu0 %v1015
    %1225 = vmatpush1.msra.mxu0 %v1014
    %1226 = vmatprep.subr.mxu0 %v1019
    %1227 = vmatpush1.msra.mxu0 %v1018
    %1228 = vmatprep.subr.mxu0 %v1023
    %1229 = vmatpush1.msra.mxu0 %v1022
    %1230 = vmatprep.subr.mxu0 %v1027
    %1231 = vmatpush1.msra.mxu0 %v1026
    %1232 = vmatprep.subr.mxu0 %v1031
    %1233 = vmatpush1.msra.mxu0 %v1030
    %1234 = vmatprep.subr.mxu0 %v1035
    %1235 = vmatpush1.msra.mxu0 %v1034
    %1236 = vmatprep.subr.mxu0 %v1039
    %1237 = vmatpush1.msra.mxu0 %v1038
    %1238 = vmatprep.subr.mxu0 %v1043
    %1239 = vmatpush1.msra.mxu0 %v1042
    %1240 = vmatprep.subr.mxu0 %v1047
    %1241 = vmatpush1.msra.mxu0 %v1046
    %1242 = vmatprep.subr.mxu0 %v1051
    %1243 = vmatpush1.msra.mxu0 %v1050
    %1244 = vmatprep.subr.mxu0 %v1055
    %1245 = vmatpush1.msra.mxu0 %v1054
    %1246 = vmatprep.subr.mxu0 %v1059
    %1247 = vmatpush1.msra.mxu0 %v1058
    %1248 = vmatprep.subr.mxu0 %v1063
    %1249 = vmatpush1.msra.mxu0 %v1062
    %1250 = vmatprep.subr.mxu0 %v1067
    %1251 = vmatpush1.msra.mxu0 %v1066
    %1252 = vmatprep.subr.mxu0 %v1071
    %1253 = vmatpush1.msra.mxu0 %v1070
    %1254 = vmatprep.subr.mxu0 %v1075
    %1255 = vmatpush1.msra.mxu0 %v1074
    %1256 = vmatprep.subr.mxu0 %v1079
    %1257 = vmatpush1.msra.mxu0 %v1078
    %1258 = vmatprep.subr.mxu0 %v1083
    %1259 = vmatpush1.msra.mxu0 %v1082
    %1260 = vmatprep.subr.mxu0 %v1087
    %1261 = vmatpush1.msra.mxu0 %v1086
    %1262 = vmatprep.subr.mxu0 %v1091
    %1263 = vmatpush1.msra.mxu0 %v1090
    %1264 = vmatprep.subr.mxu0 %v1095
    %1265 = vmatpush1.msra.mxu0 %v1094
    %1266 = vmatprep.subr.mxu0 %v1099
    %1267 = vmatpush1.msra.mxu0 %v1098
    %1268 = vmatprep.subr.mxu0 %v1103
    %1269 = vmatpush1.msra.mxu0 %v1102
    %1270 = vmatprep.subr.mxu0 %v1107
    %1271 = vmatpush1.msra.mxu0 %v1106
    %1272 = vmatprep.subr.mxu0 %v1111
    %1273 = vmatpush1.msra.mxu0 %v1110
    %1274 = vmatprep.subr.mxu0 %v1115
    %1275 = vmatpush1.msra.mxu0 %v1114
    %1276 = vmatprep.subr.mxu0 %v1119
    %1277 = vmatpush1.msra.mxu0 %v1118
    %1278 = vmatprep.subr.mxu0 %v1123
    %1279 = vmatpush1.msra.mxu0 %v1122
    %1280 = vmatprep.subr.mxu0 %v1127
    %1281 = vmatpush1.msra.mxu0 %v1126
    %1282 = vmatprep.subr.mxu0 %v1131
    %1283 = vmatpush1.msra.mxu0 %v1130
    %1284 = vmatprep.subr.mxu0 %v1135
    %1285 = vmatpush1.msra.mxu0 %v1134
    %1286 = vmatprep.mubr.f32.mxu0 %v995
    %1287 = vmatmul.mubr.f32.gmra.mrb[0].mxu0 %v994
    %v1288 = vpop.f32.mrb[0].mxu0
    %v1289 = vadd.f32 0.0, %v1288
    %v1290 = vpop.f32.mrb[0].mxu0
    %v1291 = vadd.f32 0.0, %v1290
    %1292 = vmatprep.mubr.f32.mxu0 %v999
    %1293 = vmatmul.mubr.f32.gmra.mrb[0].mxu0 %v998
    %v1294 = vpop.f32.mrb[0].mxu0
    %v1295 = vadd.f32 0.0, %v1294
    %v1296 = vpop.f32.mrb[0].mxu0
    %v1297 = vadd.f32 0.0, %v1296
    %1298 = vmatprep.mubr.f32.mxu0 %v1003
    %1299 = vmatmul.mubr.f32.gmra.mrb[0].mxu0 %v1002
    %v1300 = vpop.f32.mrb[0].mxu0
    %v1301 = vadd.f32 0.0, %v1300
    %v1302 = vpop.f32.mrb[0].mxu0
    %v1303 = vadd.f32 0.0, %v1302
    %1304 = vmatprep.mubr.f32.mxu0 %v1007
    %1305 = vmatmul.mubr.f32.gmra.mrb[0].mxu0 %v1006
    %v1306 = vpop.f32.mrb[0].mxu0
    %v1307 = vadd.f32 0.0, %v1306
    %v1308 = vpop.f32.mrb[0].mxu0
    %v1309 = vadd.f32 0.0, %v1308
    %1310 = vdwg.mxu0
    %1311 = vmatprep.subr.mxu0 %v1139
    %1312 = vmatpush1.msra.mxu0 %v1138
    %1313 = vmatprep.subr.mxu0 %v1143
    %1314 = vmatpush1.msra.mxu0 %v1142
    %1315 = vmatprep.subr.mxu0 %v1147
    %1316 = vmatpush1.msra.mxu0 %v1146
    %1317 = vmatprep.subr.mxu0 %v1151
    %1318 = vmatpush1.msra.mxu0 %v1150
    %1319 = vmatprep.subr.mxu0 %v1155
    %1320 = vmatpush1.msra.mxu0 %v1154
    %1321 = vmatprep.subr.mxu0 %v1159
    %1322 = vmatpush1.msra.mxu0 %v1158
    %1323 = vmatprep.subr.mxu0 %v1163
    %1324 = vmatpush1.msra.mxu0 %v1162
    %1325 = vmatprep.subr.mxu0 %v1167
    %1326 = vmatpush1.msra.mxu0 %v1166
    %1327 = vmatprep.subr.mxu0 %v1171
    %1328 = vmatpush1.msra.mxu0 %v1170
    %1329 = vmatprep.subr.mxu0 %v1175
    %1330 = vmatpush1.msra.mxu0 %v1174
    %1331 = vmatprep.subr.mxu0 %v1179
    %1332 = vmatpush1.msra.mxu0 %v1178
    %1333 = vmatprep.subr.mxu0 %v1183
    %1334 = vmatpush1.msra.mxu0 %v1182
    %1335 = vmatprep.subr.mxu0 %v1187
    %1336 = vmatpush1.msra.mxu0 %v1186
    %1337 = vmatprep.subr.mxu0 %v1191
    %1338 = vmatpush1.msra.mxu0 %v1190
    %1339 = vmatprep.subr.mxu0 %v1195
    %1340 = vmatpush1.msra.mxu0 %v1194
    %1341 = vmatprep.subr.mxu0 %v1199
    %1342 = vmatpush1.msra.mxu0 %v1198
    %1343 = vmatprep.subr.mxu0 %v1203
    %1344 = vmatpush1.msra.mxu0 %v1202
    %1345 = vmatprep.subr.mxu0 %v1207
    %1346 = vmatpush1.msra.mxu0 %v1206
    %1347 = vmatprep.subr.mxu0 0.0
    %1348 = vmatpush1.msra.mxu0 0.0
    %1349 = vmatprep.subr.mxu0 0.0
    %1350 = vmatpush1.msra.mxu0 0.0
    %1351 = vmatprep.subr.mxu0 0.0
    %1352 = vmatpush1.msra.mxu0 0.0
    %1353 = vmatprep.subr.mxu0 0.0
    %1354 = vmatpush1.msra.mxu0 0.0
    %1355 = vmatprep.subr.mxu0 0.0
    %1356 = vmatpush1.msra.mxu0 0.0
    %1357 = vmatprep.subr.mxu0 0.0
    %1358 = vmatpush1.msra.mxu0 0.0
    %1359 = vmatprep.subr.mxu0 0.0
    %1360 = vmatpush1.msra.mxu0 0.0
    %1361 = vmatprep.subr.mxu0 0.0
    %1362 = vmatpush1.msra.mxu0 0.0
    %1363 = vmatprep.subr.mxu0 0.0
    %1364 = vmatpush1.msra.mxu0 0.0
    %1365 = vmatprep.subr.mxu0 0.0
    %1366 = vmatpush1.msra.mxu0 0.0
    %1367 = vmatprep.subr.mxu0 0.0
    %1368 = vmatpush1.msra.mxu0 0.0
    %1369 = vmatprep.subr.mxu0 0.0
    %1370 = vmatpush1.msra.mxu0 0.0
    %1371 = vmatprep.subr.mxu0 0.0
    %1372 = vmatpush1.msra.mxu0 0.0
    %1373 = vmatprep.subr.mxu0 0.0
    %1374 = vmatpush1.msra.mxu0 0.0
    %1375 = vmatprep.mubr.f32.mxu0 %v1211
    %1376 = vmatmul.mubr.f32.gmra.mrb[0].mxu0 %v996
    %v1377 = vpop.f32.mrb[0].mxu0
    %v1378 = vadd.f32 %v1289, %v1377
    %v1379 = vpop.f32.mrb[0].mxu0
    %v1380 = vadd.f32 %v1291, %v1379
    %1381 = vmatprep.mubr.f32.mxu0 %v1214
    %1382 = vmatmul.mubr.f32.gmra.mrb[0].mxu0 %v1000
    %v1383 = vpop.f32.mrb[0].mxu0
    %v1384 = vadd.f32 %v1295, %v1383
    %v1385 = vpop.f32.mrb[0].mxu0
    %v1386 = vadd.f32 %v1297, %v1385
    %1387 = vmatprep.mubr.f32.mxu0 %v1217
    %1388 = vmatmul.mubr.f32.gmra.mrb[0].mxu0 %v1004
    %v1389 = vpop.f32.mrb[0].mxu0
    %v1390 = vadd.f32 %v1301, %v1389
    %v1391 = vpop.f32.mrb[0].mxu0
    %v1392 = vadd.f32 %v1303, %v1391
    %1393 = vmatprep.mubr.f32.mxu0 %v1220
    %1394 = vmatmul.mubr.f32.gmra.mrb[0].mxu0 %v1008
    %v1395 = vpop.f32.mrb[0].mxu0
    %v1396 = vadd.f32 %v1307, %v1395
    %v1397 = vpop.f32.mrb[0].mxu0
    %v1398 = vadd.f32 %v1309, %v1397
    %1399 = vdwg.mxu0
    %1400 = vmatprep.subr.mxu0 %v1013
    %1401 = vmatpush1.msra.mxu0 %v1012
    %1402 = vmatprep.subr.mxu0 %v1017
    %1403 = vmatpush1.msra.mxu0 %v1016
    %1404 = vmatprep.subr.mxu0 %v1021
    %1405 = vmatpush1.msra.mxu0 %v1020
    %1406 = vmatprep.subr.mxu0 %v1025
    %1407 = vmatpush1.msra.mxu0 %v1024
    %1408 = vmatprep.subr.mxu0 %v1029
    %1409 = vmatpush1.msra.mxu0 %v1028
    %1410 = vmatprep.subr.mxu0 %v1033
    %1411 = vmatpush1.msra.mxu0 %v1032
    %1412 = vmatprep.subr.mxu0 %v1037
    %1413 = vmatpush1.msra.mxu0 %v1036
    %1414 = vmatprep.subr.mxu0 %v1041
    %1415 = vmatpush1.msra.mxu0 %v1040
    %1416 = vmatprep.subr.mxu0 %v1045
    %1417 = vmatpush1.msra.mxu0 %v1044
    %1418 = vmatprep.subr.mxu0 %v1049
    %1419 = vmatpush1.msra.mxu0 %v1048
    %1420 = vmatprep.subr.mxu0 %v1053
    %1421 = vmatpush1.msra.mxu0 %v1052
    %1422 = vmatprep.subr.mxu0 %v1057
    %1423 = vmatpush1.msra.mxu0 %v1056
    %1424 = vmatprep.subr.mxu0 %v1061
    %1425 = vmatpush1.msra.mxu0 %v1060
    %1426 = vmatprep.subr.mxu0 %v1065
    %1427 = vmatpush1.msra.mxu0 %v1064
    %1428 = vmatprep.subr.mxu0 %v1069
    %1429 = vmatpush1.msra.mxu0 %v1068
    %1430 = vmatprep.subr.mxu0 %v1073
    %1431 = vmatpush1.msra.mxu0 %v1072
    %1432 = vmatprep.subr.mxu0 %v1077
    %1433 = vmatpush1.msra.mxu0 %v1076
    %1434 = vmatprep.subr.mxu0 %v1081
    %1435 = vmatpush1.msra.mxu0 %v1080
    %1436 = vmatprep.subr.mxu0 %v1085
    %1437 = vmatpush1.msra.mxu0 %v1084
    %1438 = vmatprep.subr.mxu0 %v1089
    %1439 = vmatpush1.msra.mxu0 %v1088
    %1440 = vmatprep.subr.mxu0 %v1093
    %1441 = vmatpush1.msra.mxu0 %v1092
    %1442 = vmatprep.subr.mxu0 %v1097
    %1443 = vmatpush1.msra.mxu0 %v1096
    %1444 = vmatprep.subr.mxu0 %v1101
    %1445 = vmatpush1.msra.mxu0 %v1100
    %1446 = vmatprep.subr.mxu0 %v1105
    %1447 = vmatpush1.msra.mxu0 %v1104
    %1448 = vmatprep.subr.mxu0 %v1109
    %1449 = vmatpush1.msra.mxu0 %v1108
    %1450 = vmatprep.subr.mxu0 %v1113
    %1451 = vmatpush1.msra.mxu0 %v1112
    %1452 = vmatprep.subr.mxu0 %v1117
    %1453 = vmatpush1.msra.mxu0 %v1116
    %1454 = vmatprep.subr.mxu0 %v1121
    %1455 = vmatpush1.msra.mxu0 %v1120
    %1456 = vmatprep.subr.mxu0 %v1125
    %1457 = vmatpush1.msra.mxu0 %v1124
    %1458 = vmatprep.subr.mxu0 %v1129
    %1459 = vmatpush1.msra.mxu0 %v1128
    %1460 = vmatprep.subr.mxu0 %v1133
    %1461 = vmatpush1.msra.mxu0 %v1132
    %1462 = vmatprep.subr.mxu0 %v1137
    %1463 = vmatpush1.msra.mxu0 %v1136
    %1464 = vmatprep.mubr.f32.mxu0 %v995
    %1465 = vmatmul.mubr.f32.gmra.mrb[0].mxu0 %v994
    %v1466 = vpop.f32.mrb[0].mxu0
    %v1467 = vadd.f32 0.0, %v1466
    %v1468 = vpop.f32.mrb[0].mxu0
    %v1469 = vadd.f32 0.0, %v1468
    %1470 = vmatprep.mubr.f32.mxu0 %v999
    %1471 = vmatmul.mubr.f32.gmra.mrb[0].mxu0 %v998
    %v1472 = vpop.f32.mrb[0].mxu0
    %v1473 = vadd.f32 0.0, %v1472
    %v1474 = vpop.f32.mrb[0].mxu0
    %v1475 = vadd.f32 0.0, %v1474
    %1476 = vmatprep.mubr.f32.mxu0 %v1003
    %1477 = vmatmul.mubr.f32.gmra.mrb[0].mxu0 %v1002
    %v1478 = vpop.f32.mrb[0].mxu0
    %v1479 = vadd.f32 0.0, %v1478
    %v1480 = vpop.f32.mrb[0].mxu0
    %v1481 = vadd.f32 0.0, %v1480
    %1482 = vmatprep.mubr.f32.mxu0 %v1007
    %1483 = vmatmul.mubr.f32.gmra.mrb[0].mxu0 %v1006
    %v1484 = vpop.f32.mrb[0].mxu0
    %v1485 = vadd.f32 0.0, %v1484
    %v1486 = vpop.f32.mrb[0].mxu0
    %v1487 = vadd.f32 0.0, %v1486
    %1488 = vdwg.mxu0
    %1489 = vmatprep.subr.mxu0 %v1141
    %1490 = vmatpush1.msra.mxu0 %v1140
    %1491 = vmatprep.subr.mxu0 %v1145
    %1492 = vmatpush1.msra.mxu0 %v1144
    %1493 = vmatprep.subr.mxu0 %v1149
    %1494 = vmatpush1.msra.mxu0 %v1148
    %1495 = vmatprep.subr.mxu0 %v1153
    %1496 = vmatpush1.msra.mxu0 %v1152
    %1497 = vmatprep.subr.mxu0 %v1157
    %1498 = vmatpush1.msra.mxu0 %v1156
    %1499 = vmatprep.subr.mxu0 %v1161
    %1500 = vmatpush1.msra.mxu0 %v1160
    %1501 = vmatprep.subr.mxu0 %v1165
    %1502 = vmatpush1.msra.mxu0 %v1164
    %1503 = vmatprep.subr.mxu0 %v1169
    %1504 = vmatpush1.msra.mxu0 %v1168
    %1505 = vmatprep.subr.mxu0 %v1173
    %1506 = vmatpush1.msra.mxu0 %v1172
    %1507 = vmatprep.subr.mxu0 %v1177
    %1508 = vmatpush1.msra.mxu0 %v1176
    %1509 = vmatprep.subr.mxu0 %v1181
    %1510 = vmatpush1.msra.mxu0 %v1180
    %1511 = vmatprep.subr.mxu0 %v1185
    %1512 = vmatpush1.msra.mxu0 %v1184
    %1513 = vmatprep.subr.mxu0 %v1189
    %1514 = vmatpush1.msra.mxu0 %v1188
    %1515 = vmatprep.subr.mxu0 %v1193
    %1516 = vmatpush1.msra.mxu0 %v1192
    %1517 = vmatprep.subr.mxu0 %v1197
    %1518 = vmatpush1.msra.mxu0 %v1196
    %1519 = vmatprep.subr.mxu0 %v1201
    %1520 = vmatpush1.msra.mxu0 %v1200
    %1521 = vmatprep.subr.mxu0 %v1205
    %1522 = vmatpush1.msra.mxu0 %v1204
    %1523 = vmatprep.subr.mxu0 %v1209
    %1524 = vmatpush1.msra.mxu0 %v1208
    %1525 = vmatprep.subr.mxu0 0.0
    %1526 = vmatpush1.msra.mxu0 0.0
    %1527 = vmatprep.subr.mxu0 0.0
    %1528 = vmatpush1.msra.mxu0 0.0
    %1529 = vmatprep.subr.mxu0 0.0
    %1530 = vmatpush1.msra.mxu0 0.0
    %1531 = vmatprep.subr.mxu0 0.0
    %1532 = vmatpush1.msra.mxu0 0.0
    %1533 = vmatprep.subr.mxu0 0.0
    %1534 = vmatpush1.msra.mxu0 0.0
    %1535 = vmatprep.subr.mxu0 0.0
    %1536 = vmatpush1.msra.mxu0 0.0
    %1537 = vmatprep.subr.mxu0 0.0
    %1538 = vmatpush1.msra.mxu0 0.0
    %1539 = vmatprep.subr.mxu0 0.0
    %1540 = vmatpush1.msra.mxu0 0.0
    %1541 = vmatprep.subr.mxu0 0.0
    %1542 = vmatpush1.msra.mxu0 0.0
    %1543 = vmatprep.subr.mxu0 0.0
    %1544 = vmatpush1.msra.mxu0 0.0
    %1545 = vmatprep.subr.mxu0 0.0
    %1546 = vmatpush1.msra.mxu0 0.0
    %1547 = vmatprep.subr.mxu0 0.0
    %1548 = vmatpush1.msra.mxu0 0.0
    %1549 = vmatprep.subr.mxu0 0.0
    %1550 = vmatpush1.msra.mxu0 0.0
    %1551 = vmatprep.subr.mxu0 0.0
    %1552 = vmatpush1.msra.mxu0 0.0
    %1553 = vmatprep.mubr.f32.mxu0 %v1211
    %1554 = vmatmul.mubr.f32.gmra.mrb[0].mxu0 %v996
    %v1555 = vpop.f32.mrb[0].mxu0
    %v1556 = vadd.f32 %v1467, %v1555
    %v1557 = vpop.f32.mrb[0].mxu0
    %v1558 = vadd.f32 %v1469, %v1557
    %1559 = vmatprep.mubr.f32.mxu0 %v1214
    %1560 = vmatmul.mubr.f32.gmra.mrb[0].mxu0 %v1000
    %v1561 = vpop.f32.mrb[0].mxu0
    %v1562 = vadd.f32 %v1473, %v1561
    %v1563 = vpop.f32.mrb[0].mxu0
    %v1564 = vadd.f32 %v1475, %v1563
    %1565 = vmatprep.mubr.f32.mxu0 %v1217
    %1566 = vmatmul.mubr.f32.gmra.mrb[0].mxu0 %v1004
    %v1567 = vpop.f32.mrb[0].mxu0
    %v1568 = vadd.f32 %v1479, %v1567
    %v1569 = vpop.f32.mrb[0].mxu0
    %v1570 = vadd.f32 %v1481, %v1569
    %1571 = vmatprep.mubr.f32.mxu0 %v1220
    %1572 = vmatmul.mubr.f32.gmra.mrb[0].mxu0 %v1008
    %v1573 = vpop.f32.mrb[0].mxu0
    %v1574 = vadd.f32 %v1485, %v1573
    %v1575 = vpop.f32.mrb[0].mxu0
    %v1576 = vadd.f32 %v1487, %v1575
    %1577 = vdwg.mxu0
    %v1578 = vld [vmem:[#allocation2] sm:$0xff]
    %v1579 = vld [vmem:[#allocation2 + $0x8] sm:$0xff]
    %v1580 = vld [vmem:[#allocation2 + $0x10] sm:$0xff]
    %v1581 = vld [vmem:[#allocation2 + $0x18] sm:$0x3]
    %s1582 = scalar_lea.vmem [#allocation2], 32
    %v1583 = vld [vmem:[%s1582] sm:$0xff]
    %v1584 = vld [vmem:[%s1582 + $0x8] sm:$0xff]
    %v1585 = vld [vmem:[%s1582 + $0x10] sm:$0xff]
    %v1586 = vld [vmem:[%s1582 + $0x18] sm:$0x3]
    %1591 = vrot.lane.b32.xlu0 %v1378, 108
    %v1592 = vpop.permute.xlu0 %1591
    %1593 = vrot.lane.b32.xlu0 %v1384, 108
    %v1594 = vpop.permute.xlu0 %1593
    %1595 = vrot.lane.b32.xlu0 %v1390, 108
    %v1596 = vpop.permute.xlu0 %1595
    %1597 = vrot.lane.b32.xlu0 %v1396, 108
    %v1598 = vpop.permute.xlu0 %1597
    %vm1602 = vcmask 211968
    %v1604 = vsel %vm1602, %v1583, 0
    %v1607 = vsel %vm1602, %v1584, 0
    %v1610 = vsel %vm1602, %v1585, 0
    %v1613 = vsel %vm1602, %v1586, 0
    %v1615 = vsel %vm323, %v1598, 0
    %1617 = vmatprep.subr.mxu0 0.0
    %1618 = vmatpush1.msra.mxu0 %v1592
    %1619 = vmatprep.subr.mxu0 0.0
    %1620 = vmatpush1.msra.mxu0 %v1594
    %1621 = vmatprep.subr.mxu0 0.0
    %1622 = vmatpush1.msra.mxu0 %v1596
    %1623 = vmatprep.subr.mxu0 0.0
    %1624 = vmatpush1.msra.mxu0 %v1615
    %1625 = vmatprep.subr.mxu0 0.0
    %1626 = vmatpush1.msra.mxu0 0.0
    %1627 = vmatprep.subr.mxu0 0.0
    %1628 = vmatpush1.msra.mxu0 0.0
    %1629 = vmatprep.subr.mxu0 0.0
    %1630 = vmatpush1.msra.mxu0 0.0
    %1631 = vmatprep.subr.mxu0 0.0
    %1632 = vmatpush1.msra.mxu0 0.0
    %1633 = vmatprep.subr.mxu0 0.0
    %1634 = vmatpush1.msra.mxu0 0.0
    %1635 = vmatprep.subr.mxu0 0.0
    %1636 = vmatpush1.msra.mxu0 0.0
    %1637 = vmatprep.subr.mxu0 0.0
    %1638 = vmatpush1.msra.mxu0 0.0
    %1639 = vmatprep.subr.mxu0 0.0
    %1640 = vmatpush1.msra.mxu0 0.0
    %1641 = vmatprep.subr.mxu0 0.0
    %1642 = vmatpush1.msra.mxu0 0.0
    %1643 = vmatprep.subr.mxu0 0.0
    %1644 = vmatpush1.msra.mxu0 0.0
    %1645 = vmatprep.subr.mxu0 0.0
    %1646 = vmatpush1.msra.mxu0 0.0
    %1647 = vmatprep.subr.mxu0 0.0
    %1648 = vmatpush1.msra.mxu0 0.0
    %1649 = vmatprep.subr.mxu0 0.0
    %1650 = vmatpush1.msra.mxu0 0.0
    %1651 = vmatprep.subr.mxu0 0.0
    %1652 = vmatpush1.msra.mxu0 0.0
    %1653 = vmatprep.subr.mxu0 0.0
    %1654 = vmatpush1.msra.mxu0 0.0
    %1655 = vmatprep.subr.mxu0 0.0
    %1656 = vmatpush1.msra.mxu0 0.0
    %1657 = vmatprep.subr.mxu0 0.0
    %1658 = vmatpush1.msra.mxu0 0.0
    %1659 = vmatprep.subr.mxu0 0.0
    %1660 = vmatpush1.msra.mxu0 0.0
    %1661 = vmatprep.subr.mxu0 0.0
    %1662 = vmatpush1.msra.mxu0 0.0
    %1663 = vmatprep.subr.mxu0 0.0
    %1664 = vmatpush1.msra.mxu0 0.0
    %1665 = vmatprep.subr.mxu0 0.0
    %1666 = vmatpush1.msra.mxu0 0.0
    %1667 = vmatprep.subr.mxu0 0.0
    %1668 = vmatpush1.msra.mxu0 0.0
    %1669 = vmatprep.subr.mxu0 0.0
    %1670 = vmatpush1.msra.mxu0 0.0
    %1671 = vmatprep.subr.mxu0 0.0
    %1672 = vmatpush1.msra.mxu0 0.0
    %1673 = vmatprep.subr.mxu0 0.0
    %1674 = vmatpush1.msra.mxu0 0.0
    %1675 = vmatprep.subr.mxu0 0.0
    %1676 = vmatpush1.msra.mxu0 0.0
    %1677 = vmatprep.subr.mxu0 0.0
    %1678 = vmatpush1.msra.mxu0 0.0
    %1679 = vmatprep.subr.mxu0 0.0
    %1680 = vmatpush1.msra.mxu0 0.0
    %1681 = vmatprep.mubr.f32.mxu0 0.0
    %1682 = vmatmul.mubr.f32.gmra.mrb[0].mxu0 %v1604
    %v1683 = vpop.f32.mrb[0].mxu0
    %v1684 = vadd.f32 0.0, %v1683
    %v1685 = vpop.f32.mrb[0].mxu0
    %1686 = vmatprep.mubr.f32.mxu0 0.0
    %1687 = vmatmul.mubr.f32.gmra.mrb[0].mxu0 %v1607
    %v1688 = vpop.f32.mrb[0].mxu0
    %v1689 = vadd.f32 0.0, %v1688
    %v1690 = vpop.f32.mrb[0].mxu0
    %1691 = vmatprep.mubr.f32.mxu0 0.0
    %1692 = vmatmul.mubr.f32.gmra.mrb[0].mxu0 %v1610
    %v1693 = vpop.f32.mrb[0].mxu0
    %v1694 = vadd.f32 0.0, %v1693
    %v1695 = vpop.f32.mrb[0].mxu0
    %1696 = vmatprep.mubr.f32.mxu0 0.0
    %1697 = vmatmul.mubr.f32.gmra.mrb[0].mxu0 %v1613
    %v1698 = vpop.f32.mrb[0].mxu0
    %v1699 = vadd.f32 0.0, %v1698
    %v1700 = vpop.f32.mrb[0].mxu0
    %1701 = vdwg.mxu0
    %v1703 = vsel %vm1602, %v1578, 0
    %v1706 = vsel %vm1602, %v1579, 0
    %v1709 = vsel %vm1602, %v1580, 0
    %v1712 = vsel %vm1602, %v1581, 0
    %v1714 = vsel %vm323, %v1396, 0
    %1716 = vmatprep.subr.mxu0 0.0
    %1717 = vmatpush1.msra.mxu0 %v1378
    %1718 = vmatprep.subr.mxu0 0.0
    %1719 = vmatpush1.msra.mxu0 %v1384
    %1720 = vmatprep.subr.mxu0 0.0
    %1721 = vmatpush1.msra.mxu0 %v1390
    %1722 = vmatprep.subr.mxu0 0.0
    %1723 = vmatpush1.msra.mxu0 %v1714
    %1724 = vmatprep.subr.mxu0 0.0
    %1725 = vmatpush1.msra.mxu0 0.0
    %1726 = vmatprep.subr.mxu0 0.0
    %1727 = vmatpush1.msra.mxu0 0.0
    %1728 = vmatprep.subr.mxu0 0.0
    %1729 = vmatpush1.msra.mxu0 0.0
    %1730 = vmatprep.subr.mxu0 0.0
    %1731 = vmatpush1.msra.mxu0 0.0
    %1732 = vmatprep.subr.mxu0 0.0
    %1733 = vmatpush1.msra.mxu0 0.0
    %1734 = vmatprep.subr.mxu0 0.0
    %1735 = vmatpush1.msra.mxu0 0.0
    %1736 = vmatprep.subr.mxu0 0.0
    %1737 = vmatpush1.msra.mxu0 0.0
    %1738 = vmatprep.subr.mxu0 0.0
    %1739 = vmatpush1.msra.mxu0 0.0
    %1740 = vmatprep.subr.mxu0 0.0
    %1741 = vmatpush1.msra.mxu0 0.0
    %1742 = vmatprep.subr.mxu0 0.0
    %1743 = vmatpush1.msra.mxu0 0.0
    %1744 = vmatprep.subr.mxu0 0.0
    %1745 = vmatpush1.msra.mxu0 0.0
    %1746 = vmatprep.subr.mxu0 0.0
    %1747 = vmatpush1.msra.mxu0 0.0
    %1748 = vmatprep.subr.mxu0 0.0
    %1749 = vmatpush1.msra.mxu0 0.0
    %1750 = vmatprep.subr.mxu0 0.0
    %1751 = vmatpush1.msra.mxu0 0.0
    %1752 = vmatprep.subr.mxu0 0.0
    %1753 = vmatpush1.msra.mxu0 0.0
    %1754 = vmatprep.subr.mxu0 0.0
    %1755 = vmatpush1.msra.mxu0 0.0
    %1756 = vmatprep.subr.mxu0 0.0
    %1757 = vmatpush1.msra.mxu0 0.0
    %1758 = vmatprep.subr.mxu0 0.0
    %1759 = vmatpush1.msra.mxu0 0.0
    %1760 = vmatprep.subr.mxu0 0.0
    %1761 = vmatpush1.msra.mxu0 0.0
    %1762 = vmatprep.subr.mxu0 0.0
    %1763 = vmatpush1.msra.mxu0 0.0
    %1764 = vmatprep.subr.mxu0 0.0
    %1765 = vmatpush1.msra.mxu0 0.0
    %1766 = vmatprep.subr.mxu0 0.0
    %1767 = vmatpush1.msra.mxu0 0.0
    %1768 = vmatprep.subr.mxu0 0.0
    %1769 = vmatpush1.msra.mxu0 0.0
    %1770 = vmatprep.subr.mxu0 0.0
    %1771 = vmatpush1.msra.mxu0 0.0
    %1772 = vmatprep.subr.mxu0 0.0
    %1773 = vmatpush1.msra.mxu0 0.0
    %1774 = vmatprep.subr.mxu0 0.0
    %1775 = vmatpush1.msra.mxu0 0.0
    %1776 = vmatprep.subr.mxu0 0.0
    %1777 = vmatpush1.msra.mxu0 0.0
    %1778 = vmatprep.subr.mxu0 0.0
    %1779 = vmatpush1.msra.mxu0 0.0
    %1780 = vmatprep.mubr.f32.mxu0 0.0
    %1781 = vmatmul.mubr.f32.gmra.mrb[0].mxu0 %v1703
    %v1782 = vpop.f32.mrb[0].mxu0
    %v1783 = vadd.f32 %v1684, %v1782
    %v1784 = vpop.f32.mrb[0].mxu0
    %1785 = vmatprep.mubr.f32.mxu0 0.0
    %1786 = vmatmul.mubr.f32.gmra.mrb[0].mxu0 %v1706
    %v1787 = vpop.f32.mrb[0].mxu0
    %v1788 = vadd.f32 %v1689, %v1787
    %v1789 = vpop.f32.mrb[0].mxu0
    %1790 = vmatprep.mubr.f32.mxu0 0.0
    %1791 = vmatmul.mubr.f32.gmra.mrb[0].mxu0 %v1709
    %v1792 = vpop.f32.mrb[0].mxu0
    %v1793 = vadd.f32 %v1694, %v1792
    %v1794 = vpop.f32.mrb[0].mxu0
    %1795 = vmatprep.mubr.f32.mxu0 0.0
    %1796 = vmatmul.mubr.f32.gmra.mrb[0].mxu0 %v1712
    %v1797 = vpop.f32.mrb[0].mxu0
    %v1798 = vadd.f32 %v1699, %v1797
    %v1799 = vpop.f32.mrb[0].mxu0
    %1800 = vdwg.mxu0
    %s1801 = scalar_lea.vmem [#allocation2], 64
    %v1802 = vld [vmem:[%s1801] sm:$0xff]
    %v1803 = vld [vmem:[%s1801 + $0x8] sm:$0xff]
    %v1804 = vld [vmem:[%s1801 + $0x10] sm:$0xff]
    %v1805 = vld [vmem:[%s1801 + $0x18] sm:$0x3]
    %1806 = vrot.lane.b32.xlu0 %v1378, 88
    %v1807 = vpop.permute.xlu0 %1806
    %1808 = vrot.lane.b32.xlu0 %v1384, 88
    %v1809 = vpop.permute.xlu0 %1808
    %1810 = vrot.lane.b32.xlu0 %v1390, 88
    %v1811 = vpop.permute.xlu0 %1810
    %1812 = vrot.lane.b32.xlu0 %v1396, 88
    %v1813 = vpop.permute.xlu0 %1812
    %v1818 = vsel %vm1602, %v1802, 0
    %v1821 = vsel %vm1602, %v1803, 0
    %v1824 = vsel %vm1602, %v1804, 0
    %v1827 = vsel %vm1602, %v1805, 0
    %v1829 = vsel %vm323, %v1813, 0
    %1831 = vmatprep.subr.mxu0 0.0
    %1832 = vmatpush1.msra.mxu0 %v1807
    %1833 = vmatprep.subr.mxu0 0.0
    %1834 = vmatpush1.msra.mxu0 %v1809
    %1835 = vmatprep.subr.mxu0 0.0
    %1836 = vmatpush1.msra.mxu0 %v1811
    %1837 = vmatprep.subr.mxu0 0.0
    %1838 = vmatpush1.msra.mxu0 %v1829
    %1839 = vmatprep.subr.mxu0 0.0
    %1840 = vmatpush1.msra.mxu0 0.0
    %1841 = vmatprep.subr.mxu0 0.0
    %1842 = vmatpush1.msra.mxu0 0.0
    %1843 = vmatprep.subr.mxu0 0.0
    %1844 = vmatpush1.msra.mxu0 0.0
    %1845 = vmatprep.subr.mxu0 0.0
    %1846 = vmatpush1.msra.mxu0 0.0
    %1847 = vmatprep.subr.mxu0 0.0
    %1848 = vmatpush1.msra.mxu0 0.0
    %1849 = vmatprep.subr.mxu0 0.0
    %1850 = vmatpush1.msra.mxu0 0.0
    %1851 = vmatprep.subr.mxu0 0.0
    %1852 = vmatpush1.msra.mxu0 0.0
    %1853 = vmatprep.subr.mxu0 0.0
    %1854 = vmatpush1.msra.mxu0 0.0
    %1855 = vmatprep.subr.mxu0 0.0
    %1856 = vmatpush1.msra.mxu0 0.0
    %1857 = vmatprep.subr.mxu0 0.0
    %1858 = vmatpush1.msra.mxu0 0.0
    %1859 = vmatprep.subr.mxu0 0.0
    %1860 = vmatpush1.msra.mxu0 0.0
    %1861 = vmatprep.subr.mxu0 0.0
    %1862 = vmatpush1.msra.mxu0 0.0
    %1863 = vmatprep.subr.mxu0 0.0
    %1864 = vmatpush1.msra.mxu0 0.0
    %1865 = vmatprep.subr.mxu0 0.0
    %1866 = vmatpush1.msra.mxu0 0.0
    %1867 = vmatprep.subr.mxu0 0.0
    %1868 = vmatpush1.msra.mxu0 0.0
    %1869 = vmatprep.subr.mxu0 0.0
    %1870 = vmatpush1.msra.mxu0 0.0
    %1871 = vmatprep.subr.mxu0 0.0
    %1872 = vmatpush1.msra.mxu0 0.0
    %1873 = vmatprep.subr.mxu0 0.0
    %1874 = vmatpush1.msra.mxu0 0.0
    %1875 = vmatprep.subr.mxu0 0.0
    %1876 = vmatpush1.msra.mxu0 0.0
    %1877 = vmatprep.subr.mxu0 0.0
    %1878 = vmatpush1.msra.mxu0 0.0
    %1879 = vmatprep.subr.mxu0 0.0
    %1880 = vmatpush1.msra.mxu0 0.0
    %1881 = vmatprep.subr.mxu0 0.0
    %1882 = vmatpush1.msra.mxu0 0.0
    %1883 = vmatprep.subr.mxu0 0.0
    %1884 = vmatpush1.msra.mxu0 0.0
    %1885 = vmatprep.subr.mxu0 0.0
    %1886 = vmatpush1.msra.mxu0 0.0
    %1887 = vmatprep.subr.mxu0 0.0
    %1888 = vmatpush1.msra.mxu0 0.0
    %1889 = vmatprep.subr.mxu0 0.0
    %1890 = vmatpush1.msra.mxu0 0.0
    %1891 = vmatprep.subr.mxu0 0.0
    %1892 = vmatpush1.msra.mxu0 0.0
    %1893 = vmatprep.subr.mxu0 0.0
    %1894 = vmatpush1.msra.mxu0 0.0
    %1895 = vmatprep.mubr.f32.mxu0 0.0
    %1896 = vmatmul.mubr.f32.gmra.mrb[0].mxu0 %v1818
    %v1897 = vpop.f32.mrb[0].mxu0
    %v1898 = vadd.f32 0.0, %v1897
    %v1899 = vpop.f32.mrb[0].mxu0
    %1900 = vmatprep.mubr.f32.mxu0 0.0
    %1901 = vmatmul.mubr.f32.gmra.mrb[0].mxu0 %v1821
    %v1902 = vpop.f32.mrb[0].mxu0
    %v1903 = vadd.f32 0.0, %v1902
    %v1904 = vpop.f32.mrb[0].mxu0
    %1905 = vmatprep.mubr.f32.mxu0 0.0
    %1906 = vmatmul.mubr.f32.gmra.mrb[0].mxu0 %v1824
    %v1907 = vpop.f32.mrb[0].mxu0
    %v1908 = vadd.f32 0.0, %v1907
    %v1909 = vpop.f32.mrb[0].mxu0
    %1910 = vmatprep.mubr.f32.mxu0 0.0
    %1911 = vmatmul.mubr.f32.gmra.mrb[0].mxu0 %v1827
    %v1912 = vpop.f32.mrb[0].mxu0
    %v1913 = vadd.f32 0.0, %v1912
    %v1914 = vpop.f32.mrb[0].mxu0
    %1915 = vdwg.mxu0
    %v1916 = vadd.f32 %v1783, %v1898
    %v1917 = vadd.f32 %v1788, %v1903
    %v1918 = vadd.f32 %v1793, %v1908
    %v1919 = vadd.f32 %v1798, %v1913
    %s1920 = scalar_lea.vmem [#allocation2], 96
    %v1921 = vld [vmem:[%s1920] sm:$0xff]
    %v1922 = vld [vmem:[%s1920 + $0x8] sm:$0xff]
    %v1923 = vld [vmem:[%s1920 + $0x10] sm:$0xff]
    %v1924 = vld [vmem:[%s1920 + $0x18] sm:$0x3]
    %1925 = vrot.lane.b32.xlu0 %v1378, 68
    %v1926 = vpop.permute.xlu0 %1925
    %1927 = vrot.lane.b32.xlu0 %v1384, 68
    %v1928 = vpop.permute.xlu0 %1927
    %1929 = vrot.lane.b32.xlu0 %v1390, 68
    %v1930 = vpop.permute.xlu0 %1929
    %1931 = vrot.lane.b32.xlu0 %v1396, 68
    %v1932 = vpop.permute.xlu0 %1931
    %v1937 = vsel %vm1602, %v1921, 0
    %v1940 = vsel %vm1602, %v1922, 0
    %v1943 = vsel %vm1602, %v1923, 0
    %v1946 = vsel %vm1602, %v1924, 0
    %v1948 = vsel %vm323, %v1932, 0
    %1950 = vmatprep.subr.mxu0 0.0
    %1951 = vmatpush1.msra.mxu0 %v1926
    %1952 = vmatprep.subr.mxu0 0.0
    %1953 = vmatpush1.msra.mxu0 %v1928
    %1954 = vmatprep.subr.mxu0 0.0
    %1955 = vmatpush1.msra.mxu0 %v1930
    %1956 = vmatprep.subr.mxu0 0.0
    %1957 = vmatpush1.msra.mxu0 %v1948
    %1958 = vmatprep.subr.mxu0 0.0
    %1959 = vmatpush1.msra.mxu0 0.0
    %1960 = vmatprep.subr.mxu0 0.0
    %1961 = vmatpush1.msra.mxu0 0.0
    %1962 = vmatprep.subr.mxu0 0.0
    %1963 = vmatpush1.msra.mxu0 0.0
    %1964 = vmatprep.subr.mxu0 0.0
    %1965 = vmatpush1.msra.mxu0 0.0
    %1966 = vmatprep.subr.mxu0 0.0
    %1967 = vmatpush1.msra.mxu0 0.0
    %1968 = vmatprep.subr.mxu0 0.0
    %1969 = vmatpush1.msra.mxu0 0.0
    %1970 = vmatprep.subr.mxu0 0.0
    %1971 = vmatpush1.msra.mxu0 0.0
    %1972 = vmatprep.subr.mxu0 0.0
    %1973 = vmatpush1.msra.mxu0 0.0
    %1974 = vmatprep.subr.mxu0 0.0
    %1975 = vmatpush1.msra.mxu0 0.0
    %1976 = vmatprep.subr.mxu0 0.0
    %1977 = vmatpush1.msra.mxu0 0.0
    %1978 = vmatprep.subr.mxu0 0.0
    %1979 = vmatpush1.msra.mxu0 0.0
    %1980 = vmatprep.subr.mxu0 0.0
    %1981 = vmatpush1.msra.mxu0 0.0
    %1982 = vmatprep.subr.mxu0 0.0
    %1983 = vmatpush1.msra.mxu0 0.0
    %1984 = vmatprep.subr.mxu0 0.0
    %1985 = vmatpush1.msra.mxu0 0.0
    %1986 = vmatprep.subr.mxu0 0.0
    %1987 = vmatpush1.msra.mxu0 0.0
    %1988 = vmatprep.subr.mxu0 0.0
    %1989 = vmatpush1.msra.mxu0 0.0
    %1990 = vmatprep.subr.mxu0 0.0
    %1991 = vmatpush1.msra.mxu0 0.0
    %1992 = vmatprep.subr.mxu0 0.0
    %1993 = vmatpush1.msra.mxu0 0.0
    %1994 = vmatprep.subr.mxu0 0.0
    %1995 = vmatpush1.msra.mxu0 0.0
    %1996 = vmatprep.subr.mxu0 0.0
    %1997 = vmatpush1.msra.mxu0 0.0
    %1998 = vmatprep.subr.mxu0 0.0
    %1999 = vmatpush1.msra.mxu0 0.0
    %2000 = vmatprep.subr.mxu0 0.0
    %2001 = vmatpush1.msra.mxu0 0.0
    %2002 = vmatprep.subr.mxu0 0.0
    %2003 = vmatpush1.msra.mxu0 0.0
    %2004 = vmatprep.subr.mxu0 0.0
    %2005 = vmatpush1.msra.mxu0 0.0
    %2006 = vmatprep.subr.mxu0 0.0
    %2007 = vmatpush1.msra.mxu0 0.0
    %2008 = vmatprep.subr.mxu0 0.0
    %2009 = vmatpush1.msra.mxu0 0.0
    %2010 = vmatprep.subr.mxu0 0.0
    %2011 = vmatpush1.msra.mxu0 0.0
    %2012 = vmatprep.subr.mxu0 0.0
    %2013 = vmatpush1.msra.mxu0 0.0
    %2014 = vmatprep.mubr.f32.mxu0 0.0
    %2015 = vmatmul.mubr.f32.gmra.mrb[0].mxu0 %v1937
    %v2016 = vpop.f32.mrb[0].mxu0
    %v2017 = vadd.f32 0.0, %v2016
    %v2018 = vpop.f32.mrb[0].mxu0
    %2019 = vmatprep.mubr.f32.mxu0 0.0
    %2020 = vmatmul.mubr.f32.gmra.mrb[0].mxu0 %v1940
    %v2021 = vpop.f32.mrb[0].mxu0
    %v2022 = vadd.f32 0.0, %v2021
    %v2023 = vpop.f32.mrb[0].mxu0
    %2024 = vmatprep.mubr.f32.mxu0 0.0
    %2025 = vmatmul.mubr.f32.gmra.mrb[0].mxu0 %v1943
    %v2026 = vpop.f32.mrb[0].mxu0
    %v2027 = vadd.f32 0.0, %v2026
    %v2028 = vpop.f32.mrb[0].mxu0
    %2029 = vmatprep.mubr.f32.mxu0 0.0
    %2030 = vmatmul.mubr.f32.gmra.mrb[0].mxu0 %v1946
    %v2031 = vpop.f32.mrb[0].mxu0
    %v2032 = vadd.f32 0.0, %v2031
    %v2033 = vpop.f32.mrb[0].mxu0
    %2034 = vdwg.mxu0
    %v2035 = vadd.f32 %v1916, %v2017
    %v2036 = vadd.f32 %v1917, %v2022
    %v2037 = vadd.f32 %v1918, %v2027
    %v2038 = vadd.f32 %v1919, %v2032
    %s2039 = scalar_lea.vmem [#allocation2], 128
    %v2040 = vld [vmem:[%s2039] sm:$0xff]
    %v2041 = vld [vmem:[%s2039 + $0x8] sm:$0xff]
    %v2042 = vld [vmem:[%s2039 + $0x10] sm:$0xff]
    %v2043 = vld [vmem:[%s2039 + $0x18] sm:$0x3]
    %2044 = vrot.lane.b32.xlu0 %v1378, 48
    %v2045 = vpop.permute.xlu0 %2044
    %2046 = vrot.lane.b32.xlu0 %v1384, 48
    %v2047 = vpop.permute.xlu0 %2046
    %2048 = vrot.lane.b32.xlu0 %v1390, 48
    %v2049 = vpop.permute.xlu0 %2048
    %2050 = vrot.lane.b32.xlu0 %v1396, 48
    %v2051 = vpop.permute.xlu0 %2050
    %v2056 = vsel %vm1602, %v2040, 0
    %v2059 = vsel %vm1602, %v2041, 0
    %v2062 = vsel %vm1602, %v2042, 0
    %v2065 = vsel %vm1602, %v2043, 0
    %v2067 = vsel %vm323, %v2051, 0
    %2069 = vmatprep.subr.mxu0 0.0
    %2070 = vmatpush1.msra.mxu0 %v2045
    %2071 = vmatprep.subr.mxu0 0.0
    %2072 = vmatpush1.msra.mxu0 %v2047
    %2073 = vmatprep.subr.mxu0 0.0
    %2074 = vmatpush1.msra.mxu0 %v2049
    %2075 = vmatprep.subr.mxu0 0.0
    %2076 = vmatpush1.msra.mxu0 %v2067
    %2077 = vmatprep.subr.mxu0 0.0
    %2078 = vmatpush1.msra.mxu0 0.0
    %2079 = vmatprep.subr.mxu0 0.0
    %2080 = vmatpush1.msra.mxu0 0.0
    %2081 = vmatprep.subr.mxu0 0.0
    %2082 = vmatpush1.msra.mxu0 0.0
    %2083 = vmatprep.subr.mxu0 0.0
    %2084 = vmatpush1.msra.mxu0 0.0
    %2085 = vmatprep.subr.mxu0 0.0
    %2086 = vmatpush1.msra.mxu0 0.0
    %2087 = vmatprep.subr.mxu0 0.0
    %2088 = vmatpush1.msra.mxu0 0.0
    %2089 = vmatprep.subr.mxu0 0.0
    %2090 = vmatpush1.msra.mxu0 0.0
    %2091 = vmatprep.subr.mxu0 0.0
    %2092 = vmatpush1.msra.mxu0 0.0
    %2093 = vmatprep.subr.mxu0 0.0
    %2094 = vmatpush1.msra.mxu0 0.0
    %2095 = vmatprep.subr.mxu0 0.0
    %2096 = vmatpush1.msra.mxu0 0.0
    %2097 = vmatprep.subr.mxu0 0.0
    %2098 = vmatpush1.msra.mxu0 0.0
    %2099 = vmatprep.subr.mxu0 0.0
    %2100 = vmatpush1.msra.mxu0 0.0
    %2101 = vmatprep.subr.mxu0 0.0
    %2102 = vmatpush1.msra.mxu0 0.0
    %2103 = vmatprep.subr.mxu0 0.0
    %2104 = vmatpush1.msra.mxu0 0.0
    %2105 = vmatprep.subr.mxu0 0.0
    %2106 = vmatpush1.msra.mxu0 0.0
    %2107 = vmatprep.subr.mxu0 0.0
    %2108 = vmatpush1.msra.mxu0 0.0
    %2109 = vmatprep.subr.mxu0 0.0
    %2110 = vmatpush1.msra.mxu0 0.0
    %2111 = vmatprep.subr.mxu0 0.0
    %2112 = vmatpush1.msra.mxu0 0.0
    %2113 = vmatprep.subr.mxu0 0.0
    %2114 = vmatpush1.msra.mxu0 0.0
    %2115 = vmatprep.subr.mxu0 0.0
    %2116 = vmatpush1.msra.mxu0 0.0
    %2117 = vmatprep.subr.mxu0 0.0
    %2118 = vmatpush1.msra.mxu0 0.0
    %2119 = vmatprep.subr.mxu0 0.0
    %2120 = vmatpush1.msra.mxu0 0.0
    %2121 = vmatprep.subr.mxu0 0.0
    %2122 = vmatpush1.msra.mxu0 0.0
    %2123 = vmatprep.subr.mxu0 0.0
    %2124 = vmatpush1.msra.mxu0 0.0
    %2125 = vmatprep.subr.mxu0 0.0
    %2126 = vmatpush1.msra.mxu0 0.0
    %2127 = vmatprep.subr.mxu0 0.0
    %2128 = vmatpush1.msra.mxu0 0.0
    %2129 = vmatprep.subr.mxu0 0.0
    %2130 = vmatpush1.msra.mxu0 0.0
    %2131 = vmatprep.subr.mxu0 0.0
    %2132 = vmatpush1.msra.mxu0 0.0
    %2133 = vmatprep.mubr.f32.mxu0 0.0
    %2134 = vmatmul.mubr.f32.gmra.mrb[0].mxu0 %v2056
    %v2135 = vpop.f32.mrb[0].mxu0
    %v2136 = vadd.f32 0.0, %v2135
    %v2137 = vpop.f32.mrb[0].mxu0
    %2138 = vmatprep.mubr.f32.mxu0 0.0
    %2139 = vmatmul.mubr.f32.gmra.mrb[0].mxu0 %v2059
    %v2140 = vpop.f32.mrb[0].mxu0
    %v2141 = vadd.f32 0.0, %v2140
    %v2142 = vpop.f32.mrb[0].mxu0
    %2143 = vmatprep.mubr.f32.mxu0 0.0
    %2144 = vmatmul.mubr.f32.gmra.mrb[0].mxu0 %v2062
    %v2145 = vpop.f32.mrb[0].mxu0
    %v2146 = vadd.f32 0.0, %v2145
    %v2147 = vpop.f32.mrb[0].mxu0
    %2148 = vmatprep.mubr.f32.mxu0 0.0
    %2149 = vmatmul.mubr.f32.gmra.mrb[0].mxu0 %v2065
    %v2150 = vpop.f32.mrb[0].mxu0
    %v2151 = vadd.f32 0.0, %v2150
    %v2152 = vpop.f32.mrb[0].mxu0
    %2153 = vdwg.mxu0
    %v2154 = vadd.f32 %v2035, %v2136
    %v2155 = vadd.f32 %v2036, %v2141
    %v2156 = vadd.f32 %v2037, %v2146
    %v2157 = vadd.f32 %v2038, %v2151
    %s2158 = scalar_lea.vmem [#allocation2], 160
    %v2159 = vld [vmem:[%s2158] sm:$0xff]
    %v2160 = vld [vmem:[%s2158 + $0x8] sm:$0xff]
    %v2161 = vld [vmem:[%s2158 + $0x10] sm:$0xff]
    %v2162 = vld [vmem:[%s2158 + $0x18] sm:$0x3]
    %2163 = vrot.lane.b32.xlu0 %v1378, 28
    %v2164 = vpop.permute.xlu0 %2163
    %2165 = vrot.lane.b32.xlu0 %v1384, 28
    %v2166 = vpop.permute.xlu0 %2165
    %2167 = vrot.lane.b32.xlu0 %v1390, 28
    %v2168 = vpop.permute.xlu0 %2167
    %2169 = vrot.lane.b32.xlu0 %v1396, 28
    %v2170 = vpop.permute.xlu0 %2169
    %v2175 = vsel %vm1602, %v2159, 0
    %v2178 = vsel %vm1602, %v2160, 0
    %v2181 = vsel %vm1602, %v2161, 0
    %v2184 = vsel %vm1602, %v2162, 0
    %v2186 = vsel %vm323, %v2170, 0
    %2188 = vmatprep.subr.mxu0 0.0
    %2189 = vmatpush1.msra.mxu0 %v2164
    %2190 = vmatprep.subr.mxu0 0.0
    %2191 = vmatpush1.msra.mxu0 %v2166
    %2192 = vmatprep.subr.mxu0 0.0
    %2193 = vmatpush1.msra.mxu0 %v2168
    %2194 = vmatprep.subr.mxu0 0.0
    %2195 = vmatpush1.msra.mxu0 %v2186
    %2196 = vmatprep.subr.mxu0 0.0
    %2197 = vmatpush1.msra.mxu0 0.0
    %2198 = vmatprep.subr.mxu0 0.0
    %2199 = vmatpush1.msra.mxu0 0.0
    %2200 = vmatprep.subr.mxu0 0.0
    %2201 = vmatpush1.msra.mxu0 0.0
    %2202 = vmatprep.subr.mxu0 0.0
    %2203 = vmatpush1.msra.mxu0 0.0
    %2204 = vmatprep.subr.mxu0 0.0
    %2205 = vmatpush1.msra.mxu0 0.0
    %2206 = vmatprep.subr.mxu0 0.0
    %2207 = vmatpush1.msra.mxu0 0.0
    %2208 = vmatprep.subr.mxu0 0.0
    %2209 = vmatpush1.msra.mxu0 0.0
    %2210 = vmatprep.subr.mxu0 0.0
    %2211 = vmatpush1.msra.mxu0 0.0
    %2212 = vmatprep.subr.mxu0 0.0
    %2213 = vmatpush1.msra.mxu0 0.0
    %2214 = vmatprep.subr.mxu0 0.0
    %2215 = vmatpush1.msra.mxu0 0.0
    %2216 = vmatprep.subr.mxu0 0.0
    %2217 = vmatpush1.msra.mxu0 0.0
    %2218 = vmatprep.subr.mxu0 0.0
    %2219 = vmatpush1.msra.mxu0 0.0
    %2220 = vmatprep.subr.mxu0 0.0
    %2221 = vmatpush1.msra.mxu0 0.0
    %2222 = vmatprep.subr.mxu0 0.0
    %2223 = vmatpush1.msra.mxu0 0.0
    %2224 = vmatprep.subr.mxu0 0.0
    %2225 = vmatpush1.msra.mxu0 0.0
    %2226 = vmatprep.subr.mxu0 0.0
    %2227 = vmatpush1.msra.mxu0 0.0
    %2228 = vmatprep.subr.mxu0 0.0
    %2229 = vmatpush1.msra.mxu0 0.0
    %2230 = vmatprep.subr.mxu0 0.0
    %2231 = vmatpush1.msra.mxu0 0.0
    %2232 = vmatprep.subr.mxu0 0.0
    %2233 = vmatpush1.msra.mxu0 0.0
    %2234 = vmatprep.subr.mxu0 0.0
    %2235 = vmatpush1.msra.mxu0 0.0
    %2236 = vmatprep.subr.mxu0 0.0
    %2237 = vmatpush1.msra.mxu0 0.0
    %2238 = vmatprep.subr.mxu0 0.0
    %2239 = vmatpush1.msra.mxu0 0.0
    %2240 = vmatprep.subr.mxu0 0.0
    %2241 = vmatpush1.msra.mxu0 0.0
    %2242 = vmatprep.subr.mxu0 0.0
    %2243 = vmatpush1.msra.mxu0 0.0
    %2244 = vmatprep.subr.mxu0 0.0
    %2245 = vmatpush1.msra.mxu0 0.0
    %2246 = vmatprep.subr.mxu0 0.0
    %2247 = vmatpush1.msra.mxu0 0.0
    %2248 = vmatprep.subr.mxu0 0.0
    %2249 = vmatpush1.msra.mxu0 0.0
    %2250 = vmatprep.subr.mxu0 0.0
    %2251 = vmatpush1.msra.mxu0 0.0
    %2252 = vmatprep.mubr.f32.mxu0 0.0
    %2253 = vmatmul.mubr.f32.gmra.mrb[0].mxu0 %v2175
    %v2254 = vpop.f32.mrb[0].mxu0
    %v2255 = vadd.f32 0.0, %v2254
    %v2256 = vpop.f32.mrb[0].mxu0
    %2257 = vmatprep.mubr.f32.mxu0 0.0
    %2258 = vmatmul.mubr.f32.gmra.mrb[0].mxu0 %v2178
    %v2259 = vpop.f32.mrb[0].mxu0
    %v2260 = vadd.f32 0.0, %v2259
    %v2261 = vpop.f32.mrb[0].mxu0
    %2262 = vmatprep.mubr.f32.mxu0 0.0
    %2263 = vmatmul.mubr.f32.gmra.mrb[0].mxu0 %v2181
    %v2264 = vpop.f32.mrb[0].mxu0
    %v2265 = vadd.f32 0.0, %v2264
    %v2266 = vpop.f32.mrb[0].mxu0
    %2267 = vmatprep.mubr.f32.mxu0 0.0
    %2268 = vmatmul.mubr.f32.gmra.mrb[0].mxu0 %v2184
    %v2269 = vpop.f32.mrb[0].mxu0
    %v2270 = vadd.f32 0.0, %v2269
    %v2271 = vpop.f32.mrb[0].mxu0
    %2272 = vdwg.mxu0
    %v2273 = vadd.f32 %v2154, %v2255
    %v2274 = vadd.f32 %v2155, %v2260
    %v2275 = vadd.f32 %v2156, %v2265
    %v2276 = vadd.f32 %v2157, %v2270
    %s2277 = scalar_lea.vmem [#allocation2], 192
    %v2278 = vld [vmem:[%s2277] sm:$0xff]
    %v2279 = vld [vmem:[%s2277 + $0x8] sm:$0xff]
    %v2280 = vld [vmem:[%s2277 + $0x10] sm:$0xff]
    %v2281 = vld [vmem:[%s2277 + $0x18] sm:$0x3]
    %2286 = vrot.lane.b32.xlu0 %v1378, 8
    %v2287 = vpop.permute.xlu0 %2286
    %2288 = vrot.lane.b32.xlu0 %v1380, 8
    %v2289 = vpop.permute.xlu0 %2288
    %2290 = vrot.lane.b32.xlu0 %v1384, 8
    %v2291 = vpop.permute.xlu0 %2290
    %2292 = vrot.lane.b32.xlu0 %v1386, 8
    %v2293 = vpop.permute.xlu0 %2292
    %2294 = vrot.lane.b32.xlu0 %v1390, 8
    %v2295 = vpop.permute.xlu0 %2294
    %2296 = vrot.lane.b32.xlu0 %v1392, 8
    %v2297 = vpop.permute.xlu0 %2296
    %2298 = vrot.lane.b32.xlu0 %v1396, 8
    %v2299 = vpop.permute.xlu0 %2298
    %2300 = vrot.lane.b32.xlu0 %v1398, 8
    %v2301 = vpop.permute.xlu0 %2300
    %vm2302 = vcmask 64512
    %v2303 = vsel %vm2302, %v2287, %v2289
    %v2304 = vsel %vm2302, %v2291, %v2293
    %v2305 = vsel %vm2302, %v2295, %v2297
    %v2306 = vsel %vm2302, %v2299, %v2301
    %v2311 = vsel %vm1602, %v2278, 0
    %v2314 = vsel %vm1602, %v2279, 0
    %v2317 = vsel %vm1602, %v2280, 0
    %v2320 = vsel %vm1602, %v2281, 0
    %v2322 = vsel %vm323, %v2306, 0
    %2324 = vmatprep.subr.mxu0 0.0
    %2325 = vmatpush1.msra.mxu0 %v2303
    %2326 = vmatprep.subr.mxu0 0.0
    %2327 = vmatpush1.msra.mxu0 %v2304
    %2328 = vmatprep.subr.mxu0 0.0
    %2329 = vmatpush1.msra.mxu0 %v2305
    %2330 = vmatprep.subr.mxu0 0.0
    %2331 = vmatpush1.msra.mxu0 %v2322
    %2332 = vmatprep.subr.mxu0 0.0
    %2333 = vmatpush1.msra.mxu0 0.0
    %2334 = vmatprep.subr.mxu0 0.0
    %2335 = vmatpush1.msra.mxu0 0.0
    %2336 = vmatprep.subr.mxu0 0.0
    %2337 = vmatpush1.msra.mxu0 0.0
    %2338 = vmatprep.subr.mxu0 0.0
    %2339 = vmatpush1.msra.mxu0 0.0
    %2340 = vmatprep.subr.mxu0 0.0
    %2341 = vmatpush1.msra.mxu0 0.0
    %2342 = vmatprep.subr.mxu0 0.0
    %2343 = vmatpush1.msra.mxu0 0.0
    %2344 = vmatprep.subr.mxu0 0.0
    %2345 = vmatpush1.msra.mxu0 0.0
    %2346 = vmatprep.subr.mxu0 0.0
    %2347 = vmatpush1.msra.mxu0 0.0
    %2348 = vmatprep.subr.mxu0 0.0
    %2349 = vmatpush1.msra.mxu0 0.0
    %2350 = vmatprep.subr.mxu0 0.0
    %2351 = vmatpush1.msra.mxu0 0.0
    %2352 = vmatprep.subr.mxu0 0.0
    %2353 = vmatpush1.msra.mxu0 0.0
    %2354 = vmatprep.subr.mxu0 0.0
    %2355 = vmatpush1.msra.mxu0 0.0
    %2356 = vmatprep.subr.mxu0 0.0
    %2357 = vmatpush1.msra.mxu0 0.0
    %2358 = vmatprep.subr.mxu0 0.0
    %2359 = vmatpush1.msra.mxu0 0.0
    %2360 = vmatprep.subr.mxu0 0.0
    %2361 = vmatpush1.msra.mxu0 0.0
    %2362 = vmatprep.subr.mxu0 0.0
    %2363 = vmatpush1.msra.mxu0 0.0
    %2364 = vmatprep.subr.mxu0 0.0
    %2365 = vmatpush1.msra.mxu0 0.0
    %2366 = vmatprep.subr.mxu0 0.0
    %2367 = vmatpush1.msra.mxu0 0.0
    %2368 = vmatprep.subr.mxu0 0.0
    %2369 = vmatpush1.msra.mxu0 0.0
    %2370 = vmatprep.subr.mxu0 0.0
    %2371 = vmatpush1.msra.mxu0 0.0
    %2372 = vmatprep.subr.mxu0 0.0
    %2373 = vmatpush1.msra.mxu0 0.0
    %2374 = vmatprep.subr.mxu0 0.0
    %2375 = vmatpush1.msra.mxu0 0.0
    %2376 = vmatprep.subr.mxu0 0.0
    %2377 = vmatpush1.msra.mxu0 0.0
    %2378 = vmatprep.subr.mxu0 0.0
    %2379 = vmatpush1.msra.mxu0 0.0
    %2380 = vmatprep.subr.mxu0 0.0
    %2381 = vmatpush1.msra.mxu0 0.0
    %2382 = vmatprep.subr.mxu0 0.0
    %2383 = vmatpush1.msra.mxu0 0.0
    %2384 = vmatprep.subr.mxu0 0.0
    %2385 = vmatpush1.msra.mxu0 0.0
    %2386 = vmatprep.subr.mxu0 0.0
    %2387 = vmatpush1.msra.mxu0 0.0
    %2388 = vmatprep.mubr.f32.mxu0 0.0
    %2389 = vmatmul.mubr.f32.gmra.mrb[0].mxu0 %v2311
    %v2390 = vpop.f32.mrb[0].mxu0
    %v2391 = vadd.f32 0.0, %v2390
    %v2392 = vpop.f32.mrb[0].mxu0
    %2393 = vmatprep.mubr.f32.mxu0 0.0
    %2394 = vmatmul.mubr.f32.gmra.mrb[0].mxu0 %v2314
    %v2395 = vpop.f32.mrb[0].mxu0
    %v2396 = vadd.f32 0.0, %v2395
    %v2397 = vpop.f32.mrb[0].mxu0
    %2398 = vmatprep.mubr.f32.mxu0 0.0
    %2399 = vmatmul.mubr.f32.gmra.mrb[0].mxu0 %v2317
    %v2400 = vpop.f32.mrb[0].mxu0
    %v2401 = vadd.f32 0.0, %v2400
    %v2402 = vpop.f32.mrb[0].mxu0
    %2403 = vmatprep.mubr.f32.mxu0 0.0
    %2404 = vmatmul.mubr.f32.gmra.mrb[0].mxu0 %v2320
    %v2405 = vpop.f32.mrb[0].mxu0
    %v2406 = vadd.f32 0.0, %v2405
    %v2407 = vpop.f32.mrb[0].mxu0
    %2408 = vdwg.mxu0
    %v2409 = vadd.f32 %v2273, %v2391
    %v2410 = vadd.f32 %v2274, %v2396
    %v2411 = vadd.f32 %v2275, %v2401
    %v2412 = vadd.f32 %v2276, %v2406
    %s2413 = scalar_lea.vmem [#allocation2], 224
    %v2414 = vld [vmem:[%s2413] sm:$0xff]
    %v2415 = vld [vmem:[%s2413 + $0x8] sm:$0xff]
    %v2416 = vld [vmem:[%s2413 + $0x10] sm:$0xff]
    %v2417 = vld [vmem:[%s2413 + $0x18] sm:$0x3]
    %2418 = vrot.lane.b32.xlu0 %v1380, 116
    %v2419 = vpop.permute.xlu0 %2418
    %2420 = vrot.lane.b32.xlu0 %v1386, 116
    %v2421 = vpop.permute.xlu0 %2420
    %2422 = vrot.lane.b32.xlu0 %v1392, 116
    %v2423 = vpop.permute.xlu0 %2422
    %2424 = vrot.lane.b32.xlu0 %v1398, 116
    %v2425 = vpop.permute.xlu0 %2424
    %v2430 = vsel %vm1602, %v2414, 0
    %v2433 = vsel %vm1602, %v2415, 0
    %v2436 = vsel %vm1602, %v2416, 0
    %v2439 = vsel %vm1602, %v2417, 0
    %v2441 = vsel %vm323, %v2425, 0
    %2443 = vmatprep.subr.mxu0 0.0
    %2444 = vmatpush1.msra.mxu0 %v2419
    %2445 = vmatprep.subr.mxu0 0.0
    %2446 = vmatpush1.msra.mxu0 %v2421
    %2447 = vmatprep.subr.mxu0 0.0
    %2448 = vmatpush1.msra.mxu0 %v2423
    %2449 = vmatprep.subr.mxu0 0.0
    %2450 = vmatpush1.msra.mxu0 %v2441
    %2451 = vmatprep.subr.mxu0 0.0
    %2452 = vmatpush1.msra.mxu0 0.0
    %2453 = vmatprep.subr.mxu0 0.0
    %2454 = vmatpush1.msra.mxu0 0.0
    %2455 = vmatprep.subr.mxu0 0.0
    %2456 = vmatpush1.msra.mxu0 0.0
    %2457 = vmatprep.subr.mxu0 0.0
    %2458 = vmatpush1.msra.mxu0 0.0
    %2459 = vmatprep.subr.mxu0 0.0
    %2460 = vmatpush1.msra.mxu0 0.0
    %2461 = vmatprep.subr.mxu0 0.0
    %2462 = vmatpush1.msra.mxu0 0.0
    %2463 = vmatprep.subr.mxu0 0.0
    %2464 = vmatpush1.msra.mxu0 0.0
    %2465 = vmatprep.subr.mxu0 0.0
    %2466 = vmatpush1.msra.mxu0 0.0
    %2467 = vmatprep.subr.mxu0 0.0
    %2468 = vmatpush1.msra.mxu0 0.0
    %2469 = vmatprep.subr.mxu0 0.0
    %2470 = vmatpush1.msra.mxu0 0.0
    %2471 = vmatprep.subr.mxu0 0.0
    %2472 = vmatpush1.msra.mxu0 0.0
    %2473 = vmatprep.subr.mxu0 0.0
    %2474 = vmatpush1.msra.mxu0 0.0
    %2475 = vmatprep.subr.mxu0 0.0
    %2476 = vmatpush1.msra.mxu0 0.0
    %2477 = vmatprep.subr.mxu0 0.0
    %2478 = vmatpush1.msra.mxu0 0.0
    %2479 = vmatprep.subr.mxu0 0.0
    %2480 = vmatpush1.msra.mxu0 0.0
    %2481 = vmatprep.subr.mxu0 0.0
    %2482 = vmatpush1.msra.mxu0 0.0
    %2483 = vmatprep.subr.mxu0 0.0
    %2484 = vmatpush1.msra.mxu0 0.0
    %2485 = vmatprep.subr.mxu0 0.0
    %2486 = vmatpush1.msra.mxu0 0.0
    %2487 = vmatprep.subr.mxu0 0.0
    %2488 = vmatpush1.msra.mxu0 0.0
    %2489 = vmatprep.subr.mxu0 0.0
    %2490 = vmatpush1.msra.mxu0 0.0
    %2491 = vmatprep.subr.mxu0 0.0
    %2492 = vmatpush1.msra.mxu0 0.0
    %2493 = vmatprep.subr.mxu0 0.0
    %2494 = vmatpush1.msra.mxu0 0.0
    %2495 = vmatprep.subr.mxu0 0.0
    %2496 = vmatpush1.msra.mxu0 0.0
    %2497 = vmatprep.subr.mxu0 0.0
    %2498 = vmatpush1.msra.mxu0 0.0
    %2499 = vmatprep.subr.mxu0 0.0
    %2500 = vmatpush1.msra.mxu0 0.0
    %2501 = vmatprep.subr.mxu0 0.0
    %2502 = vmatpush1.msra.mxu0 0.0
    %2503 = vmatprep.subr.mxu0 0.0
    %2504 = vmatpush1.msra.mxu0 0.0
    %2505 = vmatprep.subr.mxu0 0.0
    %2506 = vmatpush1.msra.mxu0 0.0
    %2507 = vmatprep.mubr.f32.mxu0 0.0
    %2508 = vmatmul.mubr.f32.gmra.mrb[0].mxu0 %v2430
    %v2509 = vpop.f32.mrb[0].mxu0
    %v2510 = vadd.f32 0.0, %v2509
    %v2511 = vpop.f32.mrb[0].mxu0
    %2512 = vmatprep.mubr.f32.mxu0 0.0
    %2513 = vmatmul.mubr.f32.gmra.mrb[0].mxu0 %v2433
    %v2514 = vpop.f32.mrb[0].mxu0
    %v2515 = vadd.f32 0.0, %v2514
    %v2516 = vpop.f32.mrb[0].mxu0
    %2517 = vmatprep.mubr.f32.mxu0 0.0
    %2518 = vmatmul.mubr.f32.gmra.mrb[0].mxu0 %v2436
    %v2519 = vpop.f32.mrb[0].mxu0
    %v2520 = vadd.f32 0.0, %v2519
    %v2521 = vpop.f32.mrb[0].mxu0
    %2522 = vmatprep.mubr.f32.mxu0 0.0
    %2523 = vmatmul.mubr.f32.gmra.mrb[0].mxu0 %v2439
    %v2524 = vpop.f32.mrb[0].mxu0
    %v2525 = vadd.f32 0.0, %v2524
    %v2526 = vpop.f32.mrb[0].mxu0
    %2527 = vdwg.mxu0
    %v2528 = vadd.f32 %v2409, %v2510
    %v2529 = vadd.f32 %v2410, %v2515
    %v2530 = vadd.f32 %v2411, %v2520
    %v2531 = vadd.f32 %v2412, %v2525
    %s2532 = scalar_lea.vmem [#allocation2], 256
    %v2533 = vld [vmem:[%s2532] sm:$0xff]
    %v2534 = vld [vmem:[%s2532 + $0x8] sm:$0xff]
    %v2535 = vld [vmem:[%s2532 + $0x10] sm:$0xff]
    %v2536 = vld [vmem:[%s2532 + $0x18] sm:$0x3]
    %2537 = vrot.lane.b32.xlu0 %v1380, 96
    %v2538 = vpop.permute.xlu0 %2537
    %2539 = vrot.lane.b32.xlu0 %v1386, 96
    %v2540 = vpop.permute.xlu0 %2539
    %2541 = vrot.lane.b32.xlu0 %v1392, 96
    %v2542 = vpop.permute.xlu0 %2541
    %2543 = vrot.lane.b32.xlu0 %v1398, 96
    %v2544 = vpop.permute.xlu0 %2543
    %v2549 = vsel %vm1602, %v2533, 0
    %v2552 = vsel %vm1602, %v2534, 0
    %v2555 = vsel %vm1602, %v2535, 0
    %v2558 = vsel %vm1602, %v2536, 0
    %v2560 = vsel %vm323, %v2544, 0
    %2562 = vmatprep.subr.mxu0 0.0
    %2563 = vmatpush1.msra.mxu0 %v2538
    %2564 = vmatprep.subr.mxu0 0.0
    %2565 = vmatpush1.msra.mxu0 %v2540
    %2566 = vmatprep.subr.mxu0 0.0
    %2567 = vmatpush1.msra.mxu0 %v2542
    %2568 = vmatprep.subr.mxu0 0.0
    %2569 = vmatpush1.msra.mxu0 %v2560
    %2570 = vmatprep.subr.mxu0 0.0
    %2571 = vmatpush1.msra.mxu0 0.0
    %2572 = vmatprep.subr.mxu0 0.0
    %2573 = vmatpush1.msra.mxu0 0.0
    %2574 = vmatprep.subr.mxu0 0.0
    %2575 = vmatpush1.msra.mxu0 0.0
    %2576 = vmatprep.subr.mxu0 0.0
    %2577 = vmatpush1.msra.mxu0 0.0
    %2578 = vmatprep.subr.mxu0 0.0
    %2579 = vmatpush1.msra.mxu0 0.0
    %2580 = vmatprep.subr.mxu0 0.0
    %2581 = vmatpush1.msra.mxu0 0.0
    %2582 = vmatprep.subr.mxu0 0.0
    %2583 = vmatpush1.msra.mxu0 0.0
    %2584 = vmatprep.subr.mxu0 0.0
    %2585 = vmatpush1.msra.mxu0 0.0
    %2586 = vmatprep.subr.mxu0 0.0
    %2587 = vmatpush1.msra.mxu0 0.0
    %2588 = vmatprep.subr.mxu0 0.0
    %2589 = vmatpush1.msra.mxu0 0.0
    %2590 = vmatprep.subr.mxu0 0.0
    %2591 = vmatpush1.msra.mxu0 0.0
    %2592 = vmatprep.subr.mxu0 0.0
    %2593 = vmatpush1.msra.mxu0 0.0
    %2594 = vmatprep.subr.mxu0 0.0
    %2595 = vmatpush1.msra.mxu0 0.0
    %2596 = vmatprep.subr.mxu0 0.0
    %2597 = vmatpush1.msra.mxu0 0.0
    %2598 = vmatprep.subr.mxu0 0.0
    %2599 = vmatpush1.msra.mxu0 0.0
    %2600 = vmatprep.subr.mxu0 0.0
    %2601 = vmatpush1.msra.mxu0 0.0
    %2602 = vmatprep.subr.mxu0 0.0
    %2603 = vmatpush1.msra.mxu0 0.0
    %2604 = vmatprep.subr.mxu0 0.0
    %2605 = vmatpush1.msra.mxu0 0.0
    %2606 = vmatprep.subr.mxu0 0.0
    %2607 = vmatpush1.msra.mxu0 0.0
    %2608 = vmatprep.subr.mxu0 0.0
    %2609 = vmatpush1.msra.mxu0 0.0
    %2610 = vmatprep.subr.mxu0 0.0
    %2611 = vmatpush1.msra.mxu0 0.0
    %2612 = vmatprep.subr.mxu0 0.0
    %2613 = vmatpush1.msra.mxu0 0.0
    %2614 = vmatprep.subr.mxu0 0.0
    %2615 = vmatpush1.msra.mxu0 0.0
    %2616 = vmatprep.subr.mxu0 0.0
    %2617 = vmatpush1.msra.mxu0 0.0
    %2618 = vmatprep.subr.mxu0 0.0
    %2619 = vmatpush1.msra.mxu0 0.0
    %2620 = vmatprep.subr.mxu0 0.0
    %2621 = vmatpush1.msra.mxu0 0.0
    %2622 = vmatprep.subr.mxu0 0.0
    %2623 = vmatpush1.msra.mxu0 0.0
    %2624 = vmatprep.subr.mxu0 0.0
    %2625 = vmatpush1.msra.mxu0 0.0
    %2626 = vmatprep.mubr.f32.mxu0 0.0
    %2627 = vmatmul.mubr.f32.gmra.mrb[0].mxu0 %v2549
    %v2628 = vpop.f32.mrb[0].mxu0
    %v2629 = vadd.f32 0.0, %v2628
    %v2630 = vpop.f32.mrb[0].mxu0
    %2631 = vmatprep.mubr.f32.mxu0 0.0
    %2632 = vmatmul.mubr.f32.gmra.mrb[0].mxu0 %v2552
    %v2633 = vpop.f32.mrb[0].mxu0
    %v2634 = vadd.f32 0.0, %v2633
    %v2635 = vpop.f32.mrb[0].mxu0
    %2636 = vmatprep.mubr.f32.mxu0 0.0
    %2637 = vmatmul.mubr.f32.gmra.mrb[0].mxu0 %v2555
    %v2638 = vpop.f32.mrb[0].mxu0
    %v2639 = vadd.f32 0.0, %v2638
    %v2640 = vpop.f32.mrb[0].mxu0
    %2641 = vmatprep.mubr.f32.mxu0 0.0
    %2642 = vmatmul.mubr.f32.gmra.mrb[0].mxu0 %v2558
    %v2643 = vpop.f32.mrb[0].mxu0
    %v2644 = vadd.f32 0.0, %v2643
    %v2645 = vpop.f32.mrb[0].mxu0
    %2646 = vdwg.mxu0
    %v2647 = vadd.f32 %v2528, %v2629
    %v2648 = vadd.f32 %v2529, %v2634
    %v2649 = vadd.f32 %v2530, %v2639
    %v2650 = vadd.f32 %v2531, %v2644
    %s2651 = scalar_lea.vmem [#allocation2], 288
    %v2652 = vld [vmem:[%s2651] sm:$0xff]
    %v2653 = vld [vmem:[%s2651 + $0x8] sm:$0xff]
    %v2654 = vld [vmem:[%s2651 + $0x10] sm:$0xff]
    %v2655 = vld [vmem:[%s2651 + $0x18] sm:$0x3]
    %2656 = vrot.lane.b32.xlu0 %v1380, 76
    %v2657 = vpop.permute.xlu0 %2656
    %2658 = vrot.lane.b32.xlu0 %v1386, 76
    %v2659 = vpop.permute.xlu0 %2658
    %2660 = vrot.lane.b32.xlu0 %v1392, 76
    %v2661 = vpop.permute.xlu0 %2660
    %2662 = vrot.lane.b32.xlu0 %v1398, 76
    %v2663 = vpop.permute.xlu0 %2662
    %v2668 = vsel %vm1602, %v2652, 0
    %v2671 = vsel %vm1602, %v2653, 0
    %v2674 = vsel %vm1602, %v2654, 0
    %v2677 = vsel %vm1602, %v2655, 0
    %v2679 = vsel %vm323, %v2663, 0
    %2681 = vmatprep.subr.mxu0 0.0
    %2682 = vmatpush1.msra.mxu0 %v2657
    %2683 = vmatprep.subr.mxu0 0.0
    %2684 = vmatpush1.msra.mxu0 %v2659
    %2685 = vmatprep.subr.mxu0 0.0
    %2686 = vmatpush1.msra.mxu0 %v2661
    %2687 = vmatprep.subr.mxu0 0.0
    %2688 = vmatpush1.msra.mxu0 %v2679
    %2689 = vmatprep.subr.mxu0 0.0
    %2690 = vmatpush1.msra.mxu0 0.0
    %2691 = vmatprep.subr.mxu0 0.0
    %2692 = vmatpush1.msra.mxu0 0.0
    %2693 = vmatprep.subr.mxu0 0.0
    %2694 = vmatpush1.msra.mxu0 0.0
    %2695 = vmatprep.subr.mxu0 0.0
    %2696 = vmatpush1.msra.mxu0 0.0
    %2697 = vmatprep.subr.mxu0 0.0
    %2698 = vmatpush1.msra.mxu0 0.0
    %2699 = vmatprep.subr.mxu0 0.0
    %2700 = vmatpush1.msra.mxu0 0.0
    %2701 = vmatprep.subr.mxu0 0.0
    %2702 = vmatpush1.msra.mxu0 0.0
    %2703 = vmatprep.subr.mxu0 0.0
    %2704 = vmatpush1.msra.mxu0 0.0
    %2705 = vmatprep.subr.mxu0 0.0
    %2706 = vmatpush1.msra.mxu0 0.0
    %2707 = vmatprep.subr.mxu0 0.0
    %2708 = vmatpush1.msra.mxu0 0.0
    %2709 = vmatprep.subr.mxu0 0.0
    %2710 = vmatpush1.msra.mxu0 0.0
    %2711 = vmatprep.subr.mxu0 0.0
    %2712 = vmatpush1.msra.mxu0 0.0
    %2713 = vmatprep.subr.mxu0 0.0
    %2714 = vmatpush1.msra.mxu0 0.0
    %2715 = vmatprep.subr.mxu0 0.0
    %2716 = vmatpush1.msra.mxu0 0.0
    %2717 = vmatprep.subr.mxu0 0.0
    %2718 = vmatpush1.msra.mxu0 0.0
    %2719 = vmatprep.subr.mxu0 0.0
    %2720 = vmatpush1.msra.mxu0 0.0
    %2721 = vmatprep.subr.mxu0 0.0
    %2722 = vmatpush1.msra.mxu0 0.0
    %2723 = vmatprep.subr.mxu0 0.0
    %2724 = vmatpush1.msra.mxu0 0.0
    %2725 = vmatprep.subr.mxu0 0.0
    %2726 = vmatpush1.msra.mxu0 0.0
    %2727 = vmatprep.subr.mxu0 0.0
    %2728 = vmatpush1.msra.mxu0 0.0
    %2729 = vmatprep.subr.mxu0 0.0
    %2730 = vmatpush1.msra.mxu0 0.0
    %2731 = vmatprep.subr.mxu0 0.0
    %2732 = vmatpush1.msra.mxu0 0.0
    %2733 = vmatprep.subr.mxu0 0.0
    %2734 = vmatpush1.msra.mxu0 0.0
    %2735 = vmatprep.subr.mxu0 0.0
    %2736 = vmatpush1.msra.mxu0 0.0
    %2737 = vmatprep.subr.mxu0 0.0
    %2738 = vmatpush1.msra.mxu0 0.0
    %2739 = vmatprep.subr.mxu0 0.0
    %2740 = vmatpush1.msra.mxu0 0.0
    %2741 = vmatprep.subr.mxu0 0.0
    %2742 = vmatpush1.msra.mxu0 0.0
    %2743 = vmatprep.subr.mxu0 0.0
    %2744 = vmatpush1.msra.mxu0 0.0
    %2745 = vmatprep.mubr.f32.mxu0 0.0
    %2746 = vmatmul.mubr.f32.gmra.mrb[0].mxu0 %v2668
    %v2747 = vpop.f32.mrb[0].mxu0
    %v2748 = vadd.f32 0.0, %v2747
    %v2749 = vpop.f32.mrb[0].mxu0
    %2750 = vmatprep.mubr.f32.mxu0 0.0
    %2751 = vmatmul.mubr.f32.gmra.mrb[0].mxu0 %v2671
    %v2752 = vpop.f32.mrb[0].mxu0
    %v2753 = vadd.f32 0.0, %v2752
    %v2754 = vpop.f32.mrb[0].mxu0
    %2755 = vmatprep.mubr.f32.mxu0 0.0
    %2756 = vmatmul.mubr.f32.gmra.mrb[0].mxu0 %v2674
    %v2757 = vpop.f32.mrb[0].mxu0
    %v2758 = vadd.f32 0.0, %v2757
    %v2759 = vpop.f32.mrb[0].mxu0
    %2760 = vmatprep.mubr.f32.mxu0 0.0
    %2761 = vmatmul.mubr.f32.gmra.mrb[0].mxu0 %v2677
    %v2762 = vpop.f32.mrb[0].mxu0
    %v2763 = vadd.f32 0.0, %v2762
    %v2764 = vpop.f32.mrb[0].mxu0
    %2765 = vdwg.mxu0
    %v2766 = vadd.f32 %v2647, %v2748
    %v2767 = vadd.f32 %v2648, %v2753
    %v2768 = vadd.f32 %v2649, %v2758
    %v2769 = vadd.f32 %v2650, %v2763
    %s2770 = scalar_lea.vmem [#allocation2], 320
    %v2771 = vld [vmem:[%s2770] sm:$0xff]
    %v2772 = vld [vmem:[%s2770 + $0x8] sm:$0xff]
    %v2773 = vld [vmem:[%s2770 + $0x10] sm:$0xff]
    %v2774 = vld [vmem:[%s2770 + $0x18] sm:$0x3]
    %2775 = vrot.lane.b32.xlu0 %v1380, 56
    %v2776 = vpop.permute.xlu0 %2775
    %2777 = vrot.lane.b32.xlu0 %v1386, 56
    %v2778 = vpop.permute.xlu0 %2777
    %2779 = vrot.lane.b32.xlu0 %v1392, 56
    %v2780 = vpop.permute.xlu0 %2779
    %2781 = vrot.lane.b32.xlu0 %v1398, 56
    %v2782 = vpop.permute.xlu0 %2781
    %v2787 = vsel %vm1602, %v2771, 0
    %v2790 = vsel %vm1602, %v2772, 0
    %v2793 = vsel %vm1602, %v2773, 0
    %v2796 = vsel %vm1602, %v2774, 0
    %v2798 = vsel %vm323, %v2782, 0
    %2800 = vmatprep.subr.mxu0 0.0
    %2801 = vmatpush1.msra.mxu0 %v2776
    %2802 = vmatprep.subr.mxu0 0.0
    %2803 = vmatpush1.msra.mxu0 %v2778
    %2804 = vmatprep.subr.mxu0 0.0
    %2805 = vmatpush1.msra.mxu0 %v2780
    %2806 = vmatprep.subr.mxu0 0.0
    %2807 = vmatpush1.msra.mxu0 %v2798
    %2808 = vmatprep.subr.mxu0 0.0
    %2809 = vmatpush1.msra.mxu0 0.0
    %2810 = vmatprep.subr.mxu0 0.0
    %2811 = vmatpush1.msra.mxu0 0.0
    %2812 = vmatprep.subr.mxu0 0.0
    %2813 = vmatpush1.msra.mxu0 0.0
    %2814 = vmatprep.subr.mxu0 0.0
    %2815 = vmatpush1.msra.mxu0 0.0
    %2816 = vmatprep.subr.mxu0 0.0
    %2817 = vmatpush1.msra.mxu0 0.0
    %2818 = vmatprep.subr.mxu0 0.0
    %2819 = vmatpush1.msra.mxu0 0.0
    %2820 = vmatprep.subr.mxu0 0.0
    %2821 = vmatpush1.msra.mxu0 0.0
    %2822 = vmatprep.subr.mxu0 0.0
    %2823 = vmatpush1.msra.mxu0 0.0
    %2824 = vmatprep.subr.mxu0 0.0
    %2825 = vmatpush1.msra.mxu0 0.0
    %2826 = vmatprep.subr.mxu0 0.0
    %2827 = vmatpush1.msra.mxu0 0.0
    %2828 = vmatprep.subr.mxu0 0.0
    %2829 = vmatpush1.msra.mxu0 0.0
    %2830 = vmatprep.subr.mxu0 0.0
    %2831 = vmatpush1.msra.mxu0 0.0
    %2832 = vmatprep.subr.mxu0 0.0
    %2833 = vmatpush1.msra.mxu0 0.0
    %2834 = vmatprep.subr.mxu0 0.0
    %2835 = vmatpush1.msra.mxu0 0.0
    %2836 = vmatprep.subr.mxu0 0.0
    %2837 = vmatpush1.msra.mxu0 0.0
    %2838 = vmatprep.subr.mxu0 0.0
    %2839 = vmatpush1.msra.mxu0 0.0
    %2840 = vmatprep.subr.mxu0 0.0
    %2841 = vmatpush1.msra.mxu0 0.0
    %2842 = vmatprep.subr.mxu0 0.0
    %2843 = vmatpush1.msra.mxu0 0.0
    %2844 = vmatprep.subr.mxu0 0.0
    %2845 = vmatpush1.msra.mxu0 0.0
    %2846 = vmatprep.subr.mxu0 0.0
    %2847 = vmatpush1.msra.mxu0 0.0
    %2848 = vmatprep.subr.mxu0 0.0
    %2849 = vmatpush1.msra.mxu0 0.0
    %2850 = vmatprep.subr.mxu0 0.0
    %2851 = vmatpush1.msra.mxu0 0.0
    %2852 = vmatprep.subr.mxu0 0.0
    %2853 = vmatpush1.msra.mxu0 0.0
    %2854 = vmatprep.subr.mxu0 0.0
    %2855 = vmatpush1.msra.mxu0 0.0
    %2856 = vmatprep.subr.mxu0 0.0
    %2857 = vmatpush1.msra.mxu0 0.0
    %2858 = vmatprep.subr.mxu0 0.0
    %2859 = vmatpush1.msra.mxu0 0.0
    %2860 = vmatprep.subr.mxu0 0.0
    %2861 = vmatpush1.msra.mxu0 0.0
    %2862 = vmatprep.subr.mxu0 0.0
    %2863 = vmatpush1.msra.mxu0 0.0
    %2864 = vmatprep.mubr.f32.mxu0 0.0
    %2865 = vmatmul.mubr.f32.gmra.mrb[0].mxu0 %v2787
    %v2866 = vpop.f32.mrb[0].mxu0
    %v2867 = vadd.f32 0.0, %v2866
    %v2868 = vpop.f32.mrb[0].mxu0
    %2869 = vmatprep.mubr.f32.mxu0 0.0
    %2870 = vmatmul.mubr.f32.gmra.mrb[0].mxu0 %v2790
    %v2871 = vpop.f32.mrb[0].mxu0
    %v2872 = vadd.f32 0.0, %v2871
    %v2873 = vpop.f32.mrb[0].mxu0
    %2874 = vmatprep.mubr.f32.mxu0 0.0
    %2875 = vmatmul.mubr.f32.gmra.mrb[0].mxu0 %v2793
    %v2876 = vpop.f32.mrb[0].mxu0
    %v2877 = vadd.f32 0.0, %v2876
    %v2878 = vpop.f32.mrb[0].mxu0
    %2879 = vmatprep.mubr.f32.mxu0 0.0
    %2880 = vmatmul.mubr.f32.gmra.mrb[0].mxu0 %v2796
    %v2881 = vpop.f32.mrb[0].mxu0
    %v2882 = vadd.f32 0.0, %v2881
    %v2883 = vpop.f32.mrb[0].mxu0
    %2884 = vdwg.mxu0
    %v2885 = vadd.f32 %v2766, %v2867
    %v2886 = vadd.f32 %v2767, %v2872
    %v2887 = vadd.f32 %v2768, %v2877
    %v2888 = vadd.f32 %v2769, %v2882
    %s2889 = scalar_lea.vmem [#allocation2], 352
    %v2890 = vld [vmem:[%s2889] sm:$0xff]
    %v2891 = vld [vmem:[%s2889 + $0x8] sm:$0xff]
    %v2892 = vld [vmem:[%s2889 + $0x10] sm:$0xff]
    %v2893 = vld [vmem:[%s2889 + $0x18] sm:$0x3]
    %2894 = vrot.lane.b32.xlu0 %v1380, 36
    %v2895 = vpop.permute.xlu0 %2894
    %2896 = vrot.lane.b32.xlu0 %v1386, 36
    %v2897 = vpop.permute.xlu0 %2896
    %2898 = vrot.lane.b32.xlu0 %v1392, 36
    %v2899 = vpop.permute.xlu0 %2898
    %2900 = vrot.lane.b32.xlu0 %v1398, 36
    %v2901 = vpop.permute.xlu0 %2900
    %v2906 = vsel %vm1602, %v2890, 0
    %v2909 = vsel %vm1602, %v2891, 0
    %v2912 = vsel %vm1602, %v2892, 0
    %v2915 = vsel %vm1602, %v2893, 0
    %v2917 = vsel %vm323, %v2901, 0
    %2919 = vmatprep.subr.mxu0 0.0
    %2920 = vmatpush1.msra.mxu0 %v2895
    %2921 = vmatprep.subr.mxu0 0.0
    %2922 = vmatpush1.msra.mxu0 %v2897
    %2923 = vmatprep.subr.mxu0 0.0
    %2924 = vmatpush1.msra.mxu0 %v2899
    %2925 = vmatprep.subr.mxu0 0.0
    %2926 = vmatpush1.msra.mxu0 %v2917
    %2927 = vmatprep.subr.mxu0 0.0
    %2928 = vmatpush1.msra.mxu0 0.0
    %2929 = vmatprep.subr.mxu0 0.0
    %2930 = vmatpush1.msra.mxu0 0.0
    %2931 = vmatprep.subr.mxu0 0.0
    %2932 = vmatpush1.msra.mxu0 0.0
    %2933 = vmatprep.subr.mxu0 0.0
    %2934 = vmatpush1.msra.mxu0 0.0
    %2935 = vmatprep.subr.mxu0 0.0
    %2936 = vmatpush1.msra.mxu0 0.0
    %2937 = vmatprep.subr.mxu0 0.0
    %2938 = vmatpush1.msra.mxu0 0.0
    %2939 = vmatprep.subr.mxu0 0.0
    %2940 = vmatpush1.msra.mxu0 0.0
    %2941 = vmatprep.subr.mxu0 0.0
    %2942 = vmatpush1.msra.mxu0 0.0
    %2943 = vmatprep.subr.mxu0 0.0
    %2944 = vmatpush1.msra.mxu0 0.0
    %2945 = vmatprep.subr.mxu0 0.0
    %2946 = vmatpush1.msra.mxu0 0.0
    %2947 = vmatprep.subr.mxu0 0.0
    %2948 = vmatpush1.msra.mxu0 0.0
    %2949 = vmatprep.subr.mxu0 0.0
    %2950 = vmatpush1.msra.mxu0 0.0
    %2951 = vmatprep.subr.mxu0 0.0
    %2952 = vmatpush1.msra.mxu0 0.0
    %2953 = vmatprep.subr.mxu0 0.0
    %2954 = vmatpush1.msra.mxu0 0.0
    %2955 = vmatprep.subr.mxu0 0.0
    %2956 = vmatpush1.msra.mxu0 0.0
    %2957 = vmatprep.subr.mxu0 0.0
    %2958 = vmatpush1.msra.mxu0 0.0
    %2959 = vmatprep.subr.mxu0 0.0
    %2960 = vmatpush1.msra.mxu0 0.0
    %2961 = vmatprep.subr.mxu0 0.0
    %2962 = vmatpush1.msra.mxu0 0.0
    %2963 = vmatprep.subr.mxu0 0.0
    %2964 = vmatpush1.msra.mxu0 0.0
    %2965 = vmatprep.subr.mxu0 0.0
    %2966 = vmatpush1.msra.mxu0 0.0
    %2967 = vmatprep.subr.mxu0 0.0
    %2968 = vmatpush1.msra.mxu0 0.0
    %2969 = vmatprep.subr.mxu0 0.0
    %2970 = vmatpush1.msra.mxu0 0.0
    %2971 = vmatprep.subr.mxu0 0.0
    %2972 = vmatpush1.msra.mxu0 0.0
    %2973 = vmatprep.subr.mxu0 0.0
    %2974 = vmatpush1.msra.mxu0 0.0
    %2975 = vmatprep.subr.mxu0 0.0
    %2976 = vmatpush1.msra.mxu0 0.0
    %2977 = vmatprep.subr.mxu0 0.0
    %2978 = vmatpush1.msra.mxu0 0.0
    %2979 = vmatprep.subr.mxu0 0.0
    %2980 = vmatpush1.msra.mxu0 0.0
    %2981 = vmatprep.subr.mxu0 0.0
    %2982 = vmatpush1.msra.mxu0 0.0
    %2983 = vmatprep.mubr.f32.mxu0 0.0
    %2984 = vmatmul.mubr.f32.gmra.mrb[0].mxu0 %v2906
    %v2985 = vpop.f32.mrb[0].mxu0
    %v2986 = vadd.f32 0.0, %v2985
    %v2987 = vpop.f32.mrb[0].mxu0
    %2988 = vmatprep.mubr.f32.mxu0 0.0
    %2989 = vmatmul.mubr.f32.gmra.mrb[0].mxu0 %v2909
    %v2990 = vpop.f32.mrb[0].mxu0
    %v2991 = vadd.f32 0.0, %v2990
    %v2992 = vpop.f32.mrb[0].mxu0
    %2993 = vmatprep.mubr.f32.mxu0 0.0
    %2994 = vmatmul.mubr.f32.gmra.mrb[0].mxu0 %v2912
    %v2995 = vpop.f32.mrb[0].mxu0
    %v2996 = vadd.f32 0.0, %v2995
    %v2997 = vpop.f32.mrb[0].mxu0
    %2998 = vmatprep.mubr.f32.mxu0 0.0
    %2999 = vmatmul.mubr.f32.gmra.mrb[0].mxu0 %v2915
    %v3000 = vpop.f32.mrb[0].mxu0
    %v3001 = vadd.f32 0.0, %v3000
    %v3002 = vpop.f32.mrb[0].mxu0
    %3003 = vdwg.mxu0
    %v3004 = vadd.f32 %v2885, %v2986
    %v3005 = vadd.f32 %v2886, %v2991
    %v3006 = vadd.f32 %v2887, %v2996
    %v3007 = vadd.f32 %v2888, %v3001
    %s3008 = scalar_lea.vmem [#allocation2], 384
    %v3009 = vld [vmem:[%s3008] sm:$0xff]
    %v3010 = vld [vmem:[%s3008 + $0x8] sm:$0xff]
    %v3011 = vld [vmem:[%s3008 + $0x10] sm:$0xff]
    %v3012 = vld [vmem:[%s3008 + $0x18] sm:$0x3]
    %3017 = vrot.lane.b32.xlu0 %v1380, 16
    %v3018 = vpop.permute.xlu0 %3017
    %3019 = vrot.lane.b32.xlu0 %v1556, 16
    %v3020 = vpop.permute.xlu0 %3019
    %3021 = vrot.lane.b32.xlu0 %v1386, 16
    %v3022 = vpop.permute.xlu0 %3021
    %3023 = vrot.lane.b32.xlu0 %v1562, 16
    %v3024 = vpop.permute.xlu0 %3023
    %3025 = vrot.lane.b32.xlu0 %v1392, 16
    %v3026 = vpop.permute.xlu0 %3025
    %3027 = vrot.lane.b32.xlu0 %v1568, 16
    %v3028 = vpop.permute.xlu0 %3027
    %3029 = vrot.lane.b32.xlu0 %v1398, 16
    %v3030 = vpop.permute.xlu0 %3029
    %3031 = vrot.lane.b32.xlu0 %v1574, 16
    %v3032 = vpop.permute.xlu0 %3031
    %v3033 = vsel %vm803, %v3018, %v3020
    %v3034 = vsel %vm803, %v3022, %v3024
    %v3035 = vsel %vm803, %v3026, %v3028
    %v3036 = vsel %vm803, %v3030, %v3032
    %v3041 = vsel %vm1602, %v3009, 0
    %v3044 = vsel %vm1602, %v3010, 0
    %v3047 = vsel %vm1602, %v3011, 0
    %v3050 = vsel %vm1602, %v3012, 0
    %v3052 = vsel %vm323, %v3036, 0
    %3054 = vmatprep.subr.mxu0 0.0
    %3055 = vmatpush1.msra.mxu0 %v3033
    %3056 = vmatprep.subr.mxu0 0.0
    %3057 = vmatpush1.msra.mxu0 %v3034
    %3058 = vmatprep.subr.mxu0 0.0
    %3059 = vmatpush1.msra.mxu0 %v3035
    %3060 = vmatprep.subr.mxu0 0.0
    %3061 = vmatpush1.msra.mxu0 %v3052
    %3062 = vmatprep.subr.mxu0 0.0
    %3063 = vmatpush1.msra.mxu0 0.0
    %3064 = vmatprep.subr.mxu0 0.0
    %3065 = vmatpush1.msra.mxu0 0.0
    %3066 = vmatprep.subr.mxu0 0.0
    %3067 = vmatpush1.msra.mxu0 0.0
    %3068 = vmatprep.subr.mxu0 0.0
    %3069 = vmatpush1.msra.mxu0 0.0
    %3070 = vmatprep.subr.mxu0 0.0
    %3071 = vmatpush1.msra.mxu0 0.0
    %3072 = vmatprep.subr.mxu0 0.0
    %3073 = vmatpush1.msra.mxu0 0.0
    %3074 = vmatprep.subr.mxu0 0.0
    %3075 = vmatpush1.msra.mxu0 0.0
    %3076 = vmatprep.subr.mxu0 0.0
    %3077 = vmatpush1.msra.mxu0 0.0
    %3078 = vmatprep.subr.mxu0 0.0
    %3079 = vmatpush1.msra.mxu0 0.0
    %3080 = vmatprep.subr.mxu0 0.0
    %3081 = vmatpush1.msra.mxu0 0.0
    %3082 = vmatprep.subr.mxu0 0.0
    %3083 = vmatpush1.msra.mxu0 0.0
    %3084 = vmatprep.subr.mxu0 0.0
    %3085 = vmatpush1.msra.mxu0 0.0
    %3086 = vmatprep.subr.mxu0 0.0
    %3087 = vmatpush1.msra.mxu0 0.0
    %3088 = vmatprep.subr.mxu0 0.0
    %3089 = vmatpush1.msra.mxu0 0.0
    %3090 = vmatprep.subr.mxu0 0.0
    %3091 = vmatpush1.msra.mxu0 0.0
    %3092 = vmatprep.subr.mxu0 0.0
    %3093 = vmatpush1.msra.mxu0 0.0
    %3094 = vmatprep.subr.mxu0 0.0
    %3095 = vmatpush1.msra.mxu0 0.0
    %3096 = vmatprep.subr.mxu0 0.0
    %3097 = vmatpush1.msra.mxu0 0.0
    %3098 = vmatprep.subr.mxu0 0.0
    %3099 = vmatpush1.msra.mxu0 0.0
    %3100 = vmatprep.subr.mxu0 0.0
    %3101 = vmatpush1.msra.mxu0 0.0
    %3102 = vmatprep.subr.mxu0 0.0
    %3103 = vmatpush1.msra.mxu0 0.0
    %3104 = vmatprep.subr.mxu0 0.0
    %3105 = vmatpush1.msra.mxu0 0.0
    %3106 = vmatprep.subr.mxu0 0.0
    %3107 = vmatpush1.msra.mxu0 0.0
    %3108 = vmatprep.subr.mxu0 0.0
    %3109 = vmatpush1.msra.mxu0 0.0
    %3110 = vmatprep.subr.mxu0 0.0
    %3111 = vmatpush1.msra.mxu0 0.0
    %3112 = vmatprep.subr.mxu0 0.0
    %3113 = vmatpush1.msra.mxu0 0.0
    %3114 = vmatprep.subr.mxu0 0.0
    %3115 = vmatpush1.msra.mxu0 0.0
    %3116 = vmatprep.subr.mxu0 0.0
    %3117 = vmatpush1.msra.mxu0 0.0
    %3118 = vmatprep.mubr.f32.mxu0 0.0
    %3119 = vmatmul.mubr.f32.gmra.mrb[0].mxu0 %v3041
    %v3120 = vpop.f32.mrb[0].mxu0
    %v3121 = vadd.f32 0.0, %v3120
    %v3122 = vpop.f32.mrb[0].mxu0
    %3123 = vmatprep.mubr.f32.mxu0 0.0
    %3124 = vmatmul.mubr.f32.gmra.mrb[0].mxu0 %v3044
    %v3125 = vpop.f32.mrb[0].mxu0
    %v3126 = vadd.f32 0.0, %v3125
    %v3127 = vpop.f32.mrb[0].mxu0
    %3128 = vmatprep.mubr.f32.mxu0 0.0
    %3129 = vmatmul.mubr.f32.gmra.mrb[0].mxu0 %v3047
    %v3130 = vpop.f32.mrb[0].mxu0
    %v3131 = vadd.f32 0.0, %v3130
    %v3132 = vpop.f32.mrb[0].mxu0
    %3133 = vmatprep.mubr.f32.mxu0 0.0
    %3134 = vmatmul.mubr.f32.gmra.mrb[0].mxu0 %v3050
    %v3135 = vpop.f32.mrb[0].mxu0
    %v3136 = vadd.f32 0.0, %v3135
    %v3137 = vpop.f32.mrb[0].mxu0
    %3138 = vdwg.mxu0
    %v3139 = vadd.f32 %v3004, %v3121
    %v3140 = vadd.f32 %v3005, %v3126
    %v3141 = vadd.f32 %v3006, %v3131
    %v3142 = vadd.f32 %v3007, %v3136
    %s3143 = scalar_lea.vmem [#allocation2], 416
    %v3144 = vld [vmem:[%s3143] sm:$0xff]
    %v3145 = vld [vmem:[%s3143 + $0x8] sm:$0xff]
    %v3146 = vld [vmem:[%s3143 + $0x10] sm:$0xff]
    %v3147 = vld [vmem:[%s3143 + $0x18] sm:$0x3]
    %3148 = vrot.lane.b32.xlu0 %v1556, 124
    %v3149 = vpop.permute.xlu0 %3148
    %3150 = vrot.lane.b32.xlu0 %v1562, 124
    %v3151 = vpop.permute.xlu0 %3150
    %3152 = vrot.lane.b32.xlu0 %v1568, 124
    %v3153 = vpop.permute.xlu0 %3152
    %3154 = vrot.lane.b32.xlu0 %v1574, 124
    %v3155 = vpop.permute.xlu0 %3154
    %v3160 = vsel %vm1602, %v3144, 0
    %v3163 = vsel %vm1602, %v3145, 0
    %v3166 = vsel %vm1602, %v3146, 0
    %v3169 = vsel %vm1602, %v3147, 0
    %v3171 = vsel %vm323, %v3155, 0
    %3173 = vmatprep.subr.mxu0 0.0
    %3174 = vmatpush1.msra.mxu0 %v3149
    %3175 = vmatprep.subr.mxu0 0.0
    %3176 = vmatpush1.msra.mxu0 %v3151
    %3177 = vmatprep.subr.mxu0 0.0
    %3178 = vmatpush1.msra.mxu0 %v3153
    %3179 = vmatprep.subr.mxu0 0.0
    %3180 = vmatpush1.msra.mxu0 %v3171
    %3181 = vmatprep.subr.mxu0 0.0
    %3182 = vmatpush1.msra.mxu0 0.0
    %3183 = vmatprep.subr.mxu0 0.0
    %3184 = vmatpush1.msra.mxu0 0.0
    %3185 = vmatprep.subr.mxu0 0.0
    %3186 = vmatpush1.msra.mxu0 0.0
    %3187 = vmatprep.subr.mxu0 0.0
    %3188 = vmatpush1.msra.mxu0 0.0
    %3189 = vmatprep.subr.mxu0 0.0
    %3190 = vmatpush1.msra.mxu0 0.0
    %3191 = vmatprep.subr.mxu0 0.0
    %3192 = vmatpush1.msra.mxu0 0.0
    %3193 = vmatprep.subr.mxu0 0.0
    %3194 = vmatpush1.msra.mxu0 0.0
    %3195 = vmatprep.subr.mxu0 0.0
    %3196 = vmatpush1.msra.mxu0 0.0
    %3197 = vmatprep.subr.mxu0 0.0
    %3198 = vmatpush1.msra.mxu0 0.0
    %3199 = vmatprep.subr.mxu0 0.0
    %3200 = vmatpush1.msra.mxu0 0.0
    %3201 = vmatprep.subr.mxu0 0.0
    %3202 = vmatpush1.msra.mxu0 0.0
    %3203 = vmatprep.subr.mxu0 0.0
    %3204 = vmatpush1.msra.mxu0 0.0
    %3205 = vmatprep.subr.mxu0 0.0
    %3206 = vmatpush1.msra.mxu0 0.0
    %3207 = vmatprep.subr.mxu0 0.0
    %3208 = vmatpush1.msra.mxu0 0.0
    %3209 = vmatprep.subr.mxu0 0.0
    %3210 = vmatpush1.msra.mxu0 0.0
    %3211 = vmatprep.subr.mxu0 0.0
    %3212 = vmatpush1.msra.mxu0 0.0
    %3213 = vmatprep.subr.mxu0 0.0
    %3214 = vmatpush1.msra.mxu0 0.0
    %3215 = vmatprep.subr.mxu0 0.0
    %3216 = vmatpush1.msra.mxu0 0.0
    %3217 = vmatprep.subr.mxu0 0.0
    %3218 = vmatpush1.msra.mxu0 0.0
    %3219 = vmatprep.subr.mxu0 0.0
    %3220 = vmatpush1.msra.mxu0 0.0
    %3221 = vmatprep.subr.mxu0 0.0
    %3222 = vmatpush1.msra.mxu0 0.0
    %3223 = vmatprep.subr.mxu0 0.0
    %3224 = vmatpush1.msra.mxu0 0.0
    %3225 = vmatprep.subr.mxu0 0.0
    %3226 = vmatpush1.msra.mxu0 0.0
    %3227 = vmatprep.subr.mxu0 0.0
    %3228 = vmatpush1.msra.mxu0 0.0
    %3229 = vmatprep.subr.mxu0 0.0
    %3230 = vmatpush1.msra.mxu0 0.0
    %3231 = vmatprep.subr.mxu0 0.0
    %3232 = vmatpush1.msra.mxu0 0.0
    %3233 = vmatprep.subr.mxu0 0.0
    %3234 = vmatpush1.msra.mxu0 0.0
    %3235 = vmatprep.subr.mxu0 0.0
    %3236 = vmatpush1.msra.mxu0 0.0
    %3237 = vmatprep.mubr.f32.mxu0 0.0
    %3238 = vmatmul.mubr.f32.gmra.mrb[0].mxu0 %v3160
    %v3239 = vpop.f32.mrb[0].mxu0
    %v3240 = vadd.f32 0.0, %v3239
    %v3241 = vpop.f32.mrb[0].mxu0
    %3242 = vmatprep.mubr.f32.mxu0 0.0
    %3243 = vmatmul.mubr.f32.gmra.mrb[0].mxu0 %v3163
    %v3244 = vpop.f32.mrb[0].mxu0
    %v3245 = vadd.f32 0.0, %v3244
    %v3246 = vpop.f32.mrb[0].mxu0
    %3247 = vmatprep.mubr.f32.mxu0 0.0
    %3248 = vmatmul.mubr.f32.gmra.mrb[0].mxu0 %v3166
    %v3249 = vpop.f32.mrb[0].mxu0
    %v3250 = vadd.f32 0.0, %v3249
    %v3251 = vpop.f32.mrb[0].mxu0
    %3252 = vmatprep.mubr.f32.mxu0 0.0
    %3253 = vmatmul.mubr.f32.gmra.mrb[0].mxu0 %v3169
    %v3254 = vpop.f32.mrb[0].mxu0
    %v3255 = vadd.f32 0.0, %v3254
    %v3256 = vpop.f32.mrb[0].mxu0
    %3257 = vdwg.mxu0
    %v3258 = vadd.f32 %v3139, %v3240
    %v3259 = vadd.f32 %v3140, %v3245
    %v3260 = vadd.f32 %v3141, %v3250
    %v3261 = vadd.f32 %v3142, %v3255
    %s3262 = scalar_lea.vmem [#allocation2], 448
    %v3263 = vld [vmem:[%s3262] sm:$0xff]
    %v3264 = vld [vmem:[%s3262 + $0x8] sm:$0xff]
    %v3265 = vld [vmem:[%s3262 + $0x10] sm:$0xff]
    %v3266 = vld [vmem:[%s3262 + $0x18] sm:$0x3]
    %3267 = vrot.lane.b32.xlu0 %v1556, 104
    %v3268 = vpop.permute.xlu0 %3267
    %3269 = vrot.lane.b32.xlu0 %v1562, 104
    %v3270 = vpop.permute.xlu0 %3269
    %3271 = vrot.lane.b32.xlu0 %v1568, 104
    %v3272 = vpop.permute.xlu0 %3271
    %3273 = vrot.lane.b32.xlu0 %v1574, 104
    %v3274 = vpop.permute.xlu0 %3273
    %v3279 = vsel %vm1602, %v3263, 0
    %v3282 = vsel %vm1602, %v3264, 0
    %v3285 = vsel %vm1602, %v3265, 0
    %v3288 = vsel %vm1602, %v3266, 0
    %v3290 = vsel %vm323, %v3274, 0
    %3292 = vmatprep.subr.mxu0 0.0
    %3293 = vmatpush1.msra.mxu0 %v3268
    %3294 = vmatprep.subr.mxu0 0.0
    %3295 = vmatpush1.msra.mxu0 %v3270
    %3296 = vmatprep.subr.mxu0 0.0
    %3297 = vmatpush1.msra.mxu0 %v3272
    %3298 = vmatprep.subr.mxu0 0.0
    %3299 = vmatpush1.msra.mxu0 %v3290
    %3300 = vmatprep.subr.mxu0 0.0
    %3301 = vmatpush1.msra.mxu0 0.0
    %3302 = vmatprep.subr.mxu0 0.0
    %3303 = vmatpush1.msra.mxu0 0.0
    %3304 = vmatprep.subr.mxu0 0.0
    %3305 = vmatpush1.msra.mxu0 0.0
    %3306 = vmatprep.subr.mxu0 0.0
    %3307 = vmatpush1.msra.mxu0 0.0
    %3308 = vmatprep.subr.mxu0 0.0
    %3309 = vmatpush1.msra.mxu0 0.0
    %3310 = vmatprep.subr.mxu0 0.0
    %3311 = vmatpush1.msra.mxu0 0.0
    %3312 = vmatprep.subr.mxu0 0.0
    %3313 = vmatpush1.msra.mxu0 0.0
    %3314 = vmatprep.subr.mxu0 0.0
    %3315 = vmatpush1.msra.mxu0 0.0
    %3316 = vmatprep.subr.mxu0 0.0
    %3317 = vmatpush1.msra.mxu0 0.0
    %3318 = vmatprep.subr.mxu0 0.0
    %3319 = vmatpush1.msra.mxu0 0.0
    %3320 = vmatprep.subr.mxu0 0.0
    %3321 = vmatpush1.msra.mxu0 0.0
    %3322 = vmatprep.subr.mxu0 0.0
    %3323 = vmatpush1.msra.mxu0 0.0
    %3324 = vmatprep.subr.mxu0 0.0
    %3325 = vmatpush1.msra.mxu0 0.0
    %3326 = vmatprep.subr.mxu0 0.0
    %3327 = vmatpush1.msra.mxu0 0.0
    %3328 = vmatprep.subr.mxu0 0.0
    %3329 = vmatpush1.msra.mxu0 0.0
    %3330 = vmatprep.subr.mxu0 0.0
    %3331 = vmatpush1.msra.mxu0 0.0
    %3332 = vmatprep.subr.mxu0 0.0
    %3333 = vmatpush1.msra.mxu0 0.0
    %3334 = vmatprep.subr.mxu0 0.0
    %3335 = vmatpush1.msra.mxu0 0.0
    %3336 = vmatprep.subr.mxu0 0.0
    %3337 = vmatpush1.msra.mxu0 0.0
    %3338 = vmatprep.subr.mxu0 0.0
    %3339 = vmatpush1.msra.mxu0 0.0
    %3340 = vmatprep.subr.mxu0 0.0
    %3341 = vmatpush1.msra.mxu0 0.0
    %3342 = vmatprep.subr.mxu0 0.0
    %3343 = vmatpush1.msra.mxu0 0.0
    %3344 = vmatprep.subr.mxu0 0.0
    %3345 = vmatpush1.msra.mxu0 0.0
    %3346 = vmatprep.subr.mxu0 0.0
    %3347 = vmatpush1.msra.mxu0 0.0
    %3348 = vmatprep.subr.mxu0 0.0
    %3349 = vmatpush1.msra.mxu0 0.0
    %3350 = vmatprep.subr.mxu0 0.0
    %3351 = vmatpush1.msra.mxu0 0.0
    %3352 = vmatprep.subr.mxu0 0.0
    %3353 = vmatpush1.msra.mxu0 0.0
    %3354 = vmatprep.subr.mxu0 0.0
    %3355 = vmatpush1.msra.mxu0 0.0
    %3356 = vmatprep.mubr.f32.mxu0 0.0
    %3357 = vmatmul.mubr.f32.gmra.mrb[0].mxu0 %v3279
    %v3358 = vpop.f32.mrb[0].mxu0
    %v3359 = vadd.f32 0.0, %v3358
    %v3360 = vpop.f32.mrb[0].mxu0
    %3361 = vmatprep.mubr.f32.mxu0 0.0
    %3362 = vmatmul.mubr.f32.gmra.mrb[0].mxu0 %v3282
    %v3363 = vpop.f32.mrb[0].mxu0
    %v3364 = vadd.f32 0.0, %v3363
    %v3365 = vpop.f32.mrb[0].mxu0
    %3366 = vmatprep.mubr.f32.mxu0 0.0
    %3367 = vmatmul.mubr.f32.gmra.mrb[0].mxu0 %v3285
    %v3368 = vpop.f32.mrb[0].mxu0
    %v3369 = vadd.f32 0.0, %v3368
    %v3370 = vpop.f32.mrb[0].mxu0
    %3371 = vmatprep.mubr.f32.mxu0 0.0
    %3372 = vmatmul.mubr.f32.gmra.mrb[0].mxu0 %v3288
    %v3373 = vpop.f32.mrb[0].mxu0
    %v3374 = vadd.f32 0.0, %v3373
    %v3375 = vpop.f32.mrb[0].mxu0
    %3376 = vdwg.mxu0
    %v3377 = vadd.f32 %v3258, %v3359
    %v3378 = vadd.f32 %v3259, %v3364
    %v3379 = vadd.f32 %v3260, %v3369
    %v3380 = vadd.f32 %v3261, %v3374
    %s3381 = scalar_lea.vmem [#allocation2], 480
    %v3382 = vld [vmem:[%s3381] sm:$0xff]
    %v3383 = vld [vmem:[%s3381 + $0x8] sm:$0xff]
    %v3384 = vld [vmem:[%s3381 + $0x10] sm:$0xff]
    %v3385 = vld [vmem:[%s3381 + $0x18] sm:$0x3]
    %3386 = vrot.lane.b32.xlu0 %v1556, 84
    %v3387 = vpop.permute.xlu0 %3386
    %3388 = vrot.lane.b32.xlu0 %v1562, 84
    %v3389 = vpop.permute.xlu0 %3388
    %3390 = vrot.lane.b32.xlu0 %v1568, 84
    %v3391 = vpop.permute.xlu0 %3390
    %3392 = vrot.lane.b32.xlu0 %v1574, 84
    %v3393 = vpop.permute.xlu0 %3392
    %v3398 = vsel %vm1602, %v3382, 0
    %v3401 = vsel %vm1602, %v3383, 0
    %v3404 = vsel %vm1602, %v3384, 0
    %v3407 = vsel %vm1602, %v3385, 0
    %v3409 = vsel %vm323, %v3393, 0
    %3411 = vmatprep.subr.mxu0 0.0
    %3412 = vmatpush1.msra.mxu0 %v3387
    %3413 = vmatprep.subr.mxu0 0.0
    %3414 = vmatpush1.msra.mxu0 %v3389
    %3415 = vmatprep.subr.mxu0 0.0
    %3416 = vmatpush1.msra.mxu0 %v3391
    %3417 = vmatprep.subr.mxu0 0.0
    %3418 = vmatpush1.msra.mxu0 %v3409
    %3419 = vmatprep.subr.mxu0 0.0
    %3420 = vmatpush1.msra.mxu0 0.0
    %3421 = vmatprep.subr.mxu0 0.0
    %3422 = vmatpush1.msra.mxu0 0.0
    %3423 = vmatprep.subr.mxu0 0.0
    %3424 = vmatpush1.msra.mxu0 0.0
    %3425 = vmatprep.subr.mxu0 0.0
    %3426 = vmatpush1.msra.mxu0 0.0
    %3427 = vmatprep.subr.mxu0 0.0
    %3428 = vmatpush1.msra.mxu0 0.0
    %3429 = vmatprep.subr.mxu0 0.0
    %3430 = vmatpush1.msra.mxu0 0.0
    %3431 = vmatprep.subr.mxu0 0.0
    %3432 = vmatpush1.msra.mxu0 0.0
    %3433 = vmatprep.subr.mxu0 0.0
    %3434 = vmatpush1.msra.mxu0 0.0
    %3435 = vmatprep.subr.mxu0 0.0
    %3436 = vmatpush1.msra.mxu0 0.0
    %3437 = vmatprep.subr.mxu0 0.0
    %3438 = vmatpush1.msra.mxu0 0.0
    %3439 = vmatprep.subr.mxu0 0.0
    %3440 = vmatpush1.msra.mxu0 0.0
    %3441 = vmatprep.subr.mxu0 0.0
    %3442 = vmatpush1.msra.mxu0 0.0
    %3443 = vmatprep.subr.mxu0 0.0
    %3444 = vmatpush1.msra.mxu0 0.0
    %3445 = vmatprep.subr.mxu0 0.0
    %3446 = vmatpush1.msra.mxu0 0.0
    %3447 = vmatprep.subr.mxu0 0.0
    %3448 = vmatpush1.msra.mxu0 0.0
    %3449 = vmatprep.subr.mxu0 0.0
    %3450 = vmatpush1.msra.mxu0 0.0
    %3451 = vmatprep.subr.mxu0 0.0
    %3452 = vmatpush1.msra.mxu0 0.0
    %3453 = vmatprep.subr.mxu0 0.0
    %3454 = vmatpush1.msra.mxu0 0.0
    %3455 = vmatprep.subr.mxu0 0.0
    %3456 = vmatpush1.msra.mxu0 0.0
    %3457 = vmatprep.subr.mxu0 0.0
    %3458 = vmatpush1.msra.mxu0 0.0
    %3459 = vmatprep.subr.mxu0 0.0
    %3460 = vmatpush1.msra.mxu0 0.0
    %3461 = vmatprep.subr.mxu0 0.0
    %3462 = vmatpush1.msra.mxu0 0.0
    %3463 = vmatprep.subr.mxu0 0.0
    %3464 = vmatpush1.msra.mxu0 0.0
    %3465 = vmatprep.subr.mxu0 0.0
    %3466 = vmatpush1.msra.mxu0 0.0
    %3467 = vmatprep.subr.mxu0 0.0
    %3468 = vmatpush1.msra.mxu0 0.0
    %3469 = vmatprep.subr.mxu0 0.0
    %3470 = vmatpush1.msra.mxu0 0.0
    %3471 = vmatprep.subr.mxu0 0.0
    %3472 = vmatpush1.msra.mxu0 0.0
    %3473 = vmatprep.subr.mxu0 0.0
    %3474 = vmatpush1.msra.mxu0 0.0
    %3475 = vmatprep.mubr.f32.mxu0 0.0
    %3476 = vmatmul.mubr.f32.gmra.mrb[0].mxu0 %v3398
    %v3477 = vpop.f32.mrb[0].mxu0
    %v3478 = vadd.f32 0.0, %v3477
    %v3479 = vpop.f32.mrb[0].mxu0
    %3480 = vmatprep.mubr.f32.mxu0 0.0
    %3481 = vmatmul.mubr.f32.gmra.mrb[0].mxu0 %v3401
    %v3482 = vpop.f32.mrb[0].mxu0
    %v3483 = vadd.f32 0.0, %v3482
    %v3484 = vpop.f32.mrb[0].mxu0
    %3485 = vmatprep.mubr.f32.mxu0 0.0
    %3486 = vmatmul.mubr.f32.gmra.mrb[0].mxu0 %v3404
    %v3487 = vpop.f32.mrb[0].mxu0
    %v3488 = vadd.f32 0.0, %v3487
    %v3489 = vpop.f32.mrb[0].mxu0
    %3490 = vmatprep.mubr.f32.mxu0 0.0
    %3491 = vmatmul.mubr.f32.gmra.mrb[0].mxu0 %v3407
    %v3492 = vpop.f32.mrb[0].mxu0
    %v3493 = vadd.f32 0.0, %v3492
    %v3494 = vpop.f32.mrb[0].mxu0
    %3495 = vdwg.mxu0
    %v3496 = vadd.f32 %v3377, %v3478
    %v3497 = vadd.f32 %v3378, %v3483
    %v3498 = vadd.f32 %v3379, %v3488
    %v3499 = vadd.f32 %v3380, %v3493
    %s3500 = scalar_lea.vmem [#allocation2], 512
    %v3501 = vld [vmem:[%s3500] sm:$0xff]
    %v3502 = vld [vmem:[%s3500 + $0x8] sm:$0xff]
    %v3503 = vld [vmem:[%s3500 + $0x10] sm:$0xff]
    %v3504 = vld [vmem:[%s3500 + $0x18] sm:$0x3]
    %3505 = vrot.lane.b32.xlu0 %v1556, 64
    %v3506 = vpop.permute.xlu0 %3505
    %3507 = vrot.lane.b32.xlu0 %v1562, 64
    %v3508 = vpop.permute.xlu0 %3507
    %3509 = vrot.lane.b32.xlu0 %v1568, 64
    %v3510 = vpop.permute.xlu0 %3509
    %3511 = vrot.lane.b32.xlu0 %v1574, 64
    %v3512 = vpop.permute.xlu0 %3511
    %v3517 = vsel %vm1602, %v3501, 0
    %v3520 = vsel %vm1602, %v3502, 0
    %v3523 = vsel %vm1602, %v3503, 0
    %v3526 = vsel %vm1602, %v3504, 0
    %v3528 = vsel %vm323, %v3512, 0
    %3530 = vmatprep.subr.mxu0 0.0
    %3531 = vmatpush1.msra.mxu0 %v3506
    %3532 = vmatprep.subr.mxu0 0.0
    %3533 = vmatpush1.msra.mxu0 %v3508
    %3534 = vmatprep.subr.mxu0 0.0
    %3535 = vmatpush1.msra.mxu0 %v3510
    %3536 = vmatprep.subr.mxu0 0.0
    %3537 = vmatpush1.msra.mxu0 %v3528
    %3538 = vmatprep.subr.mxu0 0.0
    %3539 = vmatpush1.msra.mxu0 0.0
    %3540 = vmatprep.subr.mxu0 0.0
    %3541 = vmatpush1.msra.mxu0 0.0
    %3542 = vmatprep.subr.mxu0 0.0
    %3543 = vmatpush1.msra.mxu0 0.0
    %3544 = vmatprep.subr.mxu0 0.0
    %3545 = vmatpush1.msra.mxu0 0.0
    %3546 = vmatprep.subr.mxu0 0.0
    %3547 = vmatpush1.msra.mxu0 0.0
    %3548 = vmatprep.subr.mxu0 0.0
    %3549 = vmatpush1.msra.mxu0 0.0
    %3550 = vmatprep.subr.mxu0 0.0
    %3551 = vmatpush1.msra.mxu0 0.0
    %3552 = vmatprep.subr.mxu0 0.0
    %3553 = vmatpush1.msra.mxu0 0.0
    %3554 = vmatprep.subr.mxu0 0.0
    %3555 = vmatpush1.msra.mxu0 0.0
    %3556 = vmatprep.subr.mxu0 0.0
    %3557 = vmatpush1.msra.mxu0 0.0
    %3558 = vmatprep.subr.mxu0 0.0
    %3559 = vmatpush1.msra.mxu0 0.0
    %3560 = vmatprep.subr.mxu0 0.0
    %3561 = vmatpush1.msra.mxu0 0.0
    %3562 = vmatprep.subr.mxu0 0.0
    %3563 = vmatpush1.msra.mxu0 0.0
    %3564 = vmatprep.subr.mxu0 0.0
    %3565 = vmatpush1.msra.mxu0 0.0
    %3566 = vmatprep.subr.mxu0 0.0
    %3567 = vmatpush1.msra.mxu0 0.0
    %3568 = vmatprep.subr.mxu0 0.0
    %3569 = vmatpush1.msra.mxu0 0.0
    %3570 = vmatprep.subr.mxu0 0.0
    %3571 = vmatpush1.msra.mxu0 0.0
    %3572 = vmatprep.subr.mxu0 0.0
    %3573 = vmatpush1.msra.mxu0 0.0
    %3574 = vmatprep.subr.mxu0 0.0
    %3575 = vmatpush1.msra.mxu0 0.0
    %3576 = vmatprep.subr.mxu0 0.0
    %3577 = vmatpush1.msra.mxu0 0.0
    %3578 = vmatprep.subr.mxu0 0.0
    %3579 = vmatpush1.msra.mxu0 0.0
    %3580 = vmatprep.subr.mxu0 0.0
    %3581 = vmatpush1.msra.mxu0 0.0
    %3582 = vmatprep.subr.mxu0 0.0
    %3583 = vmatpush1.msra.mxu0 0.0
    %3584 = vmatprep.subr.mxu0 0.0
    %3585 = vmatpush1.msra.mxu0 0.0
    %3586 = vmatprep.subr.mxu0 0.0
    %3587 = vmatpush1.msra.mxu0 0.0
    %3588 = vmatprep.subr.mxu0 0.0
    %3589 = vmatpush1.msra.mxu0 0.0
    %3590 = vmatprep.subr.mxu0 0.0
    %3591 = vmatpush1.msra.mxu0 0.0
    %3592 = vmatprep.subr.mxu0 0.0
    %3593 = vmatpush1.msra.mxu0 0.0
    %3594 = vmatprep.mubr.f32.mxu0 0.0
    %3595 = vmatmul.mubr.f32.gmra.mrb[0].mxu0 %v3517
    %v3596 = vpop.f32.mrb[0].mxu0
    %v3597 = vadd.f32 0.0, %v3596
    %v3598 = vpop.f32.mrb[0].mxu0
    %3599 = vmatprep.mubr.f32.mxu0 0.0
    %3600 = vmatmul.mubr.f32.gmra.mrb[0].mxu0 %v3520
    %v3601 = vpop.f32.mrb[0].mxu0
    %v3602 = vadd.f32 0.0, %v3601
    %v3603 = vpop.f32.mrb[0].mxu0
    %3604 = vmatprep.mubr.f32.mxu0 0.0
    %3605 = vmatmul.mubr.f32.gmra.mrb[0].mxu0 %v3523
    %v3606 = vpop.f32.mrb[0].mxu0
    %v3607 = vadd.f32 0.0, %v3606
    %v3608 = vpop.f32.mrb[0].mxu0
    %3609 = vmatprep.mubr.f32.mxu0 0.0
    %3610 = vmatmul.mubr.f32.gmra.mrb[0].mxu0 %v3526
    %v3611 = vpop.f32.mrb[0].mxu0
    %v3612 = vadd.f32 0.0, %v3611
    %v3613 = vpop.f32.mrb[0].mxu0
    %3614 = vdwg.mxu0
    %v3615 = vadd.f32 %v3496, %v3597
    %v3616 = vadd.f32 %v3497, %v3602
    %v3617 = vadd.f32 %v3498, %v3607
    %v3618 = vadd.f32 %v3499, %v3612
    %s3619 = scalar_lea.vmem [#allocation2], 544
    %v3620 = vld [vmem:[%s3619] sm:$0xff]
    %v3621 = vld [vmem:[%s3619 + $0x8] sm:$0xff]
    %v3622 = vld [vmem:[%s3619 + $0x10] sm:$0xff]
    %v3623 = vld [vmem:[%s3619 + $0x18] sm:$0x3]
    %3624 = vrot.lane.b32.xlu0 %v1556, 44
    %v3625 = vpop.permute.xlu0 %3624
    %3626 = vrot.lane.b32.xlu0 %v1562, 44
    %v3627 = vpop.permute.xlu0 %3626
    %3628 = vrot.lane.b32.xlu0 %v1568, 44
    %v3629 = vpop.permute.xlu0 %3628
    %3630 = vrot.lane.b32.xlu0 %v1574, 44
    %v3631 = vpop.permute.xlu0 %3630
    %v3636 = vsel %vm1602, %v3620, 0
    %v3639 = vsel %vm1602, %v3621, 0
    %v3642 = vsel %vm1602, %v3622, 0
    %v3645 = vsel %vm1602, %v3623, 0
    %v3647 = vsel %vm323, %v3631, 0
    %3649 = vmatprep.subr.mxu0 0.0
    %3650 = vmatpush1.msra.mxu0 %v3625
    %3651 = vmatprep.subr.mxu0 0.0
    %3652 = vmatpush1.msra.mxu0 %v3627
    %3653 = vmatprep.subr.mxu0 0.0
    %3654 = vmatpush1.msra.mxu0 %v3629
    %3655 = vmatprep.subr.mxu0 0.0
    %3656 = vmatpush1.msra.mxu0 %v3647
    %3657 = vmatprep.subr.mxu0 0.0
    %3658 = vmatpush1.msra.mxu0 0.0
    %3659 = vmatprep.subr.mxu0 0.0
    %3660 = vmatpush1.msra.mxu0 0.0
    %3661 = vmatprep.subr.mxu0 0.0
    %3662 = vmatpush1.msra.mxu0 0.0
    %3663 = vmatprep.subr.mxu0 0.0
    %3664 = vmatpush1.msra.mxu0 0.0
    %3665 = vmatprep.subr.mxu0 0.0
    %3666 = vmatpush1.msra.mxu0 0.0
    %3667 = vmatprep.subr.mxu0 0.0
    %3668 = vmatpush1.msra.mxu0 0.0
    %3669 = vmatprep.subr.mxu0 0.0
    %3670 = vmatpush1.msra.mxu0 0.0
    %3671 = vmatprep.subr.mxu0 0.0
    %3672 = vmatpush1.msra.mxu0 0.0
    %3673 = vmatprep.subr.mxu0 0.0
    %3674 = vmatpush1.msra.mxu0 0.0
    %3675 = vmatprep.subr.mxu0 0.0
    %3676 = vmatpush1.msra.mxu0 0.0
    %3677 = vmatprep.subr.mxu0 0.0
    %3678 = vmatpush1.msra.mxu0 0.0
    %3679 = vmatprep.subr.mxu0 0.0
    %3680 = vmatpush1.msra.mxu0 0.0
    %3681 = vmatprep.subr.mxu0 0.0
    %3682 = vmatpush1.msra.mxu0 0.0
    %3683 = vmatprep.subr.mxu0 0.0
    %3684 = vmatpush1.msra.mxu0 0.0
    %3685 = vmatprep.subr.mxu0 0.0
    %3686 = vmatpush1.msra.mxu0 0.0
    %3687 = vmatprep.subr.mxu0 0.0
    %3688 = vmatpush1.msra.mxu0 0.0
    %3689 = vmatprep.subr.mxu0 0.0
    %3690 = vmatpush1.msra.mxu0 0.0
    %3691 = vmatprep.subr.mxu0 0.0
    %3692 = vmatpush1.msra.mxu0 0.0
    %3693 = vmatprep.subr.mxu0 0.0
    %3694 = vmatpush1.msra.mxu0 0.0
    %3695 = vmatprep.subr.mxu0 0.0
    %3696 = vmatpush1.msra.mxu0 0.0
    %3697 = vmatprep.subr.mxu0 0.0
    %3698 = vmatpush1.msra.mxu0 0.0
    %3699 = vmatprep.subr.mxu0 0.0
    %3700 = vmatpush1.msra.mxu0 0.0
    %3701 = vmatprep.subr.mxu0 0.0
    %3702 = vmatpush1.msra.mxu0 0.0
    %3703 = vmatprep.subr.mxu0 0.0
    %3704 = vmatpush1.msra.mxu0 0.0
    %3705 = vmatprep.subr.mxu0 0.0
    %3706 = vmatpush1.msra.mxu0 0.0
    %3707 = vmatprep.subr.mxu0 0.0
    %3708 = vmatpush1.msra.mxu0 0.0
    %3709 = vmatprep.subr.mxu0 0.0
    %3710 = vmatpush1.msra.mxu0 0.0
    %3711 = vmatprep.subr.mxu0 0.0
    %3712 = vmatpush1.msra.mxu0 0.0
    %3713 = vmatprep.mubr.f32.mxu0 0.0
    %3714 = vmatmul.mubr.f32.gmra.mrb[0].mxu0 %v3636
    %v3715 = vpop.f32.mrb[0].mxu0
    %v3716 = vadd.f32 0.0, %v3715
    %v3717 = vpop.f32.mrb[0].mxu0
    %3718 = vmatprep.mubr.f32.mxu0 0.0
    %3719 = vmatmul.mubr.f32.gmra.mrb[0].mxu0 %v3639
    %v3720 = vpop.f32.mrb[0].mxu0
    %v3721 = vadd.f32 0.0, %v3720
    %v3722 = vpop.f32.mrb[0].mxu0
    %3723 = vmatprep.mubr.f32.mxu0 0.0
    %3724 = vmatmul.mubr.f32.gmra.mrb[0].mxu0 %v3642
    %v3725 = vpop.f32.mrb[0].mxu0
    %v3726 = vadd.f32 0.0, %v3725
    %v3727 = vpop.f32.mrb[0].mxu0
    %3728 = vmatprep.mubr.f32.mxu0 0.0
    %3729 = vmatmul.mubr.f32.gmra.mrb[0].mxu0 %v3645
    %v3730 = vpop.f32.mrb[0].mxu0
    %v3731 = vadd.f32 0.0, %v3730
    %v3732 = vpop.f32.mrb[0].mxu0
    %3733 = vdwg.mxu0
    %v3734 = vadd.f32 %v3615, %v3716
    %v3735 = vadd.f32 %v3616, %v3721
    %v3736 = vadd.f32 %v3617, %v3726
    %v3737 = vadd.f32 %v3618, %v3731
    %s3738 = scalar_lea.vmem [#allocation2], 576
    %v3739 = vld [vmem:[%s3738] sm:$0xff]
    %v3740 = vld [vmem:[%s3738 + $0x8] sm:$0xff]
    %v3741 = vld [vmem:[%s3738 + $0x10] sm:$0xff]
    %v3742 = vld [vmem:[%s3738 + $0x18] sm:$0x3]
    %3743 = vrot.lane.b32.xlu0 %v1556, 24
    %v3744 = vpop.permute.xlu0 %3743
    %3745 = vrot.lane.b32.xlu0 %v1562, 24
    %v3746 = vpop.permute.xlu0 %3745
    %3747 = vrot.lane.b32.xlu0 %v1568, 24
    %v3748 = vpop.permute.xlu0 %3747
    %3749 = vrot.lane.b32.xlu0 %v1574, 24
    %v3750 = vpop.permute.xlu0 %3749
    %v3755 = vsel %vm1602, %v3739, 0
    %v3758 = vsel %vm1602, %v3740, 0
    %v3761 = vsel %vm1602, %v3741, 0
    %v3764 = vsel %vm1602, %v3742, 0
    %v3766 = vsel %vm323, %v3750, 0
    %3768 = vmatprep.subr.mxu0 0.0
    %3769 = vmatpush1.msra.mxu0 %v3744
    %3770 = vmatprep.subr.mxu0 0.0
    %3771 = vmatpush1.msra.mxu0 %v3746
    %3772 = vmatprep.subr.mxu0 0.0
    %3773 = vmatpush1.msra.mxu0 %v3748
    %3774 = vmatprep.subr.mxu0 0.0
    %3775 = vmatpush1.msra.mxu0 %v3766
    %3776 = vmatprep.subr.mxu0 0.0
    %3777 = vmatpush1.msra.mxu0 0.0
    %3778 = vmatprep.subr.mxu0 0.0
    %3779 = vmatpush1.msra.mxu0 0.0
    %3780 = vmatprep.subr.mxu0 0.0
    %3781 = vmatpush1.msra.mxu0 0.0
    %3782 = vmatprep.subr.mxu0 0.0
    %3783 = vmatpush1.msra.mxu0 0.0
    %3784 = vmatprep.subr.mxu0 0.0
    %3785 = vmatpush1.msra.mxu0 0.0
    %3786 = vmatprep.subr.mxu0 0.0
    %3787 = vmatpush1.msra.mxu0 0.0
    %3788 = vmatprep.subr.mxu0 0.0
    %3789 = vmatpush1.msra.mxu0 0.0
    %3790 = vmatprep.subr.mxu0 0.0
    %3791 = vmatpush1.msra.mxu0 0.0
    %3792 = vmatprep.subr.mxu0 0.0
    %3793 = vmatpush1.msra.mxu0 0.0
    %3794 = vmatprep.subr.mxu0 0.0
    %3795 = vmatpush1.msra.mxu0 0.0
    %3796 = vmatprep.subr.mxu0 0.0
    %3797 = vmatpush1.msra.mxu0 0.0
    %3798 = vmatprep.subr.mxu0 0.0
    %3799 = vmatpush1.msra.mxu0 0.0
    %3800 = vmatprep.subr.mxu0 0.0
    %3801 = vmatpush1.msra.mxu0 0.0
    %3802 = vmatprep.subr.mxu0 0.0
    %3803 = vmatpush1.msra.mxu0 0.0
    %3804 = vmatprep.subr.mxu0 0.0
    %3805 = vmatpush1.msra.mxu0 0.0
    %3806 = vmatprep.subr.mxu0 0.0
    %3807 = vmatpush1.msra.mxu0 0.0
    %3808 = vmatprep.subr.mxu0 0.0
    %3809 = vmatpush1.msra.mxu0 0.0
    %3810 = vmatprep.subr.mxu0 0.0
    %3811 = vmatpush1.msra.mxu0 0.0
    %3812 = vmatprep.subr.mxu0 0.0
    %3813 = vmatpush1.msra.mxu0 0.0
    %3814 = vmatprep.subr.mxu0 0.0
    %3815 = vmatpush1.msra.mxu0 0.0
    %3816 = vmatprep.subr.mxu0 0.0
    %3817 = vmatpush1.msra.mxu0 0.0
    %3818 = vmatprep.subr.mxu0 0.0
    %3819 = vmatpush1.msra.mxu0 0.0
    %3820 = vmatprep.subr.mxu0 0.0
    %3821 = vmatpush1.msra.mxu0 0.0
    %3822 = vmatprep.subr.mxu0 0.0
    %3823 = vmatpush1.msra.mxu0 0.0
    %3824 = vmatprep.subr.mxu0 0.0
    %3825 = vmatpush1.msra.mxu0 0.0
    %3826 = vmatprep.subr.mxu0 0.0
    %3827 = vmatpush1.msra.mxu0 0.0
    %3828 = vmatprep.subr.mxu0 0.0
    %3829 = vmatpush1.msra.mxu0 0.0
    %3830 = vmatprep.subr.mxu0 0.0
    %3831 = vmatpush1.msra.mxu0 0.0
    %3832 = vmatprep.mubr.f32.mxu0 0.0
    %3833 = vmatmul.mubr.f32.gmra.mrb[0].mxu0 %v3755
    %v3834 = vpop.f32.mrb[0].mxu0
    %v3835 = vadd.f32 0.0, %v3834
    %v3836 = vpop.f32.mrb[0].mxu0
    %3837 = vmatprep.mubr.f32.mxu0 0.0
    %3838 = vmatmul.mubr.f32.gmra.mrb[0].mxu0 %v3758
    %v3839 = vpop.f32.mrb[0].mxu0
    %v3840 = vadd.f32 0.0, %v3839
    %v3841 = vpop.f32.mrb[0].mxu0
    %3842 = vmatprep.mubr.f32.mxu0 0.0
    %3843 = vmatmul.mubr.f32.gmra.mrb[0].mxu0 %v3761
    %v3844 = vpop.f32.mrb[0].mxu0
    %v3845 = vadd.f32 0.0, %v3844
    %v3846 = vpop.f32.mrb[0].mxu0
    %3847 = vmatprep.mubr.f32.mxu0 0.0
    %3848 = vmatmul.mubr.f32.gmra.mrb[0].mxu0 %v3764
    %v3849 = vpop.f32.mrb[0].mxu0
    %v3850 = vadd.f32 0.0, %v3849
    %v3851 = vpop.f32.mrb[0].mxu0
    %3852 = vdwg.mxu0
    %v3853 = vadd.f32 %v3734, %v3835
    %v3854 = vadd.f32 %v3735, %v3840
    %v3855 = vadd.f32 %v3736, %v3845
    %v3856 = vadd.f32 %v3737, %v3850
    %s3857 = scalar_lea.vmem [#allocation2], 608
    %v3858 = vld [vmem:[%s3857] sm:$0xff]
    %v3859 = vld [vmem:[%s3857 + $0x8] sm:$0xff]
    %v3860 = vld [vmem:[%s3857 + $0x10] sm:$0xff]
    %v3861 = vld [vmem:[%s3857 + $0x18] sm:$0x3]
    %3866 = vrot.lane.b32.xlu0 %v1556, 4
    %v3867 = vpop.permute.xlu0 %3866
    %3868 = vrot.lane.b32.xlu0 %v1558, 4
    %v3869 = vpop.permute.xlu0 %3868
    %3870 = vrot.lane.b32.xlu0 %v1562, 4
    %v3871 = vpop.permute.xlu0 %3870
    %3872 = vrot.lane.b32.xlu0 %v1564, 4
    %v3873 = vpop.permute.xlu0 %3872
    %3874 = vrot.lane.b32.xlu0 %v1568, 4
    %v3875 = vpop.permute.xlu0 %3874
    %3876 = vrot.lane.b32.xlu0 %v1570, 4
    %v3877 = vpop.permute.xlu0 %3876
    %3878 = vrot.lane.b32.xlu0 %v1574, 4
    %v3879 = vpop.permute.xlu0 %3878
    %3880 = vrot.lane.b32.xlu0 %v1576, 4
    %v3881 = vpop.permute.xlu0 %3880
    %vm3882 = vcmask 31744
    %v3883 = vsel %vm3882, %v3867, %v3869
    %v3884 = vsel %vm3882, %v3871, %v3873
    %v3885 = vsel %vm3882, %v3875, %v3877
    %v3886 = vsel %vm3882, %v3879, %v3881
    %v3891 = vsel %vm1602, %v3858, 0
    %v3894 = vsel %vm1602, %v3859, 0
    %v3897 = vsel %vm1602, %v3860, 0
    %v3900 = vsel %vm1602, %v3861, 0
    %v3902 = vsel %vm323, %v3886, 0
    %3904 = vmatprep.subr.mxu0 0.0
    %3905 = vmatpush1.msra.mxu0 %v3883
    %3906 = vmatprep.subr.mxu0 0.0
    %3907 = vmatpush1.msra.mxu0 %v3884
    %3908 = vmatprep.subr.mxu0 0.0
    %3909 = vmatpush1.msra.mxu0 %v3885
    %3910 = vmatprep.subr.mxu0 0.0
    %3911 = vmatpush1.msra.mxu0 %v3902
    %3912 = vmatprep.subr.mxu0 0.0
    %3913 = vmatpush1.msra.mxu0 0.0
    %3914 = vmatprep.subr.mxu0 0.0
    %3915 = vmatpush1.msra.mxu0 0.0
    %3916 = vmatprep.subr.mxu0 0.0
    %3917 = vmatpush1.msra.mxu0 0.0
    %3918 = vmatprep.subr.mxu0 0.0
    %3919 = vmatpush1.msra.mxu0 0.0
    %3920 = vmatprep.subr.mxu0 0.0
    %3921 = vmatpush1.msra.mxu0 0.0
    %3922 = vmatprep.subr.mxu0 0.0
    %3923 = vmatpush1.msra.mxu0 0.0
    %3924 = vmatprep.subr.mxu0 0.0
    %3925 = vmatpush1.msra.mxu0 0.0
    %3926 = vmatprep.subr.mxu0 0.0
    %3927 = vmatpush1.msra.mxu0 0.0
    %3928 = vmatprep.subr.mxu0 0.0
    %3929 = vmatpush1.msra.mxu0 0.0
    %3930 = vmatprep.subr.mxu0 0.0
    %3931 = vmatpush1.msra.mxu0 0.0
    %3932 = vmatprep.subr.mxu0 0.0
    %3933 = vmatpush1.msra.mxu0 0.0
    %3934 = vmatprep.subr.mxu0 0.0
    %3935 = vmatpush1.msra.mxu0 0.0
    %3936 = vmatprep.subr.mxu0 0.0
    %3937 = vmatpush1.msra.mxu0 0.0
    %3938 = vmatprep.subr.mxu0 0.0
    %3939 = vmatpush1.msra.mxu0 0.0
    %3940 = vmatprep.subr.mxu0 0.0
    %3941 = vmatpush1.msra.mxu0 0.0
    %3942 = vmatprep.subr.mxu0 0.0
    %3943 = vmatpush1.msra.mxu0 0.0
    %3944 = vmatprep.subr.mxu0 0.0
    %3945 = vmatpush1.msra.mxu0 0.0
    %3946 = vmatprep.subr.mxu0 0.0
    %3947 = vmatpush1.msra.mxu0 0.0
    %3948 = vmatprep.subr.mxu0 0.0
    %3949 = vmatpush1.msra.mxu0 0.0
    %3950 = vmatprep.subr.mxu0 0.0
    %3951 = vmatpush1.msra.mxu0 0.0
    %3952 = vmatprep.subr.mxu0 0.0
    %3953 = vmatpush1.msra.mxu0 0.0
    %3954 = vmatprep.subr.mxu0 0.0
    %3955 = vmatpush1.msra.mxu0 0.0
    %3956 = vmatprep.subr.mxu0 0.0
    %3957 = vmatpush1.msra.mxu0 0.0
    %3958 = vmatprep.subr.mxu0 0.0
    %3959 = vmatpush1.msra.mxu0 0.0
    %3960 = vmatprep.subr.mxu0 0.0
    %3961 = vmatpush1.msra.mxu0 0.0
    %3962 = vmatprep.subr.mxu0 0.0
    %3963 = vmatpush1.msra.mxu0 0.0
    %3964 = vmatprep.subr.mxu0 0.0
    %3965 = vmatpush1.msra.mxu0 0.0
    %3966 = vmatprep.subr.mxu0 0.0
    %3967 = vmatpush1.msra.mxu0 0.0
    %3968 = vmatprep.mubr.f32.mxu0 0.0
    %3969 = vmatmul.mubr.f32.gmra.mrb[0].mxu0 %v3891
    %v3970 = vpop.f32.mrb[0].mxu0
    %v3971 = vadd.f32 0.0, %v3970
    %v3972 = vpop.f32.mrb[0].mxu0
    %3973 = vmatprep.mubr.f32.mxu0 0.0
    %3974 = vmatmul.mubr.f32.gmra.mrb[0].mxu0 %v3894
    %v3975 = vpop.f32.mrb[0].mxu0
    %v3976 = vadd.f32 0.0, %v3975
    %v3977 = vpop.f32.mrb[0].mxu0
    %3978 = vmatprep.mubr.f32.mxu0 0.0
    %3979 = vmatmul.mubr.f32.gmra.mrb[0].mxu0 %v3897
    %v3980 = vpop.f32.mrb[0].mxu0
    %v3981 = vadd.f32 0.0, %v3980
    %v3982 = vpop.f32.mrb[0].mxu0
    %3983 = vmatprep.mubr.f32.mxu0 0.0
    %3984 = vmatmul.mubr.f32.gmra.mrb[0].mxu0 %v3900
    %v3985 = vpop.f32.mrb[0].mxu0
    %v3986 = vadd.f32 0.0, %v3985
    %v3987 = vpop.f32.mrb[0].mxu0
    %3988 = vdwg.mxu0
    %v3989 = vadd.f32 %v3853, %v3971
    %v3990 = vadd.f32 %v3854, %v3976
    %v3991 = vadd.f32 %v3855, %v3981
    %v3992 = vadd.f32 %v3856, %v3986
    %s3993 = scalar_lea.vmem [#allocation2], 640
    %v3994 = vld [vmem:[%s3993] sm:$0xff]
    %v3995 = vld [vmem:[%s3993 + $0x8] sm:$0xff]
    %v3996 = vld [vmem:[%s3993 + $0x10] sm:$0xff]
    %v3997 = vld [vmem:[%s3993 + $0x18] sm:$0x3]
    %3998 = vrot.lane.b32.xlu0 %v1558, 112
    %v3999 = vpop.permute.xlu0 %3998
    %4000 = vrot.lane.b32.xlu0 %v1564, 112
    %v4001 = vpop.permute.xlu0 %4000
    %4002 = vrot.lane.b32.xlu0 %v1570, 112
    %v4003 = vpop.permute.xlu0 %4002
    %4004 = vrot.lane.b32.xlu0 %v1576, 112
    %v4005 = vpop.permute.xlu0 %4004
    %v4010 = vsel %vm1602, %v3994, 0
    %v4013 = vsel %vm1602, %v3995, 0
    %v4016 = vsel %vm1602, %v3996, 0
    %v4019 = vsel %vm1602, %v3997, 0
    %v4021 = vsel %vm323, %v4005, 0
    %4023 = vmatprep.subr.mxu0 0.0
    %4024 = vmatpush1.msra.mxu0 %v3999
    %4025 = vmatprep.subr.mxu0 0.0
    %4026 = vmatpush1.msra.mxu0 %v4001
    %4027 = vmatprep.subr.mxu0 0.0
    %4028 = vmatpush1.msra.mxu0 %v4003
    %4029 = vmatprep.subr.mxu0 0.0
    %4030 = vmatpush1.msra.mxu0 %v4021
    %4031 = vmatprep.subr.mxu0 0.0
    %4032 = vmatpush1.msra.mxu0 0.0
    %4033 = vmatprep.subr.mxu0 0.0
    %4034 = vmatpush1.msra.mxu0 0.0
    %4035 = vmatprep.subr.mxu0 0.0
    %4036 = vmatpush1.msra.mxu0 0.0
    %4037 = vmatprep.subr.mxu0 0.0
    %4038 = vmatpush1.msra.mxu0 0.0
    %4039 = vmatprep.subr.mxu0 0.0
    %4040 = vmatpush1.msra.mxu0 0.0
    %4041 = vmatprep.subr.mxu0 0.0
    %4042 = vmatpush1.msra.mxu0 0.0
    %4043 = vmatprep.subr.mxu0 0.0
    %4044 = vmatpush1.msra.mxu0 0.0
    %4045 = vmatprep.subr.mxu0 0.0
    %4046 = vmatpush1.msra.mxu0 0.0
    %4047 = vmatprep.subr.mxu0 0.0
    %4048 = vmatpush1.msra.mxu0 0.0
    %4049 = vmatprep.subr.mxu0 0.0
    %4050 = vmatpush1.msra.mxu0 0.0
    %4051 = vmatprep.subr.mxu0 0.0
    %4052 = vmatpush1.msra.mxu0 0.0
    %4053 = vmatprep.subr.mxu0 0.0
    %4054 = vmatpush1.msra.mxu0 0.0
    %4055 = vmatprep.subr.mxu0 0.0
    %4056 = vmatpush1.msra.mxu0 0.0
    %4057 = vmatprep.subr.mxu0 0.0
    %4058 = vmatpush1.msra.mxu0 0.0
    %4059 = vmatprep.subr.mxu0 0.0
    %4060 = vmatpush1.msra.mxu0 0.0
    %4061 = vmatprep.subr.mxu0 0.0
    %4062 = vmatpush1.msra.mxu0 0.0
    %4063 = vmatprep.subr.mxu0 0.0
    %4064 = vmatpush1.msra.mxu0 0.0
    %4065 = vmatprep.subr.mxu0 0.0
    %4066 = vmatpush1.msra.mxu0 0.0
    %4067 = vmatprep.subr.mxu0 0.0
    %4068 = vmatpush1.msra.mxu0 0.0
    %4069 = vmatprep.subr.mxu0 0.0
    %4070 = vmatpush1.msra.mxu0 0.0
    %4071 = vmatprep.subr.mxu0 0.0
    %4072 = vmatpush1.msra.mxu0 0.0
    %4073 = vmatprep.subr.mxu0 0.0
    %4074 = vmatpush1.msra.mxu0 0.0
    %4075 = vmatprep.subr.mxu0 0.0
    %4076 = vmatpush1.msra.mxu0 0.0
    %4077 = vmatprep.subr.mxu0 0.0
    %4078 = vmatpush1.msra.mxu0 0.0
    %4079 = vmatprep.subr.mxu0 0.0
    %4080 = vmatpush1.msra.mxu0 0.0
    %4081 = vmatprep.subr.mxu0 0.0
    %4082 = vmatpush1.msra.mxu0 0.0
    %4083 = vmatprep.subr.mxu0 0.0
    %4084 = vmatpush1.msra.mxu0 0.0
    %4085 = vmatprep.subr.mxu0 0.0
    %4086 = vmatpush1.msra.mxu0 0.0
    %4087 = vmatprep.mubr.f32.mxu0 0.0
    %4088 = vmatmul.mubr.f32.gmra.mrb[0].mxu0 %v4010
    %v4089 = vpop.f32.mrb[0].mxu0
    %v4090 = vadd.f32 0.0, %v4089
    %v4091 = vpop.f32.mrb[0].mxu0
    %4092 = vmatprep.mubr.f32.mxu0 0.0
    %4093 = vmatmul.mubr.f32.gmra.mrb[0].mxu0 %v4013
    %v4094 = vpop.f32.mrb[0].mxu0
    %v4095 = vadd.f32 0.0, %v4094
    %v4096 = vpop.f32.mrb[0].mxu0
    %4097 = vmatprep.mubr.f32.mxu0 0.0
    %4098 = vmatmul.mubr.f32.gmra.mrb[0].mxu0 %v4016
    %v4099 = vpop.f32.mrb[0].mxu0
    %v4100 = vadd.f32 0.0, %v4099
    %v4101 = vpop.f32.mrb[0].mxu0
    %4102 = vmatprep.mubr.f32.mxu0 0.0
    %4103 = vmatmul.mubr.f32.gmra.mrb[0].mxu0 %v4019
    %v4104 = vpop.f32.mrb[0].mxu0
    %v4105 = vadd.f32 0.0, %v4104
    %v4106 = vpop.f32.mrb[0].mxu0
    %4107 = vdwg.mxu0
    %v4108 = vadd.f32 %v3989, %v4090
    %v4109 = vadd.f32 %v3990, %v4095
    %v4110 = vadd.f32 %v3991, %v4100
    %v4111 = vadd.f32 %v3992, %v4105
    %s4112 = scalar_lea.vmem [#allocation2], 672
    %v4113 = vld [vmem:[%s4112] sm:$0xff]
    %v4114 = vld [vmem:[%s4112 + $0x8] sm:$0xff]
    %v4115 = vld [vmem:[%s4112 + $0x10] sm:$0xff]
    %v4116 = vld [vmem:[%s4112 + $0x18] sm:$0x3]
    %4117 = vrot.lane.b32.xlu0 %v1558, 92
    %v4118 = vpop.permute.xlu0 %4117
    %4119 = vrot.lane.b32.xlu0 %v1564, 92
    %v4120 = vpop.permute.xlu0 %4119
    %4121 = vrot.lane.b32.xlu0 %v1570, 92
    %v4122 = vpop.permute.xlu0 %4121
    %4123 = vrot.lane.b32.xlu0 %v1576, 92
    %v4124 = vpop.permute.xlu0 %4123
    %v4129 = vsel %vm1602, %v4113, 0
    %v4132 = vsel %vm1602, %v4114, 0
    %v4135 = vsel %vm1602, %v4115, 0
    %v4138 = vsel %vm1602, %v4116, 0
    %v4140 = vsel %vm323, %v4124, 0
    %4142 = vmatprep.subr.mxu0 0.0
    %4143 = vmatpush1.msra.mxu0 %v4118
    %4144 = vmatprep.subr.mxu0 0.0
    %4145 = vmatpush1.msra.mxu0 %v4120
    %4146 = vmatprep.subr.mxu0 0.0
    %4147 = vmatpush1.msra.mxu0 %v4122
    %4148 = vmatprep.subr.mxu0 0.0
    %4149 = vmatpush1.msra.mxu0 %v4140
    %4150 = vmatprep.subr.mxu0 0.0
    %4151 = vmatpush1.msra.mxu0 0.0
    %4152 = vmatprep.subr.mxu0 0.0
    %4153 = vmatpush1.msra.mxu0 0.0
    %4154 = vmatprep.subr.mxu0 0.0
    %4155 = vmatpush1.msra.mxu0 0.0
    %4156 = vmatprep.subr.mxu0 0.0
    %4157 = vmatpush1.msra.mxu0 0.0
    %4158 = vmatprep.subr.mxu0 0.0
    %4159 = vmatpush1.msra.mxu0 0.0
    %4160 = vmatprep.subr.mxu0 0.0
    %4161 = vmatpush1.msra.mxu0 0.0
    %4162 = vmatprep.subr.mxu0 0.0
    %4163 = vmatpush1.msra.mxu0 0.0
    %4164 = vmatprep.subr.mxu0 0.0
    %4165 = vmatpush1.msra.mxu0 0.0
    %4166 = vmatprep.subr.mxu0 0.0
    %4167 = vmatpush1.msra.mxu0 0.0
    %4168 = vmatprep.subr.mxu0 0.0
    %4169 = vmatpush1.msra.mxu0 0.0
    %4170 = vmatprep.subr.mxu0 0.0
    %4171 = vmatpush1.msra.mxu0 0.0
    %4172 = vmatprep.subr.mxu0 0.0
    %4173 = vmatpush1.msra.mxu0 0.0
    %4174 = vmatprep.subr.mxu0 0.0
    %4175 = vmatpush1.msra.mxu0 0.0
    %4176 = vmatprep.subr.mxu0 0.0
    %4177 = vmatpush1.msra.mxu0 0.0
    %4178 = vmatprep.subr.mxu0 0.0
    %4179 = vmatpush1.msra.mxu0 0.0
    %4180 = vmatprep.subr.mxu0 0.0
    %4181 = vmatpush1.msra.mxu0 0.0
    %4182 = vmatprep.subr.mxu0 0.0
    %4183 = vmatpush1.msra.mxu0 0.0
    %4184 = vmatprep.subr.mxu0 0.0
    %4185 = vmatpush1.msra.mxu0 0.0
    %4186 = vmatprep.subr.mxu0 0.0
    %4187 = vmatpush1.msra.mxu0 0.0
    %4188 = vmatprep.subr.mxu0 0.0
    %4189 = vmatpush1.msra.mxu0 0.0
    %4190 = vmatprep.subr.mxu0 0.0
    %4191 = vmatpush1.msra.mxu0 0.0
    %4192 = vmatprep.subr.mxu0 0.0
    %4193 = vmatpush1.msra.mxu0 0.0
    %4194 = vmatprep.subr.mxu0 0.0
    %4195 = vmatpush1.msra.mxu0 0.0
    %4196 = vmatprep.subr.mxu0 0.0
    %4197 = vmatpush1.msra.mxu0 0.0
    %4198 = vmatprep.subr.mxu0 0.0
    %4199 = vmatpush1.msra.mxu0 0.0
    %4200 = vmatprep.subr.mxu0 0.0
    %4201 = vmatpush1.msra.mxu0 0.0
    %4202 = vmatprep.subr.mxu0 0.0
    %4203 = vmatpush1.msra.mxu0 0.0
    %4204 = vmatprep.subr.mxu0 0.0
    %4205 = vmatpush1.msra.mxu0 0.0
    %4206 = vmatprep.mubr.f32.mxu0 0.0
    %4207 = vmatmul.mubr.f32.gmra.mrb[0].mxu0 %v4129
    %v4208 = vpop.f32.mrb[0].mxu0
    %v4209 = vadd.f32 0.0, %v4208
    %v4210 = vpop.f32.mrb[0].mxu0
    %4211 = vmatprep.mubr.f32.mxu0 0.0
    %4212 = vmatmul.mubr.f32.gmra.mrb[0].mxu0 %v4132
    %v4213 = vpop.f32.mrb[0].mxu0
    %v4214 = vadd.f32 0.0, %v4213
    %v4215 = vpop.f32.mrb[0].mxu0
    %4216 = vmatprep.mubr.f32.mxu0 0.0
    %4217 = vmatmul.mubr.f32.gmra.mrb[0].mxu0 %v4135
    %v4218 = vpop.f32.mrb[0].mxu0
    %v4219 = vadd.f32 0.0, %v4218
    %v4220 = vpop.f32.mrb[0].mxu0
    %4221 = vmatprep.mubr.f32.mxu0 0.0
    %4222 = vmatmul.mubr.f32.gmra.mrb[0].mxu0 %v4138
    %v4223 = vpop.f32.mrb[0].mxu0
    %v4224 = vadd.f32 0.0, %v4223
    %v4225 = vpop.f32.mrb[0].mxu0
    %4226 = vdwg.mxu0
    %v4227 = vadd.f32 %v4108, %v4209
    %v4228 = vadd.f32 %v4109, %v4214
    %v4229 = vadd.f32 %v4110, %v4219
    %v4230 = vadd.f32 %v4111, %v4224
    %s4231 = scalar_lea.vmem [#allocation2], 704
    %v4232 = vld [vmem:[%s4231] sm:$0xff]
    %v4233 = vld [vmem:[%s4231 + $0x8] sm:$0xff]
    %v4234 = vld [vmem:[%s4231 + $0x10] sm:$0xff]
    %v4235 = vld [vmem:[%s4231 + $0x18] sm:$0x3]
    %4236 = vrot.lane.b32.xlu0 %v1558, 72
    %v4237 = vpop.permute.xlu0 %4236
    %4238 = vrot.lane.b32.xlu0 %v1564, 72
    %v4239 = vpop.permute.xlu0 %4238
    %4240 = vrot.lane.b32.xlu0 %v1570, 72
    %v4241 = vpop.permute.xlu0 %4240
    %4242 = vrot.lane.b32.xlu0 %v1576, 72
    %v4243 = vpop.permute.xlu0 %4242
    %v4248 = vsel %vm1602, %v4232, 0
    %v4251 = vsel %vm1602, %v4233, 0
    %v4254 = vsel %vm1602, %v4234, 0
    %v4257 = vsel %vm1602, %v4235, 0
    %v4259 = vsel %vm323, %v4243, 0
    %4261 = vmatprep.subr.mxu0 0.0
    %4262 = vmatpush1.msra.mxu0 %v4237
    %4263 = vmatprep.subr.mxu0 0.0
    %4264 = vmatpush1.msra.mxu0 %v4239
    %4265 = vmatprep.subr.mxu0 0.0
    %4266 = vmatpush1.msra.mxu0 %v4241
    %4267 = vmatprep.subr.mxu0 0.0
    %4268 = vmatpush1.msra.mxu0 %v4259
    %4269 = vmatprep.subr.mxu0 0.0
    %4270 = vmatpush1.msra.mxu0 0.0
    %4271 = vmatprep.subr.mxu0 0.0
    %4272 = vmatpush1.msra.mxu0 0.0
    %4273 = vmatprep.subr.mxu0 0.0
    %4274 = vmatpush1.msra.mxu0 0.0
    %4275 = vmatprep.subr.mxu0 0.0
    %4276 = vmatpush1.msra.mxu0 0.0
    %4277 = vmatprep.subr.mxu0 0.0
    %4278 = vmatpush1.msra.mxu0 0.0
    %4279 = vmatprep.subr.mxu0 0.0
    %4280 = vmatpush1.msra.mxu0 0.0
    %4281 = vmatprep.subr.mxu0 0.0
    %4282 = vmatpush1.msra.mxu0 0.0
    %4283 = vmatprep.subr.mxu0 0.0
    %4284 = vmatpush1.msra.mxu0 0.0
    %4285 = vmatprep.subr.mxu0 0.0
    %4286 = vmatpush1.msra.mxu0 0.0
    %4287 = vmatprep.subr.mxu0 0.0
    %4288 = vmatpush1.msra.mxu0 0.0
    %4289 = vmatprep.subr.mxu0 0.0
    %4290 = vmatpush1.msra.mxu0 0.0
    %4291 = vmatprep.subr.mxu0 0.0
    %4292 = vmatpush1.msra.mxu0 0.0
    %4293 = vmatprep.subr.mxu0 0.0
    %4294 = vmatpush1.msra.mxu0 0.0
    %4295 = vmatprep.subr.mxu0 0.0
    %4296 = vmatpush1.msra.mxu0 0.0
    %4297 = vmatprep.subr.mxu0 0.0
    %4298 = vmatpush1.msra.mxu0 0.0
    %4299 = vmatprep.subr.mxu0 0.0
    %4300 = vmatpush1.msra.mxu0 0.0
    %4301 = vmatprep.subr.mxu0 0.0
    %4302 = vmatpush1.msra.mxu0 0.0
    %4303 = vmatprep.subr.mxu0 0.0
    %4304 = vmatpush1.msra.mxu0 0.0
    %4305 = vmatprep.subr.mxu0 0.0
    %4306 = vmatpush1.msra.mxu0 0.0
    %4307 = vmatprep.subr.mxu0 0.0
    %4308 = vmatpush1.msra.mxu0 0.0
    %4309 = vmatprep.subr.mxu0 0.0
    %4310 = vmatpush1.msra.mxu0 0.0
    %4311 = vmatprep.subr.mxu0 0.0
    %4312 = vmatpush1.msra.mxu0 0.0
    %4313 = vmatprep.subr.mxu0 0.0
    %4314 = vmatpush1.msra.mxu0 0.0
    %4315 = vmatprep.subr.mxu0 0.0
    %4316 = vmatpush1.msra.mxu0 0.0
    %4317 = vmatprep.subr.mxu0 0.0
    %4318 = vmatpush1.msra.mxu0 0.0
    %4319 = vmatprep.subr.mxu0 0.0
    %4320 = vmatpush1.msra.mxu0 0.0
    %4321 = vmatprep.subr.mxu0 0.0
    %4322 = vmatpush1.msra.mxu0 0.0
    %4323 = vmatprep.subr.mxu0 0.0
    %4324 = vmatpush1.msra.mxu0 0.0
    %4325 = vmatprep.mubr.f32.mxu0 0.0
    %4326 = vmatmul.mubr.f32.gmra.mrb[0].mxu0 %v4248
    %v4327 = vpop.f32.mrb[0].mxu0
    %v4328 = vadd.f32 0.0, %v4327
    %v4329 = vpop.f32.mrb[0].mxu0
    %4330 = vmatprep.mubr.f32.mxu0 0.0
    %4331 = vmatmul.mubr.f32.gmra.mrb[0].mxu0 %v4251
    %v4332 = vpop.f32.mrb[0].mxu0
    %v4333 = vadd.f32 0.0, %v4332
    %v4334 = vpop.f32.mrb[0].mxu0
    %4335 = vmatprep.mubr.f32.mxu0 0.0
    %4336 = vmatmul.mubr.f32.gmra.mrb[0].mxu0 %v4254
    %v4337 = vpop.f32.mrb[0].mxu0
    %v4338 = vadd.f32 0.0, %v4337
    %v4339 = vpop.f32.mrb[0].mxu0
    %4340 = vmatprep.mubr.f32.mxu0 0.0
    %4341 = vmatmul.mubr.f32.gmra.mrb[0].mxu0 %v4257
    %v4342 = vpop.f32.mrb[0].mxu0
    %v4343 = vadd.f32 0.0, %v4342
    %v4344 = vpop.f32.mrb[0].mxu0
    %4345 = vdwg.mxu0
    %v4346 = vadd.f32 %v4227, %v4328
    %v4347 = vadd.f32 %v4228, %v4333
    %v4348 = vadd.f32 %v4229, %v4338
    %v4349 = vadd.f32 %v4230, %v4343
    %s4350 = scalar_lea.vmem [#allocation2], 736
    %v4351 = vld [vmem:[%s4350] sm:$0xff]
    %v4352 = vld [vmem:[%s4350 + $0x8] sm:$0xff]
    %v4353 = vld [vmem:[%s4350 + $0x10] sm:$0xff]
    %v4354 = vld [vmem:[%s4350 + $0x18] sm:$0x3]
    %4355 = vrot.lane.b32.xlu0 %v1558, 52
    %v4356 = vpop.permute.xlu0 %4355
    %4357 = vrot.lane.b32.xlu0 %v1564, 52
    %v4358 = vpop.permute.xlu0 %4357
    %4359 = vrot.lane.b32.xlu0 %v1570, 52
    %v4360 = vpop.permute.xlu0 %4359
    %4361 = vrot.lane.b32.xlu0 %v1576, 52
    %v4362 = vpop.permute.xlu0 %4361
    %v4367 = vsel %vm1602, %v4351, 0
    %v4370 = vsel %vm1602, %v4352, 0
    %v4373 = vsel %vm1602, %v4353, 0
    %v4376 = vsel %vm1602, %v4354, 0
    %v4378 = vsel %vm323, %v4362, 0
    %4380 = vmatprep.subr.mxu0 0.0
    %4381 = vmatpush1.msra.mxu0 %v4356
    %4382 = vmatprep.subr.mxu0 0.0
    %4383 = vmatpush1.msra.mxu0 %v4358
    %4384 = vmatprep.subr.mxu0 0.0
    %4385 = vmatpush1.msra.mxu0 %v4360
    %4386 = vmatprep.subr.mxu0 0.0
    %4387 = vmatpush1.msra.mxu0 %v4378
    %4388 = vmatprep.subr.mxu0 0.0
    %4389 = vmatpush1.msra.mxu0 0.0
    %4390 = vmatprep.subr.mxu0 0.0
    %4391 = vmatpush1.msra.mxu0 0.0
    %4392 = vmatprep.subr.mxu0 0.0
    %4393 = vmatpush1.msra.mxu0 0.0
    %4394 = vmatprep.subr.mxu0 0.0
    %4395 = vmatpush1.msra.mxu0 0.0
    %4396 = vmatprep.subr.mxu0 0.0
    %4397 = vmatpush1.msra.mxu0 0.0
    %4398 = vmatprep.subr.mxu0 0.0
    %4399 = vmatpush1.msra.mxu0 0.0
    %4400 = vmatprep.subr.mxu0 0.0
    %4401 = vmatpush1.msra.mxu0 0.0
    %4402 = vmatprep.subr.mxu0 0.0
    %4403 = vmatpush1.msra.mxu0 0.0
    %4404 = vmatprep.subr.mxu0 0.0
    %4405 = vmatpush1.msra.mxu0 0.0
    %4406 = vmatprep.subr.mxu0 0.0
    %4407 = vmatpush1.msra.mxu0 0.0
    %4408 = vmatprep.subr.mxu0 0.0
    %4409 = vmatpush1.msra.mxu0 0.0
    %4410 = vmatprep.subr.mxu0 0.0
    %4411 = vmatpush1.msra.mxu0 0.0
    %4412 = vmatprep.subr.mxu0 0.0
    %4413 = vmatpush1.msra.mxu0 0.0
    %4414 = vmatprep.subr.mxu0 0.0
    %4415 = vmatpush1.msra.mxu0 0.0
    %4416 = vmatprep.subr.mxu0 0.0
    %4417 = vmatpush1.msra.mxu0 0.0
    %4418 = vmatprep.subr.mxu0 0.0
    %4419 = vmatpush1.msra.mxu0 0.0
    %4420 = vmatprep.subr.mxu0 0.0
    %4421 = vmatpush1.msra.mxu0 0.0
    %4422 = vmatprep.subr.mxu0 0.0
    %4423 = vmatpush1.msra.mxu0 0.0
    %4424 = vmatprep.subr.mxu0 0.0
    %4425 = vmatpush1.msra.mxu0 0.0
    %4426 = vmatprep.subr.mxu0 0.0
    %4427 = vmatpush1.msra.mxu0 0.0
    %4428 = vmatprep.subr.mxu0 0.0
    %4429 = vmatpush1.msra.mxu0 0.0
    %4430 = vmatprep.subr.mxu0 0.0
    %4431 = vmatpush1.msra.mxu0 0.0
    %4432 = vmatprep.subr.mxu0 0.0
    %4433 = vmatpush1.msra.mxu0 0.0
    %4434 = vmatprep.subr.mxu0 0.0
    %4435 = vmatpush1.msra.mxu0 0.0
    %4436 = vmatprep.subr.mxu0 0.0
    %4437 = vmatpush1.msra.mxu0 0.0
    %4438 = vmatprep.subr.mxu0 0.0
    %4439 = vmatpush1.msra.mxu0 0.0
    %4440 = vmatprep.subr.mxu0 0.0
    %4441 = vmatpush1.msra.mxu0 0.0
    %4442 = vmatprep.subr.mxu0 0.0
    %4443 = vmatpush1.msra.mxu0 0.0
    %4444 = vmatprep.mubr.f32.mxu0 0.0
    %4445 = vmatmul.mubr.f32.gmra.mrb[0].mxu0 %v4367
    %v4446 = vpop.f32.mrb[0].mxu0
    %v4447 = vadd.f32 0.0, %v4446
    %v4448 = vpop.f32.mrb[0].mxu0
    %4449 = vmatprep.mubr.f32.mxu0 0.0
    %4450 = vmatmul.mubr.f32.gmra.mrb[0].mxu0 %v4370
    %v4451 = vpop.f32.mrb[0].mxu0
    %v4452 = vadd.f32 0.0, %v4451
    %v4453 = vpop.f32.mrb[0].mxu0
    %4454 = vmatprep.mubr.f32.mxu0 0.0
    %4455 = vmatmul.mubr.f32.gmra.mrb[0].mxu0 %v4373
    %v4456 = vpop.f32.mrb[0].mxu0
    %v4457 = vadd.f32 0.0, %v4456
    %v4458 = vpop.f32.mrb[0].mxu0
    %4459 = vmatprep.mubr.f32.mxu0 0.0
    %4460 = vmatmul.mubr.f32.gmra.mrb[0].mxu0 %v4376
    %v4461 = vpop.f32.mrb[0].mxu0
    %v4462 = vadd.f32 0.0, %v4461
    %v4463 = vpop.f32.mrb[0].mxu0
    %4464 = vdwg.mxu0
    %v4465 = vadd.f32 %v4346, %v4447
    %v4466 = vadd.f32 %v4347, %v4452
    %v4467 = vadd.f32 %v4348, %v4457
    %v4468 = vadd.f32 %v4349, %v4462
    %s4469 = scalar_lea.vmem [#allocation2], 768
    %v4470 = vld [vmem:[%s4469] sm:$0xff]
    %v4471 = vld [vmem:[%s4469 + $0x8] sm:$0xff]
    %v4472 = vld [vmem:[%s4469 + $0x10] sm:$0xff]
    %v4473 = vld [vmem:[%s4469 + $0x18] sm:$0x3]
    %4474 = vrot.lane.b32.xlu0 %v1558, 32
    %v4475 = vpop.permute.xlu0 %4474
    %4476 = vrot.lane.b32.xlu0 %v1564, 32
    %v4477 = vpop.permute.xlu0 %4476
    %4478 = vrot.lane.b32.xlu0 %v1570, 32
    %v4479 = vpop.permute.xlu0 %4478
    %4480 = vrot.lane.b32.xlu0 %v1576, 32
    %v4481 = vpop.permute.xlu0 %4480
    %v4486 = vsel %vm1602, %v4470, 0
    %v4489 = vsel %vm1602, %v4471, 0
    %v4492 = vsel %vm1602, %v4472, 0
    %v4495 = vsel %vm1602, %v4473, 0
    %v4497 = vsel %vm323, %v4481, 0
    %4499 = vmatprep.subr.mxu0 0.0
    %4500 = vmatpush1.msra.mxu0 %v4475
    %4501 = vmatprep.subr.mxu0 0.0
    %4502 = vmatpush1.msra.mxu0 %v4477
    %4503 = vmatprep.subr.mxu0 0.0
    %4504 = vmatpush1.msra.mxu0 %v4479
    %4505 = vmatprep.subr.mxu0 0.0
    %4506 = vmatpush1.msra.mxu0 %v4497
    %4507 = vmatprep.subr.mxu0 0.0
    %4508 = vmatpush1.msra.mxu0 0.0
    %4509 = vmatprep.subr.mxu0 0.0
    %4510 = vmatpush1.msra.mxu0 0.0
    %4511 = vmatprep.subr.mxu0 0.0
    %4512 = vmatpush1.msra.mxu0 0.0
    %4513 = vmatprep.subr.mxu0 0.0
    %4514 = vmatpush1.msra.mxu0 0.0
    %4515 = vmatprep.subr.mxu0 0.0
    %4516 = vmatpush1.msra.mxu0 0.0
    %4517 = vmatprep.subr.mxu0 0.0
    %4518 = vmatpush1.msra.mxu0 0.0
    %4519 = vmatprep.subr.mxu0 0.0
    %4520 = vmatpush1.msra.mxu0 0.0
    %4521 = vmatprep.subr.mxu0 0.0
    %4522 = vmatpush1.msra.mxu0 0.0
    %4523 = vmatprep.subr.mxu0 0.0
    %4524 = vmatpush1.msra.mxu0 0.0
    %4525 = vmatprep.subr.mxu0 0.0
    %4526 = vmatpush1.msra.mxu0 0.0
    %4527 = vmatprep.subr.mxu0 0.0
    %4528 = vmatpush1.msra.mxu0 0.0
    %4529 = vmatprep.subr.mxu0 0.0
    %4530 = vmatpush1.msra.mxu0 0.0
    %4531 = vmatprep.subr.mxu0 0.0
    %4532 = vmatpush1.msra.mxu0 0.0
    %4533 = vmatprep.subr.mxu0 0.0
    %4534 = vmatpush1.msra.mxu0 0.0
    %4535 = vmatprep.subr.mxu0 0.0
    %4536 = vmatpush1.msra.mxu0 0.0
    %4537 = vmatprep.subr.mxu0 0.0
    %4538 = vmatpush1.msra.mxu0 0.0
    %4539 = vmatprep.subr.mxu0 0.0
    %4540 = vmatpush1.msra.mxu0 0.0
    %4541 = vmatprep.subr.mxu0 0.0
    %4542 = vmatpush1.msra.mxu0 0.0
    %4543 = vmatprep.subr.mxu0 0.0
    %4544 = vmatpush1.msra.mxu0 0.0
    %4545 = vmatprep.subr.mxu0 0.0
    %4546 = vmatpush1.msra.mxu0 0.0
    %4547 = vmatprep.subr.mxu0 0.0
    %4548 = vmatpush1.msra.mxu0 0.0
    %4549 = vmatprep.subr.mxu0 0.0
    %4550 = vmatpush1.msra.mxu0 0.0
    %4551 = vmatprep.subr.mxu0 0.0
    %4552 = vmatpush1.msra.mxu0 0.0
    %4553 = vmatprep.subr.mxu0 0.0
    %4554 = vmatpush1.msra.mxu0 0.0
    %4555 = vmatprep.subr.mxu0 0.0
    %4556 = vmatpush1.msra.mxu0 0.0
    %4557 = vmatprep.subr.mxu0 0.0
    %4558 = vmatpush1.msra.mxu0 0.0
    %4559 = vmatprep.subr.mxu0 0.0
    %4560 = vmatpush1.msra.mxu0 0.0
    %4561 = vmatprep.subr.mxu0 0.0
    %4562 = vmatpush1.msra.mxu0 0.0
    %4563 = vmatprep.mubr.f32.mxu0 0.0
    %4564 = vmatmul.mubr.f32.gmra.mrb[0].mxu0 %v4486
    %v4565 = vpop.f32.mrb[0].mxu0
    %v4566 = vadd.f32 0.0, %v4565
    %v4567 = vpop.f32.mrb[0].mxu0
    %4568 = vmatprep.mubr.f32.mxu0 0.0
    %4569 = vmatmul.mubr.f32.gmra.mrb[0].mxu0 %v4489
    %v4570 = vpop.f32.mrb[0].mxu0
    %v4571 = vadd.f32 0.0, %v4570
    %v4572 = vpop.f32.mrb[0].mxu0
    %4573 = vmatprep.mubr.f32.mxu0 0.0
    %4574 = vmatmul.mubr.f32.gmra.mrb[0].mxu0 %v4492
    %v4575 = vpop.f32.mrb[0].mxu0
    %v4576 = vadd.f32 0.0, %v4575
    %v4577 = vpop.f32.mrb[0].mxu0
    %4578 = vmatprep.mubr.f32.mxu0 0.0
    %4579 = vmatmul.mubr.f32.gmra.mrb[0].mxu0 %v4495
    %v4580 = vpop.f32.mrb[0].mxu0
    %v4581 = vadd.f32 0.0, %v4580
    %v4582 = vpop.f32.mrb[0].mxu0
    %4583 = vdwg.mxu0
    %v4584 = vadd.f32 %v4465, %v4566
    %v4585 = vadd.f32 %v4466, %v4571
    %v4586 = vadd.f32 %v4467, %v4576
    %v4587 = vadd.f32 %v4468, %v4581
    %v4588 = vadd.f32 %v4584, 1e-16
    %v4589 = vadd.f32 %v4585, 1e-16
    %v4590 = vadd.f32 %v4586, 1e-16
    %v4591 = vadd.f32 %v4587, 1e-16
    %v4592 = vlog2.pop %v4588
    %v4593 = vmul.f32 %v4592, 0.6931472
    %v4594 = vlog2.pop %v4589
    %v4595 = vmul.f32 %v4594, 0.6931472
    %v4596 = vlog2.pop %v4590
    %v4597 = vmul.f32 %v4596, 0.6931472
    %v4598 = vlog2.pop %v4591
    %v4599 = vmul.f32 %v4598, 0.6931472
    %vm4600 = vcmask 162816
    %v4601 = vsel %vm4600, %v4593, 0.0
    %4602 = vadd.xlane.f32.xlu0 %v4601
    %v4603 = vpop.xlane.xlu0 %4602
    %v4604 = vsel %vm4600, %v4595, 0.0
    %4605 = vadd.xlane.f32.xlu0 %v4604
    %v4606 = vpop.xlane.xlu0 %4605
    %v4607 = vsel %vm4600, %v4597, 0.0
    %4608 = vadd.xlane.f32.xlu0 %v4607
    %v4609 = vpop.xlane.xlu0 %4608
    %vm4610 = vcmask 156672
    %v4611 = vsel %vm4610, %v4599, 0.0
    %4612 = vadd.xlane.f32.xlu0 %v4611
    %v4613 = vpop.xlane.xlu0 %4612
    %v4614 = vrcp.pop 20.0
    %v4615 = vmul.f32 %v4603, %v4614
    %v4616 = vmul.f32 %v4606, %v4614
    %v4617 = vmul.f32 %v4609, %v4614
    %v4618 = vmul.f32 %v4613, %v4614
    %v4619 = vsub.f32 %v4593, %v4615
    %v4620 = vsub.f32 %v4595, %v4616
    %v4621 = vsub.f32 %v4597, %v4617
    %v4622 = vsub.f32 %v4599, %v4618
    %v4623 = vmul.f32 %v4619, %v4619
    %v4624 = vmul.f32 %v4620, %v4620
    %v4625 = vmul.f32 %v4621, %v4621
    %v4626 = vmul.f32 %v4622, %v4622
    %v4627 = vsel %vm4600, %v4623, 0.0
    %4628 = vadd.xlane.f32.xlu0 %v4627
    %v4629 = vpop.xlane.xlu0 %4628
    %v4630 = vsel %vm4600, %v4624, 0.0
    %4631 = vadd.xlane.f32.xlu0 %v4630
    %v4632 = vpop.xlane.xlu0 %4631
    %v4633 = vsel %vm4600, %v4625, 0.0
    %4634 = vadd.xlane.f32.xlu0 %v4633
    %v4635 = vpop.xlane.xlu0 %4634
    %v4636 = vsel %vm4610, %v4626, 0.0
    %4637 = vadd.xlane.f32.xlu0 %v4636
    %v4638 = vpop.xlane.xlu0 %4637
    %v4639 = vmul.f32 %v4629, %v4614
    %v4640 = vmul.f32 %v4632, %v4614
    %v4641 = vmul.f32 %v4635, %v4614
    %v4642 = vmul.f32 %v4638, %v4614
    %v4643 = vadd.f32 %v4639, 1e-05
    %v4644 = vadd.f32 %v4640, 1e-05
    %v4645 = vadd.f32 %v4641, 1e-05
    %v4646 = vadd.f32 %v4642, 1e-05
    %v4647 = vrsqrt.pop %v4643
    %v4648 = vrsqrt.pop %v4644
    %v4649 = vrsqrt.pop %v4645
    %v4650 = vrsqrt.pop %v4646
    %v4651 = vmul.f32 %v53, %v4647
    %v4652 = vmul.f32 %v54, %v4648
    %v4653 = vmul.f32 %v55, %v4649
    %v4654 = vmul.f32 %v56, %v4650
    %4656 = vset.pattern.permute.xlu0 3
    %4657 = vperm.xlu0 %4656, %v4651
    %v4658 = vpop.permute.xlu0 %4657
    %4661 = vset.pattern.permute.xlu0 3
    %4662 = vperm.xlu0 %4661, %v4652
    %v4663 = vpop.permute.xlu0 %4662
    %4666 = vset.pattern.permute.xlu0 3
    %4667 = vperm.xlu0 %4666, %v4653
    %v4668 = vpop.permute.xlu0 %4667
    %4671 = vset.pattern.permute.xlu0 3
    %4672 = vperm.xlu0 %4671, %v4654
    %v4673 = vpop.permute.xlu0 %4672
    %v4675 = vmul.f32 %v4619, %v4658
    %v4676 = vmul.f32 %v4620, %v4663
    %v4677 = vmul.f32 %v4621, %v4668
    %v4678 = vmul.f32 %v4622, %v4673
    %4679 = vset.pattern.permute.xlu0 4
    %4680 = vperm.xlu0 %4679, %v53
    %v4681 = vpop.permute.xlu0 %4680
    %4683 = vset.pattern.permute.xlu0 4
    %4684 = vperm.xlu0 %4683, %v54
    %v4685 = vpop.permute.xlu0 %4684
    %4687 = vset.pattern.permute.xlu0 4
    %4688 = vperm.xlu0 %4687, %v55
    %v4689 = vpop.permute.xlu0 %4688
    %4691 = vset.pattern.permute.xlu0 4
    %4692 = vperm.xlu0 %4691, %v56
    %v4693 = vpop.permute.xlu0 %4692
    %v4695 = vadd.f32 %v4675, %v4681
    %v4696 = vadd.f32 %v4676, %v4685
    %v4697 = vadd.f32 %v4677, %v4689
    %v4698 = vadd.f32 %v4678, %v4693
    %4699 = vst.msk [vmem:[%s5] sm:$0xff] %vm4600, %v4695
    %4700 = vst.msk [vmem:[%s5 + $0x8] sm:$0xff] %vm4600, %v4696
    %4701 = vst.msk [vmem:[%s5 + $0x10] sm:$0xff] %vm4600, %v4697
    %4702 = vst.msk [vmem:[%s5 + $0x18] sm:$0x3] %vm4610, %v4698
    // Predicated region
    $region30: #{tpu_custom_call.1} parent=1 // pred_check
      _
    $region31: #{tpu_custom_call.1} parent=1 // pred_check_branch
      %4704 = sbr.rel (0) target = $region33
    $region32: #{tpu_custom_call.1} parent=1 // pred_region
      _
    $region33: #{tpu_custom_call.1} parent=1 // pred_fallthru
      _
    // Predicated region
    $region34: #{tpu_custom_call.1} parent=1 // pred_check
      _
    $region35: #{tpu_custom_call.1} parent=1 // pred_check_branch
      %4706 = sbr.rel (0) target = $region37
    $region36: #{tpu_custom_call.1} parent=1 // pred_region
      _
    $region37: #{tpu_custom_call.1} parent=1 // pred_fallthru
      _
    %4707 = vsyncpa [#allocation3], 1
    %4708 = vsyncpa [#allocation5], 1

</llo_original>
